<compile_context>
chip_gen: v5e
topology: v5e:2x2
jax: 0.10.0
libtpu: 0.0.40
codegen_flags: <defaults>
</compile_context>

<pallas_src>
import jax
import jax.numpy as jnp
from jax import lax
from jax.experimental import pallas as pl
from jax.experimental.pallas import tpu as pltpu

BN_EPS = 1e-5
LANE = 128


def _round_up(x, m):
    return ((x + m - 1) // m) * m


def _vmem_capacity_bytes():
    try:
        return int(pltpu.get_tpu_info().vmem_capacity_bytes)
    except Exception:
        return 64 * 1024 * 1024          # conservative fallback (v7x physical VMEM)


def _pick_block_rows(H, Wp, Cin, Cmat, Cout, budget_bytes, resident_bytes):
    """Largest bH dividing H whose per-step working set fits the VMEM budget; Macc capped
    to keep per-step latency reasonable."""
    # TODO(synk): pad H with a masked tail instead of requiring H % bH == 0 so awkward H
    # (e.g. 56, 227) still gets large row blocks.
    best = 1
    for bH in range(1, H + 1):
        if H % bH:
            continue
        macc = bH * Wp
        if macc > 8192:
            break
        blk = (macc * _round_up(9 * Cin, LANE) * 2       # bf16 im2col staging (lane padded)
               + macc * Cmat * 4                         # f32 matmul result temp
               + 2 * macc * _round_up(Cout, LANE) * 2)   # double-buffered bf16 conv-out block
        if resident_bytes + blk <= budget_bytes:
            best = bH
    return best


def _conv_relu_bn_impl(x_nchw, w_oihw, gamma, beta):
    N, Cin, H, W = x_nchw.shape
    Cout = w_oihw.shape[0]
    # MXU N-dim padding: 128 lanes (256-multiples once Cout is large, v6e/v7x MXU width).
    Cmat = _round_up(Cout, 256) if Cout > 128 else LANE
    # Pad W so Wp is a multiple of 8 (sublane-aligned row blocks / tap shifts).
    Wp = _round_up(W + 2, 8)
    Lpad = (H + 3) * Wp                  # 1 top halo + 1 bottom halo + 1 slack row, flattened

    cap = _vmem_capacity_bytes()
    budget = int(cap * 0.70)             # tiling budget (leave headroom)
    vmem_limit = int(cap * 0.85)

    # whole padded image resident per n (double-buffered across n), bf16
    resident = (2 * Lpad * _round_up(Cin, LANE) * 2
                + 2 * _round_up(9 * Cin, 8) * Cmat * 2)

    bH = _pick_block_rows(H, Wp, Cin, Cmat, Cout, budget, resident)
    n_rb = H // bH
    Macc = bH * Wp                       # output rows per block (flattened, junk cols incl.)
    Mwin = (bH + 2) * Wp + 2             # flattened halo-window rows
    step = bH * Wp
    # Row-group split so both v7x TensorCores get work when N is small; each group owns its
    # own stats slot, so the 'arbitrary' rb accumulation stays sequential per (n, g).
    G = 2 if (n_rb % 2 == 0 and n_rb >= 2) else 1
    rbs = n_rb // G

    # ---- boundary glue (layout only, one XLA pass): NCHW->NHWC, bf16, halo pad, flatten.
    x_nhwc = jnp.transpose(x_nchw, (0, 2, 3, 1)).astype(jnp.bfloat16)
    x_pad = jnp.pad(x_nhwc, ((0, 0), (1, 2), (1, Wp - W - 1), (0, 0)))
    x_flat = x_pad.reshape(N, Lpad, Cin)

    # taps packed (kh, kw, Cin) -> rows of a single (9*Cin, Cmat) RHS for one K=9*Cin matmul
    w9 = jnp.transpose(w_oihw, (2, 3, 1, 0)).reshape(9, Cin, Cout)
    w_im2col = jnp.pad(w9, ((0, 0), (0, 0), (0, Cmat - Cout))).astype(jnp.bfloat16)
    w_im2col = w_im2col.reshape(9 * Cin, Cmat)

    inv_count = 1.0 / float(N * H * W)

    # --------------------- phase 1: conv (single matmul) + per-(n,g) sum / sumsq ----------
    def conv_stats_kernel(x_ref, w_ref, conv_ref, stats_ref, lhs_ref):
        g = pl.program_id(1)
        rb = pl.program_id(2)
        start = pl.multiple_of((g * rbs + rb) * step, 8)   # step is a multiple of 8 (Wp is)
        win = x_ref[pl.ds(start, Mwin), :]                 # (Mwin, Cin) bf16 halo window

        # im2col staging: 9 static row-offset slices of ONE flat buffer laid side by side
        # along K, then a single MXU matmul with K = 9*Cin (no per-tap f32 accumulator RMW).
        for t in range(9):
            sh = (t // 3) * Wp + (t % 3)
            lhs_ref[:, t * Cin:(t + 1) * Cin] = win[sh:sh + Macc, :]
        acc = jnp.dot(lhs_ref[...], w_ref[...],
                      preferred_element_type=jnp.float32)  # (Macc, Cmat) f32
        accv = acc[:, :Cout]                               # true output channels only
        conv_ref[...] = accv.astype(jnp.bfloat16)          # narrow bf16 intermediate

        # fused single-pass BN statistics in f32; mask the junk columns (x >= W).
        col = lax.broadcasted_iota(jnp.int32, (Macc, 1), 0) % Wp
        vm = jnp.where(col < W, accv, 0.0)
        s = jnp.concatenate([jnp.sum(vm, axis=0, keepdims=True),
                             jnp.sum(vm * vm, axis=0, keepdims=True)], axis=0)

        @pl.when(rb == 0)
        def _init():
            stats_ref[...] = jnp.zeros_like(stats_ref)

        stats_ref[...] += s

    conv_cost = pl.CostEstimate(
        flops=2 * N * H * Wp * 9 * Cin * Cmat,
        transcendentals=0,
        bytes_accessed=(x_flat.size * 2 + w_im2col.size * 2
                        + N * H * Wp * Cout * 2 + N * G * 2 * Cout * 4))

    conv_flat, stats = pl.pallas_call(
        conv_stats_kernel,
        out_shape=(
            jax.ShapeDtypeStruct((N, H * Wp, Cout), jnp.bfloat16),
            jax.ShapeDtypeStruct((N, G, 2, Cout), jnp.float32),
        ),
        grid=(N, G, rbs),
        in_specs=[
            pl.BlockSpec((None, Lpad, Cin), lambda n, g, rb: (n, 0, 0)),   # image resident per n
            pl.BlockSpec((9 * Cin, Cmat), lambda n, g, rb: (0, 0)),        # packed taps, resident
        ],
        out_specs=(
            pl.BlockSpec((None, Macc, Cout), lambda n, g, rb: (n, g * rbs + rb, 0)),
            pl.BlockSpec((None, None, 2, Cout), lambda n, g, rb: (n, g, 0, 0)),
        ),
        scratch_shapes=[pltpu.VMEM((Macc, 9 * Cin), jnp.bfloat16)],        # im2col staging
        compiler_params=pltpu.CompilerParams(
            dimension_semantics=("parallel", "parallel", "arbitrary"),
            vmem_limit_bytes=vmem_limit),
        cost_estimate=conv_cost,
    )(x_flat, w_im2col)

    # ---------------- BN finalize: tiny XLA ops on (Cout,) vectors, done once ----------------
    tot = jnp.sum(stats, axis=(0, 1))                      # merge per-(n, group) partials
    mean = tot[0] * inv_count
    ex2 = tot[1] * inv_count
    # TODO(synk): E[x^2]-mean^2 in f32 can cancel when |mean| >> std; use a shifted/two-pass
    # variance if tighter training-parity numerics are ever required.
    var = jnp.maximum(ex2 - mean * mean, 0.0)
    inv_std = lax.rsqrt(var + BN_EPS)
    scale_v = gamma.astype(jnp.float32) * inv_std
    shift_v = beta.astype(jnp.float32) - mean * scale_v
    scale2 = scale_v.reshape(1, Cout)
    shift2 = shift_v.reshape(1, Cout)

    # --------------------- phase 2: streaming scale/shift + ReLU --------------------------
    conv4 = conv_flat.reshape(N, H, Wp, Cout)              # free metadata reshape

    def bn_relu_kernel(conv_ref, scale_ref, shift_ref, o_ref):
        v = conv_ref[:, :W, :].astype(jnp.float32)         # drop junk columns on load
        y = v * scale_ref[0, :] + shift_ref[0, :]
        o_ref[...] = jnp.maximum(y, 0.0)

    bn_cost = pl.CostEstimate(
        flops=3 * N * H * W * Cout,
        transcendentals=0,
        bytes_accessed=N * H * Wp * Cout * 2 + N * H * W * Cout * 4 + 4 * Cout * 4)

    y_nhwc = pl.pallas_call(
        bn_relu_kernel,
        out_shape=jax.ShapeDtypeStruct((N, H, W, Cout), jnp.float32),
        grid=(N, n_rb),
        in_specs=[
            pl.BlockSpec((None, bH, Wp, Cout), lambda n, rb: (n, rb, 0, 0)),
            pl.BlockSpec((1, Cout), lambda n, rb: (0, 0)),
            pl.BlockSpec((1, Cout), lambda n, rb: (0, 0)),
        ],
        out_specs=pl.BlockSpec((None, bH, W, Cout), lambda n, rb: (n, rb, 0, 0)),
        compiler_params=pltpu.CompilerParams(
            dimension_semantics=("parallel", "parallel"),
            vmem_limit_bytes=vmem_limit),
        cost_estimate=bn_cost,
    )(conv4, scale2, shift2)

    # NHWC -> NCHW on the exact-size output (single XLA layout pass).
    return jnp.transpose(y_nhwc, (0, 3, 1, 2)).astype(x_nchw.dtype)


conv_relu_bn = jax.jit(_conv_relu_bn_impl)


def _reference(x_nchw, w_oihw, gamma, beta):
    """Pure-JAX reference mirroring PyTorch Conv2d + BatchNorm2d(train) + ReLU (f32)."""
    conv = lax.conv_general_dilated(
        x_nchw, w_oihw, window_strides=(1, 1), padding=((1, 1), (1, 1)),
        dimension_numbers=("NCHW", "OIHW", "NCHW"),
    ).astype(jnp.float32)
    mean = jnp.mean(conv, axis=(0, 2, 3), keepdims=True)
    var = jnp.mean((conv - mean) ** 2, axis=(0, 2, 3), keepdims=True)
    y = (conv - mean) * lax.rsqrt(var + BN_EPS)
    y = y * gamma.reshape(1, -1, 1, 1) + beta.reshape(1, -1, 1, 1)
    return jnp.maximum(y, 0.0)


if __name__ == "__main__":
    key = jax.random.PRNGKey(0)
    k_x, k_w = jax.random.split(key)

    N, Cin, Cout, H, W = 2, 4, 8, 16, 16

    x = jax.random.normal(k_x, (N, Cin, H, W), dtype=jnp.float32)
    # Conv2d weight (Cout, Cin, 3, 3), deterministic init (module has no bias).
    fan_in = Cin * 3 * 3
    bound = (1.0 / fan_in) ** 0.5
    w = jax.random.uniform(k_w, (Cout, Cin, 3, 3), dtype=jnp.float32,
                           minval=-bound, maxval=bound)
    # BatchNorm2d default init: weight=1, bias=0.
    gamma = jnp.ones((Cout,), jnp.float32)
    beta = jnp.zeros((Cout,), jnp.float32)

    out = jax.block_until_ready(conv_relu_bn(x, w, gamma, beta))
    ref = jax.block_until_ready(_reference(x, w, gamma, beta))

    assert out.shape == (N, Cout, H, W)
    # bf16 MXU operands + bf16 conv intermediate vs an all-f32 reference -> loosened tolerance.
    assert jnp.allclose(out, ref, rtol=3e-2, atol=3e-2), \
        f"max abs diff {jnp.max(jnp.abs(out - ref))}"

    print("KERNEL_OK")
</pallas_src>

<mosaic_0001>
module attributes {stable_mosaic.version = 11 : i64} {
  func.func @conv_stats_kernel(%arg0: i32, %arg1: i32, %arg2: i32, %arg3: memref<1x456x4xbf16, #tpu.memory_space<vmem>>, %arg4: memref<36x128xbf16, #tpu.memory_space<vmem>>, %arg5: memref<1x384x8xbf16, #tpu.memory_space<vmem>>, %arg6: memref<1x1x2x8xf32, #tpu.memory_space<vmem>>, %arg7: memref<384x36xbf16, #tpu.memory_space<vmem>>) attributes {dimension_semantics = [#tpu.dimension_semantics<parallel>, #tpu.dimension_semantics<parallel>, #tpu.dimension_semantics<arbitrary>], iteration_bounds = array<i64: 2, 1, 1>, scalar_prefetch = 0 : i64, scratch_operands = 1 : i64, tpu.core_type = #tpu.core_type<tc>, window_params = [{transform_indices = @transform_0, window_bounds = array<i64: 1, 456, 4>}, {pipeline_mode = #tpu.pipeline_mode<synchronous>, transform_indices = @transform_1, window_bounds = array<i64: 36, 128>}, {transform_indices = @transform_2, window_bounds = array<i64: 1, 384, 8>}, {transform_indices = @transform_3, window_bounds = array<i64: 1, 1, 2, 8>}]} {
    %c1_i32 = arith.constant 1 : i32
    %0 = arith.muli %arg1, %c1_i32 : i32
    %1 = arith.addi %0, %arg2 : i32
    %c384_i32 = arith.constant 384 : i32
    %2 = arith.muli %1, %c384_i32 : i32
    %3 = tpu.assume_multiple %2, 8 : i32
    %c0 = arith.constant 0 : index
    %4 = arith.index_cast %3 : i32 to index
    %c0_0 = arith.constant 0 : index
    %5 = vector.load %arg3[%c0, %4, %c0_0] : memref<1x456x4xbf16, #tpu.memory_space<vmem>>, vector<1x434x4xbf16>
    %6 = vector.shape_cast %5 : vector<1x434x4xbf16> to vector<434x4xbf16>
    %7 = vector.extract_strided_slice %6 {offsets = [0, 0], sizes = [384, 4], strides = [1, 1]} : vector<434x4xbf16> to vector<384x4xbf16>
    %c0_1 = arith.constant 0 : index
    %c0_2 = arith.constant 0 : index
    %8 = vector.load %arg7[%c0_1, %c0_2] : memref<384x36xbf16, #tpu.memory_space<vmem>>, vector<384x4xbf16>
    tpu.vector_store %arg7[%c0_1, %c0_2], %7 {strides = array<i32>} : memref<384x36xbf16, #tpu.memory_space<vmem>>, vector<384x4xbf16>,
    %9 = vector.extract_strided_slice %6 {offsets = [1, 0], sizes = [384, 4], strides = [1, 1]} : vector<434x4xbf16> to vector<384x4xbf16>
    %c0_3 = arith.constant 0 : index
    %c4 = arith.constant 4 : index
    %10 = vector.load %arg7[%c0_3, %c4] : memref<384x36xbf16, #tpu.memory_space<vmem>>, vector<384x4xbf16>
    tpu.vector_store %arg7[%c0_3, %c4], %9 {strides = array<i32>} : memref<384x36xbf16, #tpu.memory_space<vmem>>, vector<384x4xbf16>,
    %11 = vector.extract_strided_slice %6 {offsets = [2, 0], sizes = [384, 4], strides = [1, 1]} : vector<434x4xbf16> to vector<384x4xbf16>
    %c0_4 = arith.constant 0 : index
    %c8 = arith.constant 8 : index
    %12 = vector.load %arg7[%c0_4, %c8] : memref<384x36xbf16, #tpu.memory_space<vmem>>, vector<384x4xbf16>
    tpu.vector_store %arg7[%c0_4, %c8], %11 {strides = array<i32>} : memref<384x36xbf16, #tpu.memory_space<vmem>>, vector<384x4xbf16>,
    %13 = vector.extract_strided_slice %6 {offsets = [24, 0], sizes = [384, 4], strides = [1, 1]} : vector<434x4xbf16> to vector<384x4xbf16>
    %c0_5 = arith.constant 0 : index
    %c12 = arith.constant 12 : index
    %14 = vector.load %arg7[%c0_5, %c12] : memref<384x36xbf16, #tpu.memory_space<vmem>>, vector<384x4xbf16>
    tpu.vector_store %arg7[%c0_5, %c12], %13 {strides = array<i32>} : memref<384x36xbf16, #tpu.memory_space<vmem>>, vector<384x4xbf16>,
    %15 = vector.extract_strided_slice %6 {offsets = [25, 0], sizes = [384, 4], strides = [1, 1]} : vector<434x4xbf16> to vector<384x4xbf16>
    %c0_6 = arith.constant 0 : index
    %c16 = arith.constant 16 : index
    %16 = vector.load %arg7[%c0_6, %c16] : memref<384x36xbf16, #tpu.memory_space<vmem>>, vector<384x4xbf16>
    tpu.vector_store %arg7[%c0_6, %c16], %15 {strides = array<i32>} : memref<384x36xbf16, #tpu.memory_space<vmem>>, vector<384x4xbf16>,
    %17 = vector.extract_strided_slice %6 {offsets = [26, 0], sizes = [384, 4], strides = [1, 1]} : vector<434x4xbf16> to vector<384x4xbf16>
    %c0_7 = arith.constant 0 : index
    %c20 = arith.constant 20 : index
    %18 = vector.load %arg7[%c0_7, %c20] : memref<384x36xbf16, #tpu.memory_space<vmem>>, vector<384x4xbf16>
    tpu.vector_store %arg7[%c0_7, %c20], %17 {strides = array<i32>} : memref<384x36xbf16, #tpu.memory_space<vmem>>, vector<384x4xbf16>,
    %19 = vector.extract_strided_slice %6 {offsets = [48, 0], sizes = [384, 4], strides = [1, 1]} : vector<434x4xbf16> to vector<384x4xbf16>
    %c0_8 = arith.constant 0 : index
    %c24 = arith.constant 24 : index
    %20 = vector.load %arg7[%c0_8, %c24] : memref<384x36xbf16, #tpu.memory_space<vmem>>, vector<384x4xbf16>
    tpu.vector_store %arg7[%c0_8, %c24], %19 {strides = array<i32>} : memref<384x36xbf16, #tpu.memory_space<vmem>>, vector<384x4xbf16>,
    %21 = vector.extract_strided_slice %6 {offsets = [49, 0], sizes = [384, 4], strides = [1, 1]} : vector<434x4xbf16> to vector<384x4xbf16>
    %c0_9 = arith.constant 0 : index
    %c28 = arith.constant 28 : index
    %22 = vector.load %arg7[%c0_9, %c28] : memref<384x36xbf16, #tpu.memory_space<vmem>>, vector<384x4xbf16>
    tpu.vector_store %arg7[%c0_9, %c28], %21 {strides = array<i32>} : memref<384x36xbf16, #tpu.memory_space<vmem>>, vector<384x4xbf16>,
    %23 = vector.extract_strided_slice %6 {offsets = [50, 0], sizes = [384, 4], strides = [1, 1]} : vector<434x4xbf16> to vector<384x4xbf16>
    %c0_10 = arith.constant 0 : index
    %c32 = arith.constant 32 : index
    %24 = vector.load %arg7[%c0_10, %c32] : memref<384x36xbf16, #tpu.memory_space<vmem>>, vector<384x4xbf16>
    tpu.vector_store %arg7[%c0_10, %c32], %23 {strides = array<i32>} : memref<384x36xbf16, #tpu.memory_space<vmem>>, vector<384x4xbf16>,
    %c0_11 = arith.constant 0 : index
    %c0_12 = arith.constant 0 : index
    %25 = vector.load %arg7[%c0_11, %c0_12] : memref<384x36xbf16, #tpu.memory_space<vmem>>, vector<384x36xbf16>
    %c0_13 = arith.constant 0 : index
    %c0_14 = arith.constant 0 : index
    %26 = vector.load %arg4[%c0_13, %c0_14] : memref<36x128xbf16, #tpu.memory_space<vmem>>, vector<36x128xbf16>
    %cst = arith.constant dense<0.000000e+00> : vector<384x128xf32>
    %27 = tpu.matmul %25, %26, %cst {dimension_numbers = #tpu.dot_dimension_numbers<[1], [0], [0], [1], [0, 0, 1, 1], [], []>} : vector<384x36xbf16>, vector<36x128xbf16>, vector<384x128xf32> -> vector<384x128xf32>
    %28 = vector.extract_strided_slice %27 {offsets = [0, 0], sizes = [384, 8], strides = [1, 1]} : vector<384x128xf32> to vector<384x8xf32>
    %29 = arith.truncf %28 : vector<384x8xf32> to vector<384x8xbf16>
    %c0_15 = arith.constant 0 : index
    %c0_16 = arith.constant 0 : index
    %c0_17 = arith.constant 0 : index
    %30 = vector.load %arg5[%c0_15, %c0_16, %c0_17] : memref<1x384x8xbf16, #tpu.memory_space<vmem>>, vector<1x384x8xbf16>
    %31 = vector.shape_cast %30 : vector<1x384x8xbf16> to vector<384x8xbf16>
    %32 = vector.shape_cast %29 : vector<384x8xbf16> to vector<1x384x8xbf16>
    tpu.vector_store %arg5[%c0_15, %c0_16, %c0_17], %32 {strides = array<i32>} : memref<1x384x8xbf16, #tpu.memory_space<vmem>>, vector<1x384x8xbf16>,
    %33 = tpu.iota {dimensions = array<i32: 0>} : vector<384x1xi32>
    %c24_i32 = arith.constant 24 : i32
    %c0_i32 = arith.constant 0 : i32
    %34 = arith.cmpi eq, %c24_i32, %c0_i32 : i32
    %c1_i32_18 = arith.constant 1 : i32
    %35 = arith.select %34, %c1_i32_18, %c24_i32 : i32
    %36 = vector.broadcast %35 : i32 to vector<384x1xi32>
    %37 = arith.remsi %33, %36 : vector<384x1xi32>
    %c0_i32_19 = arith.constant 0 : i32
    %38 = vector.broadcast %c0_i32_19 : i32 to vector<384x1xi32>
    %39 = arith.cmpi ne, %37, %38 : vector<384x1xi32>
    %c0_i32_20 = arith.constant 0 : i32
    %40 = vector.broadcast %c0_i32_20 : i32 to vector<384x1xi32>
    %41 = arith.cmpi slt, %37, %40 : vector<384x1xi32>
    %c0_i32_21 = arith.constant 0 : i32
    %42 = arith.cmpi slt, %35, %c0_i32_21 : i32
    %43 = vector.broadcast %42 : i1 to vector<384x1xi1>
    %44 = vector.broadcast %43 : vector<384x1xi1> to vector<384x1xi1>
    %45 = arith.xori %41, %44 : vector<384x1xi1>
    %46 = arith.andi %45, %39 : vector<384x1xi1>
    %47 = vector.broadcast %35 : i32 to vector<384x1xi32>
    %48 = arith.addi %37, %47 : vector<384x1xi32>
    %49 = arith.select %46, %48, %37 : vector<384x1xi1>, vector<384x1xi32>
    %c16_i32 = arith.constant 16 : i32
    %50 = vector.broadcast %c16_i32 : i32 to vector<384x1xi32>
    %51 = arith.cmpi slt, %49, %50 : vector<384x1xi32>
    %cst_22 = arith.constant 0.000000e+00 : f32
    %52 = vector.shape_cast %51 : vector<384x1xi1> to vector<384x1xi1>
    %53 = vector.broadcast %52 : vector<384x1xi1> to vector<384x8xi1>
    %54 = vector.broadcast %cst_22 : f32 to vector<384x8xf32>
    %55 = arith.select %53, %28, %54 : vector<384x8xi1>, vector<384x8xf32>
    %cst_23 = arith.constant dense<0.000000e+00> : vector<8xf32>
    %56 = vector.multi_reduction <add>, %55, %cst_23 [0] : vector<384x8xf32> to vector<8xf32>
    %57 = vector.shape_cast %56 : vector<8xf32> to vector<1x8xf32>
    %58 = arith.mulf %55, %55 : vector<384x8xf32>
    %cst_24 = arith.constant dense<0.000000e+00> : vector<8xf32>
    %59 = vector.multi_reduction <add>, %58, %cst_24 [0] : vector<384x8xf32> to vector<8xf32>
    %60 = vector.shape_cast %59 : vector<8xf32> to vector<1x8xf32>
    %61 = tpu.concatenate %57, %60 in 0 : vector<1x8xf32>, vector<1x8xf32> -> vector<2x8xf32>
    %c0_i32_25 = arith.constant 0 : i32
    %62 = arith.cmpi eq, %arg2, %c0_i32_25 : i32
    %63 = arith.extui %62 : i1 to i32
    %c0_i32_26 = arith.constant 0 : i32
    %64 = arith.cmpi ne, %63, %c0_i32_26 : i32
    scf.if %64 {
      %cst_35 = arith.constant 0.000000e+00 : f32
      %71 = vector.broadcast %cst_35 : f32 to vector<2x8xf32>
      %c0_36 = arith.constant 0 : index
      %c0_37 = arith.constant 0 : index
      %c0_38 = arith.constant 0 : index
      %c0_39 = arith.constant 0 : index
      %72 = vector.load %arg6[%c0_36, %c0_37, %c0_38, %c0_39] : memref<1x1x2x8xf32, #tpu.memory_space<vmem>>, vector<1x1x2x8xf32>
      %73 = vector.shape_cast %72 : vector<1x1x2x8xf32> to vector<2x8xf32>
      %74 = vector.shape_cast %71 : vector<2x8xf32> to vector<1x1x2x8xf32>
      tpu.vector_store %arg6[%c0_36, %c0_37, %c0_38, %c0_39], %74 {strides = array<i32>} : memref<1x1x2x8xf32, #tpu.memory_space<vmem>>, vector<1x1x2x8xf32>,
    } else {
    }
    %c0_27 = arith.constant 0 : index
    %c0_28 = arith.constant 0 : index
    %c0_29 = arith.constant 0 : index
    %c0_30 = arith.constant 0 : index
    %65 = vector.load %arg6[%c0_27, %c0_28, %c0_29, %c0_30] : memref<1x1x2x8xf32, #tpu.memory_space<vmem>>, vector<1x1x2x8xf32>
    %66 = vector.shape_cast %65 : vector<1x1x2x8xf32> to vector<2x8xf32>
    %67 = arith.addf %66, %61 : vector<2x8xf32>
    %c0_31 = arith.constant 0 : index
    %c0_32 = arith.constant 0 : index
    %c0_33 = arith.constant 0 : index
    %c0_34 = arith.constant 0 : index
    %68 = vector.load %arg6[%c0_31, %c0_32, %c0_33, %c0_34] : memref<1x1x2x8xf32, #tpu.memory_space<vmem>>, vector<1x1x2x8xf32>
    %69 = vector.shape_cast %68 : vector<1x1x2x8xf32> to vector<2x8xf32>
    %70 = vector.shape_cast %67 : vector<2x8xf32> to vector<1x1x2x8xf32>
    tpu.vector_store %arg6[%c0_31, %c0_32, %c0_33, %c0_34], %70 {strides = array<i32>} : memref<1x1x2x8xf32, #tpu.memory_space<vmem>>, vector<1x1x2x8xf32>,
    return
  }
  func.func @transform_0(%arg0: i32, %arg1: i32, %arg2: i32) -> (i32, i32, i32) {
    %c0_i32 = arith.constant 0 : i32
    %c0_i32_0 = arith.constant 0 : i32
    %c0_i32_1 = arith.constant 0 : i32
    return %arg0, %c0_i32, %c0_i32_0 : i32, i32, i32
  }
  func.func @transform_1(%arg0: i32, %arg1: i32, %arg2: i32) -> (i32, i32) {
    %c0_i32 = arith.constant 0 : i32
    %c0_i32_0 = arith.constant 0 : i32
    %c0_i32_1 = arith.constant 0 : i32
    return %c0_i32, %c0_i32_0 : i32, i32
  }
  func.func @transform_2(%arg0: i32, %arg1: i32, %arg2: i32) -> (i32, i32, i32) {
    %c1_i32 = arith.constant 1 : i32
    %0 = arith.muli %arg1, %c1_i32 : i32
    %1 = arith.addi %0, %arg2 : i32
    %c0_i32 = arith.constant 0 : i32
    %c0_i32_0 = arith.constant 0 : i32
    return %arg0, %1, %c0_i32 : i32, i32, i32
  }
  func.func @transform_3(%arg0: i32, %arg1: i32, %arg2: i32) -> (i32, i32, i32, i32) {
    %c0_i32 = arith.constant 0 : i32
    %c0_i32_0 = arith.constant 0 : i32
    %c0_i32_1 = arith.constant 0 : i32
    return %arg0, %arg1, %c0_i32, %c0_i32_0 : i32, i32, i32, i32
  }
}

module attributes {stable_mosaic.version = 11 : i64} {
  func.func @bn_relu_kernel(%arg0: i32, %arg1: i32, %arg2: memref<1x16x24x8xbf16, #tpu.memory_space<vmem>>, %arg3: memref<1x8xf32, #tpu.memory_space<vmem>>, %arg4: memref<1x8xf32, #tpu.memory_space<vmem>>, %arg5: memref<1x16x16x8xf32, #tpu.memory_space<vmem>>) attributes {dimension_semantics = [#tpu.dimension_semantics<parallel>, #tpu.dimension_semantics<parallel>], iteration_bounds = array<i64: 2, 1>, scalar_prefetch = 0 : i64, scratch_operands = 0 : i64, tpu.core_type = #tpu.core_type<tc>, window_params = [{transform_indices = @transform_0, window_bounds = array<i64: 1, 16, 24, 8>}, {pipeline_mode = #tpu.pipeline_mode<synchronous>, transform_indices = @transform_1, window_bounds = array<i64: 1, 8>}, {pipeline_mode = #tpu.pipeline_mode<synchronous>, transform_indices = @transform_2, window_bounds = array<i64: 1, 8>}, {transform_indices = @transform_3, window_bounds = array<i64: 1, 16, 16, 8>}]} {
    %c0 = arith.constant 0 : index
    %c0_0 = arith.constant 0 : index
    %c0_1 = arith.constant 0 : index
    %c0_2 = arith.constant 0 : index
    %0 = vector.load %arg2[%c0, %c0_0, %c0_1, %c0_2] : memref<1x16x24x8xbf16, #tpu.memory_space<vmem>>, vector<1x16x16x8xbf16>
    %1 = vector.shape_cast %0 : vector<1x16x16x8xbf16> to vector<16x16x8xbf16>
    %2 = arith.extf %1 : vector<16x16x8xbf16> to vector<16x16x8xf32>
    %c0_3 = arith.constant 0 : index
    %c0_4 = arith.constant 0 : index
    %3 = vector.load %arg3[%c0_3, %c0_4] : memref<1x8xf32, #tpu.memory_space<vmem>>, vector<1x8xf32>
    %4 = vector.shape_cast %3 : vector<1x8xf32> to vector<8xf32>
    %5 = vector.shape_cast %4 : vector<8xf32> to vector<1x1x8xf32>
    %6 = vector.broadcast %5 : vector<1x1x8xf32> to vector<16x16x8xf32>
    %7 = arith.mulf %2, %6 : vector<16x16x8xf32>
    %c0_5 = arith.constant 0 : index
    %c0_6 = arith.constant 0 : index
    %8 = vector.load %arg4[%c0_5, %c0_6] : memref<1x8xf32, #tpu.memory_space<vmem>>, vector<1x8xf32>
    %9 = vector.shape_cast %8 : vector<1x8xf32> to vector<8xf32>
    %10 = vector.shape_cast %9 : vector<8xf32> to vector<1x1x8xf32>
    %11 = vector.broadcast %10 : vector<1x1x8xf32> to vector<16x16x8xf32>
    %12 = arith.addf %7, %11 : vector<16x16x8xf32>
    %cst = arith.constant 0.000000e+00 : f32
    %13 = vector.broadcast %cst : f32 to vector<16x16x8xf32>
    %14 = arith.maximumf %12, %13 : vector<16x16x8xf32>
    %c0_7 = arith.constant 0 : index
    %c0_8 = arith.constant 0 : index
    %c0_9 = arith.constant 0 : index
    %c0_10 = arith.constant 0 : index
    %15 = vector.load %arg5[%c0_7, %c0_8, %c0_9, %c0_10] : memref<1x16x16x8xf32, #tpu.memory_space<vmem>>, vector<1x16x16x8xf32>
    %16 = vector.shape_cast %15 : vector<1x16x16x8xf32> to vector<16x16x8xf32>
    %17 = vector.shape_cast %14 : vector<16x16x8xf32> to vector<1x16x16x8xf32>
    tpu.vector_store %arg5[%c0_7, %c0_8, %c0_9, %c0_10], %17 {strides = array<i32>} : memref<1x16x16x8xf32, #tpu.memory_space<vmem>>, vector<1x16x16x8xf32>,
    return
  }
  func.func @transform_0(%arg0: i32, %arg1: i32) -> (i32, i32, i32, i32) {
    %c0_i32 = arith.constant 0 : i32
    %c0_i32_0 = arith.constant 0 : i32
    %c0_i32_1 = arith.constant 0 : i32
    return %arg0, %arg1, %c0_i32, %c0_i32_0 : i32, i32, i32, i32
  }
  func.func @transform_1(%arg0: i32, %arg1: i32) -> (i32, i32) {
    %c0_i32 = arith.constant 0 : i32
    %c0_i32_0 = arith.constant 0 : i32
    %c0_i32_1 = arith.constant 0 : i32
    return %c0_i32, %c0_i32_0 : i32, i32
  }
  func.func @transform_2(%arg0: i32, %arg1: i32) -> (i32, i32) {
    %c0_i32 = arith.constant 0 : i32
    %c0_i32_0 = arith.constant 0 : i32
    %c0_i32_1 = arith.constant 0 : i32
    return %c0_i32, %c0_i32_0 : i32, i32
  }
  func.func @transform_3(%arg0: i32, %arg1: i32) -> (i32, i32, i32, i32) {
    %c0_i32 = arith.constant 0 : i32
    %c0_i32_0 = arith.constant 0 : i32
    %c0_i32_1 = arith.constant 0 : i32
    return %arg0, %arg1, %c0_i32, %c0_i32_0 : i32, i32, i32, i32
  }
}

</mosaic_0001>

<llo_original>
// kernel: _conv_relu_bn_impl.3
$region0: #{_conv_relu_bn_impl.3}
  #allocation0 [shape = 'u32[]', space=smem, size = 0x4, offset = 0x4, fixed_abs, tag = 'smem constant byte address 0x4 - core index']
  #allocation1 [shape = 'u32[72,128]{1,0:T(1,128)}', space=vmem, size = 0x9000, scoped, tag = 'internal scratch']
  %s0 = inlined_call_operand.vmem [shape: bf16[2,16,24,8], index: 0, kind: input, shape index: {}]
  %s1 = inlined_call_operand.vmem [shape: f32[1,8], index: 1, kind: input, shape index: {}]
  %s2 = inlined_call_operand.vmem [shape: f32[1,8], index: 2, kind: input, shape index: {}]
  %s3 = inlined_call_operand.vmem [shape: f32[2,16,16,8], index: 3, kind: output, shape index: {}]
  %s4 = sld [smem:[#allocation0]]
  $region45: #{_conv_relu_bn_impl.3} parent=0
    _
  %s6 = ssub.s32 1, %s4
  %s7 = scalar_select 0, %s6, %s4
  loop: start=0, step=1, limit=4
  $region2: #{_conv_relu_bn_impl.3} parent=0 // loop_pre_header
    _
  $region3: #{_conv_relu_bn_impl.3} parent=0 // loop_header
    %s9 = sphi 0, %s13
    %p10 = scmp.ge.s32.totalorder %s9, 4
    %s16 = sphi 0, %s28
    %s17 = sphi 0, %s24
    %s18 = sphi 0, %s16
    %s19 = sphi 0, %s17
    %s20 = sphi 0, %s18
    %s21 = sphi 0, %s19
    %s33 = sphi 0, %s35
    %s36 = sphi 0, %s33
    %s37 = sphi 0, %s36
    %s53 = sphi 0, %s37
    %s57 = sphi 0, %s57
    %s59 = sphi 0, %s57
    %s60 = sphi 0, %s59
    %s74 = sphi 0, %s60
    %s78 = sphi 0, %s78
    %s80 = sphi 0, %s78
    %s81 = sphi 0, %s80
    %s95 = sphi 0, %s81
    %s103 = sphi 0, %s105
    %s106 = sphi 0, %s103
    %s107 = sphi 0, %s106
    %s123 = sphi 0, %s107
  $region4: #{_conv_relu_bn_impl.3} parent=0 // loop_header_branch
    %12 = sbr.rel (%p10) target = $region8
  $region5: #{_conv_relu_bn_impl.3} parent=0 // loop_body
    %s14 = ssub.s32 %s9, 1
    %s15 = ssub.s32 %s9, 2
    %s22 = sadd.s32 1, %s17
    %p23 = scmp.ge.s32.totalorder %s22, 1
    %s24 = scalar_select %p23, 0, %s22
    %s25 = sadd.s32 1, %s16
    %s26 = scalar_select %p23, %s25, %s16
    %p27 = scmp.ge.s32.totalorder %s26, 2
    %s28 = scalar_select %p27, 0, %s26
    %s29 = ssub.s32 %s16, %s28
    %s30 = ssub.s32 %s17, %s24
    %s31 = sor.u32 %s29, %s30
    %p32 = scmp.eq.s32.totalorder %s31, 0
    %s34 = sadd.s32 %s33, 1
    %s35 = scalar_select %p32, %s33, %s34
    %p38 = pneg %p32
    %p39 = scmp.eq.s32.totalorder %s9, 1
    %p40 = por %p38, %p39
    %p41 = scmp.ne.s32.totalorder %s33, %s36
    %p42 = scmp.eq.s32.totalorder %s9, 0
    %p43 = por %p41, %p42
    %p44 = scmp.ne.s32.totalorder %s33, %s36
    %p45 = scmp.eq.s32.totalorder %s14, 1
    %p46 = por %p44, %p45
    %p47 = scmp.ne.s32.totalorder %s36, %s37
    %p48 = scmp.eq.s32.totalorder %s14, 0
    %p49 = por %p47, %p48
    %p50 = scmp.ne.s32.totalorder %s36, %s37
    %p51 = scmp.eq.s32.totalorder %s15, 1
    %p52 = por %p50, %p51
    %p54 = scmp.ne.s32.totalorder %s37, %s53
    %p55 = scmp.eq.s32.totalorder %s15, 0
    %p56 = por %p54, %p55
    %s58 = sadd.s32 %s57, 1
    %p61 = scmp.eq.s32.totalorder %s9, 1
    %p62 = scmp.ne.s32.totalorder %s57, %s59
    %p63 = scmp.eq.s32.totalorder %s9, 0
    %p64 = por %p62, %p63
    %p65 = scmp.ne.s32.totalorder %s57, %s59
    %p66 = scmp.eq.s32.totalorder %s14, 1
    %p67 = por %p65, %p66
    %p68 = scmp.ne.s32.totalorder %s59, %s60
    %p69 = scmp.eq.s32.totalorder %s14, 0
    %p70 = por %p68, %p69
    %p71 = scmp.ne.s32.totalorder %s59, %s60
    %p72 = scmp.eq.s32.totalorder %s15, 1
    %p73 = por %p71, %p72
    %p75 = scmp.ne.s32.totalorder %s60, %s74
    %p76 = scmp.eq.s32.totalorder %s15, 0
    %p77 = por %p75, %p76
    %s79 = sadd.s32 %s78, 1
    %p82 = scmp.eq.s32.totalorder %s9, 1
    %p83 = scmp.ne.s32.totalorder %s78, %s80
    %p84 = scmp.eq.s32.totalorder %s9, 0
    %p85 = por %p83, %p84
    %p86 = scmp.ne.s32.totalorder %s78, %s80
    %p87 = scmp.eq.s32.totalorder %s14, 1
    %p88 = por %p86, %p87
    %p89 = scmp.ne.s32.totalorder %s80, %s81
    %p90 = scmp.eq.s32.totalorder %s14, 0
    %p91 = por %p89, %p90
    %p92 = scmp.ne.s32.totalorder %s80, %s81
    %p93 = scmp.eq.s32.totalorder %s15, 1
    %p94 = por %p92, %p93
    %p96 = scmp.ne.s32.totalorder %s81, %s95
    %p97 = scmp.eq.s32.totalorder %s15, 0
    %p98 = por %p96, %p97
    %s99 = ssub.s32 %s16, %s28
    %s100 = ssub.s32 %s17, %s24
    %s101 = sor.u32 %s99, %s100
    %p102 = scmp.eq.s32.totalorder %s101, 0
    %s104 = sadd.s32 %s103, 1
    %s105 = scalar_select %p102, %s103, %s104
    %p108 = pneg %p102
    %p109 = scmp.eq.s32.totalorder %s9, 1
    %p110 = por %p108, %p109
    %p111 = scmp.ne.s32.totalorder %s103, %s106
    %p112 = scmp.eq.s32.totalorder %s9, 0
    %p113 = por %p111, %p112
    %p114 = scmp.ne.s32.totalorder %s103, %s106
    %p115 = scmp.eq.s32.totalorder %s14, 1
    %p116 = por %p114, %p115
    %p117 = scmp.ne.s32.totalorder %s106, %s107
    %p118 = scmp.eq.s32.totalorder %s14, 0
    %p119 = por %p117, %p118
    %p120 = scmp.ne.s32.totalorder %s106, %s107
    %p121 = scmp.eq.s32.totalorder %s15, 1
    %p122 = por %p120, %p121
    %p124 = scmp.ne.s32.totalorder %s107, %s123
    %p125 = scmp.eq.s32.totalorder %s15, 0
    %p126 = por %p124, %p125
    %p127 = scmp.le.s32.totalorder 1, %s9
    %p128 = scmp.lt.s32.totalorder %s9, 3
    %p129 = pnand %p127, %p128
    %p130 = pneg %p129
    // Predicated region
    $region9: #{_conv_relu_bn_impl.3} parent=5 // pred_check
      _
    $region10: #{_conv_relu_bn_impl.3} parent=5 // pred_check_branch
      %132 = sbr.rel (%p129) target = $region12
    $region11: #{_conv_relu_bn_impl.3} parent=5 // pred_region
      %s133 = ssub.s32 %s9, 1
      // Predicated region
      $region13: #{_conv_relu_bn_impl.3} parent=11 // pred_check
        %p134 = pneg %p70
      $region14: #{_conv_relu_bn_impl.3} parent=11 // pred_check_branch
        %136 = sbr.rel (%p134) target = $region16
      $region15: #{_conv_relu_bn_impl.3} parent=11 // pred_region
        _
      $region16: #{_conv_relu_bn_impl.3} parent=11 // pred_fallthru
        _
      // Predicated region
      $region17: #{_conv_relu_bn_impl.3} parent=11 // pred_check
        %p137 = pneg %p91
      $region18: #{_conv_relu_bn_impl.3} parent=11 // pred_check_branch
        %139 = sbr.rel (%p137) target = $region20
      $region19: #{_conv_relu_bn_impl.3} parent=11 // pred_region
        _
      $region20: #{_conv_relu_bn_impl.3} parent=11 // pred_fallthru
        _
    $region12: #{_conv_relu_bn_impl.3} parent=5 // pred_fallthru
      _
    %p140 = scmp.lt.s32.totalorder %s9, 2
    // Predicated region
    $region21: #{_conv_relu_bn_impl.3} parent=5 // pred_check
      %p141 = pneg %p140
    $region22: #{_conv_relu_bn_impl.3} parent=5 // pred_check_branch
      %143 = sbr.rel (%p141) target = $region24
    $region23: #{_conv_relu_bn_impl.3} parent=5 // pred_region
      // Predicated region
      $region25: #{_conv_relu_bn_impl.3} parent=23 // pred_check
        %p144 = pneg %p43
      $region26: #{_conv_relu_bn_impl.3} parent=23 // pred_check_branch
        %146 = sbr.rel (%p144) target = $region28
      $region27: #{_conv_relu_bn_impl.3} parent=23 // pred_region
        %s147 = smul.u32 16, %s17
        %p148 = scmp.lt.s32.totalorder %s16, 1
        %s149 = scalar_select %p148, %s16, 1
        %p150 = scmp.lt.s32.totalorder %s147, 15
        %s151 = scalar_select %p150, %s147, 15
        %s152 = smul.addr %s151, 3
        %s153 = smul.addr %s149, 48
        %s154 = sadd.s32 %s152, %s153
        %s155 = smul.addr %s154, 4
        %s156 = scalar_lea.vmem %s0, %s155
        %s157 = smul.u32 16, %s17
      $region28: #{_conv_relu_bn_impl.3} parent=23 // pred_fallthru
        _
    $region24: #{_conv_relu_bn_impl.3} parent=5 // pred_fallthru
      _
    %p158 = scmp.le.s32.totalorder 1, %s9
    %p159 = scmp.lt.s32.totalorder %s9, 3
    %p160 = pnand %p158, %p159
    %p161 = pneg %p160
    // Predicated region
    $region29: #{_conv_relu_bn_impl.3} parent=5 // pred_check
      _
    $region30: #{_conv_relu_bn_impl.3} parent=5 // pred_check_branch
      %163 = sbr.rel (%p160) target = $region32
    $region31: #{_conv_relu_bn_impl.3} parent=5 // pred_region
      %s164 = ssub.s32 %s9, 1
      %s165 = smul.u32 16, %s19
      %p166 = scmp.lt.s32.totalorder %s18, 1
      %s167 = scalar_select %p166, %s18, 1
      %p168 = scmp.lt.s32.totalorder %s165, 15
      %s169 = scalar_select %p168, %s165, 15
      %s170 = smul.addr %s169, 3
      %s171 = smul.addr %s167, 48
      %s172 = sadd.s32 %s170, %s171
      %s173 = smul.addr %s172, 4
      %s174 = scalar_lea.vmem %s0, %s173
      %p175 = pneg %p49
      %p176 = pneg %p46
      %p177 = pneg %p70
      %p178 = pneg %p67
      %p179 = pneg %p91
      %p180 = pneg %p88
      %p181 = pneg %p119
      %p182 = pneg %p116
      %s183 = smul.u32 16, %s19
      %p184 = scmp.lt.s32.totalorder %s18, 1
      %s185 = scalar_select %p184, %s18, 1
      %p186 = scmp.lt.s32.totalorder %s183, 15
      %s187 = scalar_select %p186, %s183, 15
      %s188 = smul.addr %s187, 2
      %s189 = smul.addr %s185, 32
      %s190 = sadd.s32 %s188, %s189
      %s191 = smul.addr %s190, 8
      %s192 = scalar_lea.vmem %s3, %s191
      %s193 = smul.u32 16, %s19
      %p194 = scmp.lt.s32.totalorder %s18, 1
      %s195 = scalar_select %p194, %s18, 1
      %p196 = scmp.lt.s32.totalorder %s193, 15
      %s197 = scalar_select %p196, %s193, 15
      %s198 = smul.addr %s197, 3
      %s199 = smul.addr %s195, 48
      %s200 = sadd.s32 %s198, %s199
      %s201 = smul.addr %s200, 4
      %s202 = scalar_lea.vmem %s0, %s201
      %s203 = smul.u32 16, %s19
      %s204 = smul.u32 16, %s19
      %p205 = scmp.lt.s32.totalorder %s18, 1
      %s206 = scalar_select %p205, %s18, 1
      %p207 = scmp.lt.s32.totalorder %s204, 15
      %s208 = scalar_select %p207, %s204, 15
      %s209 = smul.addr %s208, 2
      %s210 = smul.addr %s206, 32
      %s211 = sadd.s32 %s209, %s210
      %s212 = smul.addr %s211, 8
      %s213 = scalar_lea.vmem %s3, %s212
      %s214 = smul.u32 16, %s19
      %v215 = vld [vmem:[%s202] sm:$0xf]
      %v216 = vld [vmem:[%s202 + $0x4] sm:$0xf]
      %v217 = vld [vmem:[%s202 + $0xc] sm:$0xf]
      %v218 = vld [vmem:[%s202 + $0x10] sm:$0xf]
      %v219 = vld [vmem:[%s202 + $0x18] sm:$0xf]
      %v220 = vld [vmem:[%s202 + $0x1c] sm:$0xf]
      %v221 = vld [vmem:[%s202 + $0x24] sm:$0xf]
      %v222 = vld [vmem:[%s202 + $0x28] sm:$0xf]
      %v223 = vld [vmem:[%s202 + $0x30] sm:$0xf]
      %v224 = vld [vmem:[%s202 + $0x34] sm:$0xf]
      %v225 = vld [vmem:[%s202 + $0x3c] sm:$0xf]
      %v226 = vld [vmem:[%s202 + $0x40] sm:$0xf]
      %v227 = vld [vmem:[%s202 + $0x48] sm:$0xf]
      %v228 = vld [vmem:[%s202 + $0x4c] sm:$0xf]
      %v229 = vld [vmem:[%s202 + $0x54] sm:$0xf]
      %v230 = vld [vmem:[%s202 + $0x58] sm:$0xf]
      %v231 = vld [vmem:[%s202 + $0x60] sm:$0xf]
      %v232 = vld [vmem:[%s202 + $0x64] sm:$0xf]
      %v233 = vld [vmem:[%s202 + $0x6c] sm:$0xf]
      %v234 = vld [vmem:[%s202 + $0x70] sm:$0xf]
      %v235 = vld [vmem:[%s202 + $0x78] sm:$0xf]
      %v236 = vld [vmem:[%s202 + $0x7c] sm:$0xf]
      %v237 = vld [vmem:[%s202 + $0x84] sm:$0xf]
      %v238 = vld [vmem:[%s202 + $0x88] sm:$0xf]
      %v239 = vld [vmem:[%s202 + $0x90] sm:$0xf]
      %v240 = vld [vmem:[%s202 + $0x94] sm:$0xf]
      %v241 = vld [vmem:[%s202 + $0x9c] sm:$0xf]
      %v242 = vld [vmem:[%s202 + $0xa0] sm:$0xf]
      %v243 = vld [vmem:[%s202 + $0xa8] sm:$0xf]
      %v244 = vld [vmem:[%s202 + $0xac] sm:$0xf]
      %v245 = vld [vmem:[%s202 + $0xb4] sm:$0xf]
      %v246 = vld [vmem:[%s202 + $0xb8] sm:$0xf]
      %v247 = vunpack.c.l.bf16 %v215
      %v248 = vunpack.c.l.bf16 %v216
      %v249 = vunpack.c.l.bf16 %v217
      %v250 = vunpack.c.l.bf16 %v218
      %v251 = vunpack.c.l.bf16 %v219
      %v252 = vunpack.c.l.bf16 %v220
      %v253 = vunpack.c.l.bf16 %v221
      %v254 = vunpack.c.l.bf16 %v222
      %v255 = vunpack.c.l.bf16 %v223
      %v256 = vunpack.c.l.bf16 %v224
      %v257 = vunpack.c.l.bf16 %v225
      %v258 = vunpack.c.l.bf16 %v226
      %v259 = vunpack.c.l.bf16 %v227
      %v260 = vunpack.c.l.bf16 %v228
      %v261 = vunpack.c.l.bf16 %v229
      %v262 = vunpack.c.l.bf16 %v230
      %v263 = vunpack.c.l.bf16 %v231
      %v264 = vunpack.c.l.bf16 %v232
      %v265 = vunpack.c.l.bf16 %v233
      %v266 = vunpack.c.l.bf16 %v234
      %v267 = vunpack.c.l.bf16 %v235
      %v268 = vunpack.c.l.bf16 %v236
      %v269 = vunpack.c.l.bf16 %v237
      %v270 = vunpack.c.l.bf16 %v238
      %v271 = vunpack.c.l.bf16 %v239
      %v272 = vunpack.c.l.bf16 %v240
      %v273 = vunpack.c.l.bf16 %v241
      %v274 = vunpack.c.l.bf16 %v242
      %v275 = vunpack.c.l.bf16 %v243
      %v276 = vunpack.c.l.bf16 %v244
      %v277 = vunpack.c.l.bf16 %v245
      %v278 = vunpack.c.l.bf16 %v246
      %v279 = vld [vmem:[%s1] sm:$0x1]
      %v281 = vperm.slane %v279, 0
      %v283 = vmul.f32 %v247, %v281
      %v284 = vmul.f32 %v248, %v281
      %v285 = vmul.f32 %v249, %v281
      %v286 = vmul.f32 %v250, %v281
      %v287 = vmul.f32 %v251, %v281
      %v288 = vmul.f32 %v252, %v281
      %v289 = vmul.f32 %v253, %v281
      %v290 = vmul.f32 %v254, %v281
      %v291 = vmul.f32 %v255, %v281
      %v292 = vmul.f32 %v256, %v281
      %v293 = vmul.f32 %v257, %v281
      %v294 = vmul.f32 %v258, %v281
      %v295 = vmul.f32 %v259, %v281
      %v296 = vmul.f32 %v260, %v281
      %v297 = vmul.f32 %v261, %v281
      %v298 = vmul.f32 %v262, %v281
      %v299 = vmul.f32 %v263, %v281
      %v300 = vmul.f32 %v264, %v281
      %v301 = vmul.f32 %v265, %v281
      %v302 = vmul.f32 %v266, %v281
      %v303 = vmul.f32 %v267, %v281
      %v304 = vmul.f32 %v268, %v281
      %v305 = vmul.f32 %v269, %v281
      %v306 = vmul.f32 %v270, %v281
      %v307 = vmul.f32 %v271, %v281
      %v308 = vmul.f32 %v272, %v281
      %v309 = vmul.f32 %v273, %v281
      %v310 = vmul.f32 %v274, %v281
      %v311 = vmul.f32 %v275, %v281
      %v312 = vmul.f32 %v276, %v281
      %v313 = vmul.f32 %v277, %v281
      %v314 = vmul.f32 %v278, %v281
      %v315 = vld [vmem:[%s2] sm:$0x1]
      %v317 = vperm.slane %v315, 0
      %v319 = vadd.f32 %v283, %v317
      %v320 = vadd.f32 %v284, %v317
      %v321 = vadd.f32 %v285, %v317
      %v322 = vadd.f32 %v286, %v317
      %v323 = vadd.f32 %v287, %v317
      %v324 = vadd.f32 %v288, %v317
      %v325 = vadd.f32 %v289, %v317
      %v326 = vadd.f32 %v290, %v317
      %v327 = vadd.f32 %v291, %v317
      %v328 = vadd.f32 %v292, %v317
      %v329 = vadd.f32 %v293, %v317
      %v330 = vadd.f32 %v294, %v317
      %v331 = vadd.f32 %v295, %v317
      %v332 = vadd.f32 %v296, %v317
      %v333 = vadd.f32 %v297, %v317
      %v334 = vadd.f32 %v298, %v317
      %v335 = vadd.f32 %v299, %v317
      %v336 = vadd.f32 %v300, %v317
      %v337 = vadd.f32 %v301, %v317
      %v338 = vadd.f32 %v302, %v317
      %v339 = vadd.f32 %v303, %v317
      %v340 = vadd.f32 %v304, %v317
      %v341 = vadd.f32 %v305, %v317
      %v342 = vadd.f32 %v306, %v317
      %v343 = vadd.f32 %v307, %v317
      %v344 = vadd.f32 %v308, %v317
      %v345 = vadd.f32 %v309, %v317
      %v346 = vadd.f32 %v310, %v317
      %v347 = vadd.f32 %v311, %v317
      %v348 = vadd.f32 %v312, %v317
      %v349 = vadd.f32 %v313, %v317
      %v350 = vadd.f32 %v314, %v317
      %v351 = vmax.f32 %v319, 0.0
      %v352 = vmax.f32 %v320, 0.0
      %v353 = vmax.f32 %v321, 0.0
      %v354 = vmax.f32 %v322, 0.0
      %v355 = vmax.f32 %v323, 0.0
      %v356 = vmax.f32 %v324, 0.0
      %v357 = vmax.f32 %v325, 0.0
      %v358 = vmax.f32 %v326, 0.0
      %v359 = vmax.f32 %v327, 0.0
      %v360 = vmax.f32 %v328, 0.0
      %v361 = vmax.f32 %v329, 0.0
      %v362 = vmax.f32 %v330, 0.0
      %v363 = vmax.f32 %v331, 0.0
      %v364 = vmax.f32 %v332, 0.0
      %v365 = vmax.f32 %v333, 0.0
      %v366 = vmax.f32 %v334, 0.0
      %v367 = vmax.f32 %v335, 0.0
      %v368 = vmax.f32 %v336, 0.0
      %v369 = vmax.f32 %v337, 0.0
      %v370 = vmax.f32 %v338, 0.0
      %v371 = vmax.f32 %v339, 0.0
      %v372 = vmax.f32 %v340, 0.0
      %v373 = vmax.f32 %v341, 0.0
      %v374 = vmax.f32 %v342, 0.0
      %v375 = vmax.f32 %v343, 0.0
      %v376 = vmax.f32 %v344, 0.0
      %v377 = vmax.f32 %v345, 0.0
      %v378 = vmax.f32 %v346, 0.0
      %v379 = vmax.f32 %v347, 0.0
      %v380 = vmax.f32 %v348, 0.0
      %v381 = vmax.f32 %v349, 0.0
      %v382 = vmax.f32 %v350, 0.0
      %vm383 = vcmask 64512
      %384 = vst.msk [vmem:[%s213] sm:$0xff] %vm383, %v351
      %385 = vst.msk [vmem:[%s213 + $0x8] sm:$0xff] %vm383, %v352
      %386 = vst.msk [vmem:[%s213 + $0x10] sm:$0xff] %vm383, %v353
      %387 = vst.msk [vmem:[%s213 + $0x18] sm:$0xff] %vm383, %v354
      %388 = vst.msk [vmem:[%s213 + $0x20] sm:$0xff] %vm383, %v355
      %389 = vst.msk [vmem:[%s213 + $0x28] sm:$0xff] %vm383, %v356
      %390 = vst.msk [vmem:[%s213 + $0x30] sm:$0xff] %vm383, %v357
      %391 = vst.msk [vmem:[%s213 + $0x38] sm:$0xff] %vm383, %v358
      %392 = vst.msk [vmem:[%s213 + $0x40] sm:$0xff] %vm383, %v359
      %393 = vst.msk [vmem:[%s213 + $0x48] sm:$0xff] %vm383, %v360
      %394 = vst.msk [vmem:[%s213 + $0x50] sm:$0xff] %vm383, %v361
      %395 = vst.msk [vmem:[%s213 + $0x58] sm:$0xff] %vm383, %v362
      %396 = vst.msk [vmem:[%s213 + $0x60] sm:$0xff] %vm383, %v363
      %397 = vst.msk [vmem:[%s213 + $0x68] sm:$0xff] %vm383, %v364
      %398 = vst.msk [vmem:[%s213 + $0x70] sm:$0xff] %vm383, %v365
      %399 = vst.msk [vmem:[%s213 + $0x78] sm:$0xff] %vm383, %v366
      %400 = vst.msk [vmem:[%s213 + $0x80] sm:$0xff] %vm383, %v367
      %401 = vst.msk [vmem:[%s213 + $0x88] sm:$0xff] %vm383, %v368
      %402 = vst.msk [vmem:[%s213 + $0x90] sm:$0xff] %vm383, %v369
      %403 = vst.msk [vmem:[%s213 + $0x98] sm:$0xff] %vm383, %v370
      %404 = vst.msk [vmem:[%s213 + $0xa0] sm:$0xff] %vm383, %v371
      %405 = vst.msk [vmem:[%s213 + $0xa8] sm:$0xff] %vm383, %v372
      %406 = vst.msk [vmem:[%s213 + $0xb0] sm:$0xff] %vm383, %v373
      %407 = vst.msk [vmem:[%s213 + $0xb8] sm:$0xff] %vm383, %v374
      %408 = vst.msk [vmem:[%s213 + $0xc0] sm:$0xff] %vm383, %v375
      %409 = vst.msk [vmem:[%s213 + $0xc8] sm:$0xff] %vm383, %v376
      %410 = vst.msk [vmem:[%s213 + $0xd0] sm:$0xff] %vm383, %v377
      %411 = vst.msk [vmem:[%s213 + $0xd8] sm:$0xff] %vm383, %v378
      %412 = vst.msk [vmem:[%s213 + $0xe0] sm:$0xff] %vm383, %v379
      %413 = vst.msk [vmem:[%s213 + $0xe8] sm:$0xff] %vm383, %v380
      %414 = vst.msk [vmem:[%s213 + $0xf0] sm:$0xff] %vm383, %v381
      %415 = vst.msk [vmem:[%s213 + $0xf8] sm:$0xff] %vm383, %v382
      %s416 = smul.u32 16, %s19
      %p417 = scmp.lt.s32.totalorder %s18, 1
      %s418 = scalar_select %p417, %s18, 1
      %p419 = scmp.lt.s32.totalorder %s416, 15
      %s420 = scalar_select %p419, %s416, 15
      %s421 = smul.addr %s420, 2
      %s422 = smul.addr %s418, 32
      %s423 = sadd.s32 %s421, %s422
      %s424 = smul.addr %s423, 8
      %s425 = scalar_lea.vmem %s3, %s424
      // Predicated region
      $region33: #{_conv_relu_bn_impl.3} parent=31 // pred_check
        %p426 = pneg %p116
      $region34: #{_conv_relu_bn_impl.3} parent=31 // pred_check_branch
        %428 = sbr.rel (%p426) target = $region36
      $region35: #{_conv_relu_bn_impl.3} parent=31 // pred_region
        %s429 = smul.u32 16, %s19
      $region36: #{_conv_relu_bn_impl.3} parent=31 // pred_fallthru
        _
    $region32: #{_conv_relu_bn_impl.3} parent=5 // pred_fallthru
      _
    %p430 = scmp.le.s32.totalorder 2, %s9
    // Predicated region
    $region37: #{_conv_relu_bn_impl.3} parent=5 // pred_check
      %p431 = pneg %p430
    $region38: #{_conv_relu_bn_impl.3} parent=5 // pred_check_branch
      %433 = sbr.rel (%p431) target = $region40
    $region39: #{_conv_relu_bn_impl.3} parent=5 // pred_region
      %s434 = ssub.s32 %s9, 2
      // Predicated region
      $region41: #{_conv_relu_bn_impl.3} parent=39 // pred_check
        %p435 = pneg %p122
      $region42: #{_conv_relu_bn_impl.3} parent=39 // pred_check_branch
        %437 = sbr.rel (%p435) target = $region44
      $region43: #{_conv_relu_bn_impl.3} parent=39 // pred_region
        %s438 = smul.u32 16, %s21
        %p439 = scmp.lt.s32.totalorder %s20, 1
        %s440 = scalar_select %p439, %s20, 1
        %p441 = scmp.lt.s32.totalorder %s438, 15
        %s442 = scalar_select %p441, %s438, 15
        %s443 = smul.addr %s442, 2
        %s444 = smul.addr %s440, 32
        %s445 = sadd.s32 %s443, %s444
        %s446 = smul.addr %s445, 8
        %s447 = scalar_lea.vmem %s3, %s446
      $region44: #{_conv_relu_bn_impl.3} parent=39 // pred_fallthru
        _
    $region40: #{_conv_relu_bn_impl.3} parent=5 // pred_fallthru
      _
  $region6: #{_conv_relu_bn_impl.3} parent=0 // loop_footer
    %s13 = sadd.s32 1, %s9
  $region7: #{_conv_relu_bn_impl.3} parent=0 // loop_footer_branch
    %8 = sbr.rel target = $region3
  $region8: #{_conv_relu_bn_impl.3} parent=0 // loop_exit
    _

// kernel: _conv_relu_bn_impl.2
$region0: #{_conv_relu_bn_impl.2}
  #allocation0 [shape = 'u32[]', space=smem, size = 0x4, offset = 0x4, fixed_abs, tag = 'smem constant byte address 0x4 - core index']
  #allocation1 [shape = 'u32[72,128]{1,0:T(1,128)}', space=vmem, size = 0x9000, scoped, tag = 'internal scratch']
  #allocation2 [shape = 'bf16[384,36]{1,0:T(8,128)(2,1)}', space=vmem, size = 0x18000, scoped, tag = 'scratch operand']
  %s0 = inlined_call_operand.vmem [shape: bf16[2,456,4], index: 0, kind: input, shape index: {}]
  %s1 = inlined_call_operand.vmem [shape: bf16[36,128], index: 1, kind: input, shape index: {}]
  %s2 = inlined_call_operand.vmem [shape: bf16[2,384,8], index: 2, kind: output, shape index: {0}]
  %s3 = inlined_call_operand.vmem [shape: f32[2,1,2,8], index: 3, kind: output, shape index: {1}]
  %4 = xla_tuple %s2, %s3
  %s5 = sld [smem:[#allocation0]]
  $region53: #{_conv_relu_bn_impl.2} parent=0
    _
  %s7 = ssub.s32 1, %s5
  %s8 = scalar_select 0, %s7, %s5
  loop: start=0, step=1, limit=4
  $region2: #{_conv_relu_bn_impl.2} parent=0 // loop_pre_header
    _
  $region3: #{_conv_relu_bn_impl.2} parent=0 // loop_header
    %s10 = sphi 0, %s14
    %p11 = scmp.ge.s32.totalorder %s10, 4
    %s17 = sphi 0, %s36
    %s18 = sphi 0, %s32
    %s19 = sphi 0, %s28
    %s20 = sphi 0, %s17
    %s21 = sphi 0, %s18
    %s22 = sphi 0, %s19
    %s23 = sphi 0, %s20
    %s24 = sphi 0, %s21
    %s25 = sphi 0, %s22
    %s39 = sphi 0, %s41
    %s42 = sphi 0, %s39
    %s43 = sphi 0, %s42
    %s59 = sphi 0, %s43
    %s63 = sphi 0, %s63
    %s65 = sphi 0, %s63
    %s66 = sphi 0, %s65
    %s80 = sphi 0, %s66
    %s90 = sphi 0, %s92
    %s93 = sphi 0, %s90
    %s94 = sphi 0, %s93
    %s110 = sphi 0, %s94
    %s118 = sphi 0, %s120
    %s121 = sphi 0, %s118
    %s122 = sphi 0, %s121
    %s138 = sphi 0, %s122
  $region4: #{_conv_relu_bn_impl.2} parent=0 // loop_header_branch
    %13 = sbr.rel (%p11) target = $region8
  $region5: #{_conv_relu_bn_impl.2} parent=0 // loop_body
    %s15 = ssub.s32 %s10, 1
    %s16 = ssub.s32 %s10, 2
    %s26 = sadd.s32 1, %s19
    %p27 = scmp.ge.s32.totalorder %s26, 1
    %s28 = scalar_select %p27, 0, %s26
    %s29 = sadd.s32 1, %s18
    %s30 = scalar_select %p27, %s29, %s18
    %p31 = scmp.ge.s32.totalorder %s30, 1
    %s32 = scalar_select %p31, 0, %s30
    %s33 = sadd.s32 1, %s17
    %s34 = scalar_select %p31, %s33, %s17
    %p35 = scmp.ge.s32.totalorder %s34, 2
    %s36 = scalar_select %p35, 0, %s34
    %s37 = ssub.s32 %s17, %s36
    %p38 = scmp.eq.s32.totalorder %s37, 0
    %s40 = sadd.s32 %s39, 1
    %s41 = scalar_select %p38, %s39, %s40
    %p44 = pneg %p38
    %p45 = scmp.eq.s32.totalorder %s10, 1
    %p46 = por %p44, %p45
    %p47 = scmp.ne.s32.totalorder %s39, %s42
    %p48 = scmp.eq.s32.totalorder %s10, 0
    %p49 = por %p47, %p48
    %p50 = scmp.ne.s32.totalorder %s39, %s42
    %p51 = scmp.eq.s32.totalorder %s15, 1
    %p52 = por %p50, %p51
    %p53 = scmp.ne.s32.totalorder %s42, %s43
    %p54 = scmp.eq.s32.totalorder %s15, 0
    %p55 = por %p53, %p54
    %p56 = scmp.ne.s32.totalorder %s42, %s43
    %p57 = scmp.eq.s32.totalorder %s16, 1
    %p58 = por %p56, %p57
    %p60 = scmp.ne.s32.totalorder %s43, %s59
    %p61 = scmp.eq.s32.totalorder %s16, 0
    %p62 = por %p60, %p61
    %s64 = sadd.s32 %s63, 1
    %p67 = scmp.eq.s32.totalorder %s10, 1
    %p68 = scmp.ne.s32.totalorder %s63, %s65
    %p69 = scmp.eq.s32.totalorder %s10, 0
    %p70 = por %p68, %p69
    %p71 = scmp.ne.s32.totalorder %s63, %s65
    %p72 = scmp.eq.s32.totalorder %s15, 1
    %p73 = por %p71, %p72
    %p74 = scmp.ne.s32.totalorder %s65, %s66
    %p75 = scmp.eq.s32.totalorder %s15, 0
    %p76 = por %p74, %p75
    %p77 = scmp.ne.s32.totalorder %s65, %s66
    %p78 = scmp.eq.s32.totalorder %s16, 1
    %p79 = por %p77, %p78
    %p81 = scmp.ne.s32.totalorder %s66, %s80
    %p82 = scmp.eq.s32.totalorder %s16, 0
    %p83 = por %p81, %p82
    %s84 = sadd.s32 %s18, %s19
    %s85 = sadd.s32 %s32, %s28
    %s86 = ssub.s32 %s17, %s36
    %s87 = ssub.s32 %s84, %s85
    %s88 = sor.u32 %s86, %s87
    %p89 = scmp.eq.s32.totalorder %s88, 0
    %s91 = sadd.s32 %s90, 1
    %s92 = scalar_select %p89, %s90, %s91
    %p95 = pneg %p89
    %p96 = scmp.eq.s32.totalorder %s10, 1
    %p97 = por %p95, %p96
    %p98 = scmp.ne.s32.totalorder %s90, %s93
    %p99 = scmp.eq.s32.totalorder %s10, 0
    %p100 = por %p98, %p99
    %p101 = scmp.ne.s32.totalorder %s90, %s93
    %p102 = scmp.eq.s32.totalorder %s15, 1
    %p103 = por %p101, %p102
    %p104 = scmp.ne.s32.totalorder %s93, %s94
    %p105 = scmp.eq.s32.totalorder %s15, 0
    %p106 = por %p104, %p105
    %p107 = scmp.ne.s32.totalorder %s93, %s94
    %p108 = scmp.eq.s32.totalorder %s16, 1
    %p109 = por %p107, %p108
    %p111 = scmp.ne.s32.totalorder %s94, %s110
    %p112 = scmp.eq.s32.totalorder %s16, 0
    %p113 = por %p111, %p112
    %s114 = ssub.s32 %s17, %s36
    %s115 = ssub.s32 %s18, %s32
    %s116 = sor.u32 %s114, %s115
    %p117 = scmp.eq.s32.totalorder %s116, 0
    %s119 = sadd.s32 %s118, 1
    %s120 = scalar_select %p117, %s118, %s119
    %p123 = pneg %p117
    %p124 = scmp.eq.s32.totalorder %s10, 1
    %p125 = por %p123, %p124
    %p126 = scmp.ne.s32.totalorder %s118, %s121
    %p127 = scmp.eq.s32.totalorder %s10, 0
    %p128 = por %p126, %p127
    %p129 = scmp.ne.s32.totalorder %s118, %s121
    %p130 = scmp.eq.s32.totalorder %s15, 1
    %p131 = por %p129, %p130
    %p132 = scmp.ne.s32.totalorder %s121, %s122
    %p133 = scmp.eq.s32.totalorder %s15, 0
    %p134 = por %p132, %p133
    %p135 = scmp.ne.s32.totalorder %s121, %s122
    %p136 = scmp.eq.s32.totalorder %s16, 1
    %p137 = por %p135, %p136
    %p139 = scmp.ne.s32.totalorder %s122, %s138
    %p140 = scmp.eq.s32.totalorder %s16, 0
    %p141 = por %p139, %p140
    %p142 = scmp.le.s32.totalorder 1, %s10
    %p143 = scmp.lt.s32.totalorder %s10, 3
    %p144 = pnand %p142, %p143
    %p145 = pneg %p144
    // Predicated region
    $region9: #{_conv_relu_bn_impl.2} parent=5 // pred_check
      _
    $region10: #{_conv_relu_bn_impl.2} parent=5 // pred_check_branch
      %147 = sbr.rel (%p144) target = $region12
    $region11: #{_conv_relu_bn_impl.2} parent=5 // pred_region
      %s148 = ssub.s32 %s10, 1
      // Predicated region
      $region13: #{_conv_relu_bn_impl.2} parent=11 // pred_check
        %p149 = pneg %p76
      $region14: #{_conv_relu_bn_impl.2} parent=11 // pred_check_branch
        %151 = sbr.rel (%p149) target = $region16
      $region15: #{_conv_relu_bn_impl.2} parent=11 // pred_region
        _
      $region16: #{_conv_relu_bn_impl.2} parent=11 // pred_fallthru
        _
    $region12: #{_conv_relu_bn_impl.2} parent=5 // pred_fallthru
      _
    %p152 = scmp.lt.s32.totalorder %s10, 2
    // Predicated region
    $region17: #{_conv_relu_bn_impl.2} parent=5 // pred_check
      %p153 = pneg %p152
    $region18: #{_conv_relu_bn_impl.2} parent=5 // pred_check_branch
      %155 = sbr.rel (%p153) target = $region20
    $region19: #{_conv_relu_bn_impl.2} parent=5 // pred_region
      // Predicated region
      $region21: #{_conv_relu_bn_impl.2} parent=19 // pred_check
        %p156 = pneg %p49
      $region22: #{_conv_relu_bn_impl.2} parent=19 // pred_check_branch
        %158 = sbr.rel (%p156) target = $region24
      $region23: #{_conv_relu_bn_impl.2} parent=19 // pred_region
        %p159 = scmp.lt.s32.totalorder %s17, 1
        %s160 = scalar_select %p159, %s17, 1
        %s161 = smul.addr %s160, 57
        %s162 = smul.addr %s161, 4
        %s163 = scalar_lea.vmem %s0, %s162
      $region24: #{_conv_relu_bn_impl.2} parent=19 // pred_fallthru
        _
    $region20: #{_conv_relu_bn_impl.2} parent=5 // pred_fallthru
      _
    %p164 = scmp.le.s32.totalorder 1, %s10
    %p165 = scmp.lt.s32.totalorder %s10, 3
    %p166 = pnand %p164, %p165
    %p167 = pneg %p166
    // Predicated region
    $region25: #{_conv_relu_bn_impl.2} parent=5 // pred_check
      _
    $region26: #{_conv_relu_bn_impl.2} parent=5 // pred_check_branch
      %169 = sbr.rel (%p166) target = $region28
    $region27: #{_conv_relu_bn_impl.2} parent=5 // pred_region
      %s170 = ssub.s32 %s10, 1
      %p171 = scmp.lt.s32.totalorder %s20, 1
      %s172 = scalar_select %p171, %s20, 1
      %s173 = smul.addr %s172, 57
      %s174 = smul.addr %s173, 4
      %s175 = scalar_lea.vmem %s0, %s174
      %p176 = pneg %p55
      %p177 = pneg %p52
      %p178 = pneg %p76
      %p179 = pneg %p73
      %p180 = pneg %p106
      %p181 = pneg %p103
      %s182 = sadd.s32 %s21, %s22
      %s183 = smul.u32 48, %s182
      %p184 = scmp.lt.s32.totalorder %s20, 1
      %s185 = scalar_select %p184, %s20, 1
      %p186 = scmp.lt.s32.totalorder %s183, 47
      %s187 = scalar_select %p186, %s183, 47
      %s188 = smul.addr %s185, 48
      %s189 = sadd.s32 %s187, %s188
      %s190 = smul.addr %s189, 4
      %s191 = scalar_lea.vmem %s2, %s190
      %p192 = pneg %p134
      %p193 = pneg %p131
      %p194 = scmp.lt.s32.totalorder %s20, 1
      %s195 = scalar_select %p194, %s20, 1
      %p196 = scmp.lt.s32.totalorder %s21, 0
      %s197 = scalar_select %p196, %s21, 0
      %s198 = sadd.s32 %s197, %s195
      %s199 = smul.addr %s198, 2
      %s200 = scalar_lea.vmem %s3, %s199
      %p201 = scmp.lt.s32.totalorder %s20, 1
      %s202 = scalar_select %p201, %s20, 1
      %s203 = smul.addr %s202, 57
      %s204 = smul.addr %s203, 4
      %s205 = scalar_lea.vmem %s0, %s204
      %s206 = sadd.s32 %s21, %s22
      %s207 = smul.u32 48, %s206
      %p208 = scmp.lt.s32.totalorder %s20, 1
      %s209 = scalar_select %p208, %s20, 1
      %p210 = scmp.lt.s32.totalorder %s207, 47
      %s211 = scalar_select %p210, %s207, 47
      %s212 = smul.addr %s209, 48
      %s213 = sadd.s32 %s211, %s212
      %s214 = smul.addr %s213, 4
      %s215 = scalar_lea.vmem %s2, %s214
      %s216 = sadd.s32 %s21, %s22
      %s217 = smul.u32 48, %s216
      %p218 = scmp.lt.s32.totalorder %s20, 1
      %s219 = scalar_select %p218, %s20, 1
      %p220 = scmp.lt.s32.totalorder %s21, 0
      %s221 = scalar_select %p220, %s21, 0
      %s222 = sadd.s32 %s221, %s219
      %s223 = smul.addr %s222, 2
      %s224 = scalar_lea.vmem %s3, %s223
      %s226 = sadd.s32 %s21, %s22
      %s227 = smul.u32 %s226, 384
      %s228 = sshra.s32 %s227, 3
      %s229 = sand.u32 %s227, 7
      %s230 = smul.addr %s228, 4
      %s231 = scalar_lea.vmem %s205, %s230
      %v232 = vld [vmem:[%s231] sm:$0xf]
      %v233 = vld [vmem:[%s231 + $0x4] sm:$0xf]
      %v234 = vld [vmem:[%s231 + $0x8] sm:$0xf]
      %v235 = vld [vmem:[%s231 + $0xc] sm:$0xf]
      %v236 = vld [vmem:[%s231 + $0x10] sm:$0xf]
      %v237 = vld [vmem:[%s231 + $0x14] sm:$0xf]
      %v238 = vld [vmem:[%s231 + $0x18] sm:$0xf]
      %v239 = vld [vmem:[%s231 + $0x1c] sm:$0xf]
      %v240 = vld [vmem:[%s231 + $0x20] sm:$0xf]
      %v241 = vld [vmem:[%s231 + $0x24] sm:$0xf]
      %v242 = vld [vmem:[%s231 + $0x28] sm:$0xf]
      %v243 = vld [vmem:[%s231 + $0x2c] sm:$0xf]
      %v244 = vld [vmem:[%s231 + $0x30] sm:$0xf]
      %v245 = vld [vmem:[%s231 + $0x34] sm:$0xf]
      %v246 = vld [vmem:[%s231 + $0x38] sm:$0xf]
      %v247 = vld [vmem:[%s231 + $0x3c] sm:$0xf]
      %v248 = vld [vmem:[%s231 + $0x40] sm:$0xf]
      %v249 = vld [vmem:[%s231 + $0x44] sm:$0xf]
      %v250 = vld [vmem:[%s231 + $0x48] sm:$0xf]
      %v251 = vld [vmem:[%s231 + $0x4c] sm:$0xf]
      %v252 = vld [vmem:[%s231 + $0x50] sm:$0xf]
      %v253 = vld [vmem:[%s231 + $0x54] sm:$0xf]
      %v254 = vld [vmem:[%s231 + $0x58] sm:$0xf]
      %v255 = vld [vmem:[%s231 + $0x5c] sm:$0xf]
      %v256 = vld [vmem:[%s231 + $0x60] sm:$0xf]
      %v257 = vld [vmem:[%s231 + $0x64] sm:$0xf]
      %v258 = vld [vmem:[%s231 + $0x68] sm:$0xf]
      %v259 = vld [vmem:[%s231 + $0x6c] sm:$0xf]
      %v260 = vld [vmem:[%s231 + $0x70] sm:$0xf]
      %v261 = vld [vmem:[%s231 + $0x74] sm:$0xf]
      %v262 = vld [vmem:[%s231 + $0x78] sm:$0xf]
      %v263 = vld [vmem:[%s231 + $0x7c] sm:$0xf]
      %v264 = vld [vmem:[%s231 + $0x80] sm:$0xf]
      %v265 = vld [vmem:[%s231 + $0x84] sm:$0xf]
      %v266 = vld [vmem:[%s231 + $0x88] sm:$0xf]
      %v267 = vld [vmem:[%s231 + $0x8c] sm:$0xf]
      %v268 = vld [vmem:[%s231 + $0x90] sm:$0xf]
      %v269 = vld [vmem:[%s231 + $0x94] sm:$0xf]
      %v270 = vld [vmem:[%s231 + $0x98] sm:$0xf]
      %v271 = vld [vmem:[%s231 + $0x9c] sm:$0xf]
      %v272 = vld [vmem:[%s231 + $0xa0] sm:$0xf]
      %v273 = vld [vmem:[%s231 + $0xa4] sm:$0xf]
      %v274 = vld [vmem:[%s231 + $0xa8] sm:$0xf]
      %v275 = vld [vmem:[%s231 + $0xac] sm:$0xf]
      %v276 = vld [vmem:[%s231 + $0xb0] sm:$0xf]
      %v277 = vld [vmem:[%s231 + $0xb4] sm:$0xf]
      %v278 = vld [vmem:[%s231 + $0xb8] sm:$0xf]
      %v279 = vld [vmem:[%s231 + $0xbc] sm:$0xf]
      %v280 = vld [vmem:[%s231 + $0xc0] sm:$0xf]
      %v281 = vld [vmem:[%s231 + $0xc4] sm:$0xf]
      %v282 = vld [vmem:[%s231 + $0xc8] sm:$0xf]
      %v283 = vld [vmem:[%s231 + $0xcc] sm:$0xf]
      %v284 = vld [vmem:[%s231 + $0xd0] sm:$0xf]
      %v285 = vld [vmem:[%s231 + $0xd4] sm:$0xf]
      %v286 = vld [vmem:[%s231 + $0xd8] sm:$0x1]
      %vm287 = vcmask 27648
      %288 = vst.msk [vmem:[#allocation2] sm:$0xf] %vm287, %v232
      %289 = vst.msk [vmem:[#allocation2 + $0x4] sm:$0xf] %vm287, %v233
      %290 = vst.msk [vmem:[#allocation2 + $0x8] sm:$0xf] %vm287, %v234
      %291 = vst.msk [vmem:[#allocation2 + $0xc] sm:$0xf] %vm287, %v235
      %292 = vst.msk [vmem:[#allocation2 + $0x10] sm:$0xf] %vm287, %v236
      %293 = vst.msk [vmem:[#allocation2 + $0x14] sm:$0xf] %vm287, %v237
      %294 = vst.msk [vmem:[#allocation2 + $0x18] sm:$0xf] %vm287, %v238
      %295 = vst.msk [vmem:[#allocation2 + $0x1c] sm:$0xf] %vm287, %v239
      %296 = vst.msk [vmem:[#allocation2 + $0x20] sm:$0xf] %vm287, %v240
      %297 = vst.msk [vmem:[#allocation2 + $0x24] sm:$0xf] %vm287, %v241
      %298 = vst.msk [vmem:[#allocation2 + $0x28] sm:$0xf] %vm287, %v242
      %299 = vst.msk [vmem:[#allocation2 + $0x2c] sm:$0xf] %vm287, %v243
      %300 = vst.msk [vmem:[#allocation2 + $0x30] sm:$0xf] %vm287, %v244
      %301 = vst.msk [vmem:[#allocation2 + $0x34] sm:$0xf] %vm287, %v245
      %302 = vst.msk [vmem:[#allocation2 + $0x38] sm:$0xf] %vm287, %v246
      %303 = vst.msk [vmem:[#allocation2 + $0x3c] sm:$0xf] %vm287, %v247
      %304 = vst.msk [vmem:[#allocation2 + $0x40] sm:$0xf] %vm287, %v248
      %305 = vst.msk [vmem:[#allocation2 + $0x44] sm:$0xf] %vm287, %v249
      %306 = vst.msk [vmem:[#allocation2 + $0x48] sm:$0xf] %vm287, %v250
      %307 = vst.msk [vmem:[#allocation2 + $0x4c] sm:$0xf] %vm287, %v251
      %308 = vst.msk [vmem:[#allocation2 + $0x50] sm:$0xf] %vm287, %v252
      %309 = vst.msk [vmem:[#allocation2 + $0x54] sm:$0xf] %vm287, %v253
      %310 = vst.msk [vmem:[#allocation2 + $0x58] sm:$0xf] %vm287, %v254
      %311 = vst.msk [vmem:[#allocation2 + $0x5c] sm:$0xf] %vm287, %v255
      %312 = vst.msk [vmem:[#allocation2 + $0x60] sm:$0xf] %vm287, %v256
      %313 = vst.msk [vmem:[#allocation2 + $0x64] sm:$0xf] %vm287, %v257
      %314 = vst.msk [vmem:[#allocation2 + $0x68] sm:$0xf] %vm287, %v258
      %315 = vst.msk [vmem:[#allocation2 + $0x6c] sm:$0xf] %vm287, %v259
      %316 = vst.msk [vmem:[#allocation2 + $0x70] sm:$0xf] %vm287, %v260
      %317 = vst.msk [vmem:[#allocation2 + $0x74] sm:$0xf] %vm287, %v261
      %318 = vst.msk [vmem:[#allocation2 + $0x78] sm:$0xf] %vm287, %v262
      %319 = vst.msk [vmem:[#allocation2 + $0x7c] sm:$0xf] %vm287, %v263
      %320 = vst.msk [vmem:[#allocation2 + $0x80] sm:$0xf] %vm287, %v264
      %321 = vst.msk [vmem:[#allocation2 + $0x84] sm:$0xf] %vm287, %v265
      %322 = vst.msk [vmem:[#allocation2 + $0x88] sm:$0xf] %vm287, %v266
      %323 = vst.msk [vmem:[#allocation2 + $0x8c] sm:$0xf] %vm287, %v267
      %324 = vst.msk [vmem:[#allocation2 + $0x90] sm:$0xf] %vm287, %v268
      %325 = vst.msk [vmem:[#allocation2 + $0x94] sm:$0xf] %vm287, %v269
      %326 = vst.msk [vmem:[#allocation2 + $0x98] sm:$0xf] %vm287, %v270
      %327 = vst.msk [vmem:[#allocation2 + $0x9c] sm:$0xf] %vm287, %v271
      %328 = vst.msk [vmem:[#allocation2 + $0xa0] sm:$0xf] %vm287, %v272
      %329 = vst.msk [vmem:[#allocation2 + $0xa4] sm:$0xf] %vm287, %v273
      %330 = vst.msk [vmem:[#allocation2 + $0xa8] sm:$0xf] %vm287, %v274
      %331 = vst.msk [vmem:[#allocation2 + $0xac] sm:$0xf] %vm287, %v275
      %332 = vst.msk [vmem:[#allocation2 + $0xb0] sm:$0xf] %vm287, %v276
      %333 = vst.msk [vmem:[#allocation2 + $0xb4] sm:$0xf] %vm287, %v277
      %334 = vst.msk [vmem:[#allocation2 + $0xb8] sm:$0xf] %vm287, %v278
      %335 = vst.msk [vmem:[#allocation2 + $0xbc] sm:$0xf] %vm287, %v279
      %vm336 = vsmask.f32 3328
      %vm337 = vsmask.f32 7440
      %vm338 = vmor %vm336, %vm337
      %v340 = vshrl.u32 %v232, 16
      %v342 = vrot.slane %v340, 4
      %v343 = vshll.u32 %v232, 16
      %v345 = vrot.slane %v343, 5
      %v346 = vor.u32 %v342, %v345
      %v347 = vrot.slane %v346, 4
      %v349 = vshll.u32 %v233, 16
      %v351 = vrot.slane %v349, 5
      %v352 = vsel %vm338, %v347, %v351
      %v353 = vshrl.u32 %v233, 16
      %v355 = vrot.slane %v353, 4
      %v356 = vor.u32 %v355, %v351
      %v357 = vrot.slane %v356, 4
      %v359 = vshll.u32 %v234, 16
      %v361 = vrot.slane %v359, 5
      %v362 = vsel %vm338, %v357, %v361
      %v363 = vshrl.u32 %v234, 16
      %v365 = vrot.slane %v363, 4
      %v366 = vor.u32 %v365, %v361
      %v367 = vrot.slane %v366, 4
      %v369 = vshll.u32 %v235, 16
      %v371 = vrot.slane %v369, 5
      %v372 = vsel %vm338, %v367, %v371
      %v373 = vshrl.u32 %v235, 16
      %v375 = vrot.slane %v373, 4
      %v376 = vor.u32 %v375, %v371
      %v377 = vrot.slane %v376, 4
      %v379 = vshll.u32 %v236, 16
      %v381 = vrot.slane %v379, 5
      %v382 = vsel %vm338, %v377, %v381
      %v383 = vshrl.u32 %v236, 16
      %v385 = vrot.slane %v383, 4
      %v386 = vor.u32 %v385, %v381
      %v387 = vrot.slane %v386, 4
      %v389 = vshll.u32 %v237, 16
      %v391 = vrot.slane %v389, 5
      %v392 = vsel %vm338, %v387, %v391
      %v393 = vshrl.u32 %v237, 16
      %v395 = vrot.slane %v393, 4
      %v396 = vor.u32 %v395, %v391
      %v397 = vrot.slane %v396, 4
      %v399 = vshll.u32 %v238, 16
      %v401 = vrot.slane %v399, 5
      %v402 = vsel %vm338, %v397, %v401
      %v403 = vshrl.u32 %v238, 16
      %v405 = vrot.slane %v403, 4
      %v406 = vor.u32 %v405, %v401
      %v407 = vrot.slane %v406, 4
      %v409 = vshll.u32 %v239, 16
      %v411 = vrot.slane %v409, 5
      %v412 = vsel %vm338, %v407, %v411
      %v413 = vshrl.u32 %v239, 16
      %v415 = vrot.slane %v413, 4
      %v416 = vor.u32 %v415, %v411
      %v417 = vrot.slane %v416, 4
      %v419 = vshll.u32 %v240, 16
      %v421 = vrot.slane %v419, 5
      %v422 = vsel %vm338, %v417, %v421
      %v423 = vshrl.u32 %v240, 16
      %v425 = vrot.slane %v423, 4
      %v426 = vor.u32 %v425, %v421
      %v427 = vrot.slane %v426, 4
      %v429 = vshll.u32 %v241, 16
      %v431 = vrot.slane %v429, 5
      %v432 = vsel %vm338, %v427, %v431
      %v433 = vshrl.u32 %v241, 16
      %v435 = vrot.slane %v433, 4
      %v436 = vor.u32 %v435, %v431
      %v437 = vrot.slane %v436, 4
      %v439 = vshll.u32 %v242, 16
      %v441 = vrot.slane %v439, 5
      %v442 = vsel %vm338, %v437, %v441
      %v443 = vshrl.u32 %v242, 16
      %v445 = vrot.slane %v443, 4
      %v446 = vor.u32 %v445, %v441
      %v447 = vrot.slane %v446, 4
      %v449 = vshll.u32 %v243, 16
      %v451 = vrot.slane %v449, 5
      %v452 = vsel %vm338, %v447, %v451
      %v453 = vshrl.u32 %v243, 16
      %v455 = vrot.slane %v453, 4
      %v456 = vor.u32 %v455, %v451
      %v457 = vrot.slane %v456, 4
      %v459 = vshll.u32 %v244, 16
      %v461 = vrot.slane %v459, 5
      %v462 = vsel %vm338, %v457, %v461
      %v463 = vshrl.u32 %v244, 16
      %v465 = vrot.slane %v463, 4
      %v466 = vor.u32 %v465, %v461
      %v467 = vrot.slane %v466, 4
      %v469 = vshll.u32 %v245, 16
      %v471 = vrot.slane %v469, 5
      %v472 = vsel %vm338, %v467, %v471
      %v473 = vshrl.u32 %v245, 16
      %v475 = vrot.slane %v473, 4
      %v476 = vor.u32 %v475, %v471
      %v477 = vrot.slane %v476, 4
      %v479 = vshll.u32 %v246, 16
      %v481 = vrot.slane %v479, 5
      %v482 = vsel %vm338, %v477, %v481
      %v483 = vshrl.u32 %v246, 16
      %v485 = vrot.slane %v483, 4
      %v486 = vor.u32 %v485, %v481
      %v487 = vrot.slane %v486, 4
      %v489 = vshll.u32 %v247, 16
      %v491 = vrot.slane %v489, 5
      %v492 = vsel %vm338, %v487, %v491
      %v493 = vshrl.u32 %v247, 16
      %v495 = vrot.slane %v493, 4
      %v496 = vor.u32 %v495, %v491
      %v497 = vrot.slane %v496, 4
      %v499 = vshll.u32 %v248, 16
      %v501 = vrot.slane %v499, 5
      %v502 = vsel %vm338, %v497, %v501
      %v503 = vshrl.u32 %v248, 16
      %v505 = vrot.slane %v503, 4
      %v506 = vor.u32 %v505, %v501
      %v507 = vrot.slane %v506, 4
      %v509 = vshll.u32 %v249, 16
      %v511 = vrot.slane %v509, 5
      %v512 = vsel %vm338, %v507, %v511
      %v513 = vshrl.u32 %v249, 16
      %v515 = vrot.slane %v513, 4
      %v516 = vor.u32 %v515, %v511
      %v517 = vrot.slane %v516, 4
      %v519 = vshll.u32 %v250, 16
      %v521 = vrot.slane %v519, 5
      %v522 = vsel %vm338, %v517, %v521
      %v523 = vshrl.u32 %v250, 16
      %v525 = vrot.slane %v523, 4
      %v526 = vor.u32 %v525, %v521
      %v527 = vrot.slane %v526, 4
      %v529 = vshll.u32 %v251, 16
      %v531 = vrot.slane %v529, 5
      %v532 = vsel %vm338, %v527, %v531
      %v533 = vshrl.u32 %v251, 16
      %v535 = vrot.slane %v533, 4
      %v536 = vor.u32 %v535, %v531
      %v537 = vrot.slane %v536, 4
      %v539 = vshll.u32 %v252, 16
      %v541 = vrot.slane %v539, 5
      %v542 = vsel %vm338, %v537, %v541
      %v543 = vshrl.u32 %v252, 16
      %v545 = vrot.slane %v543, 4
      %v546 = vor.u32 %v545, %v541
      %v547 = vrot.slane %v546, 4
      %v549 = vshll.u32 %v253, 16
      %v551 = vrot.slane %v549, 5
      %v552 = vsel %vm338, %v547, %v551
      %v553 = vshrl.u32 %v253, 16
      %v555 = vrot.slane %v553, 4
      %v556 = vor.u32 %v555, %v551
      %v557 = vrot.slane %v556, 4
      %v559 = vshll.u32 %v254, 16
      %v561 = vrot.slane %v559, 5
      %v562 = vsel %vm338, %v557, %v561
      %v563 = vshrl.u32 %v254, 16
      %v565 = vrot.slane %v563, 4
      %v566 = vor.u32 %v565, %v561
      %v567 = vrot.slane %v566, 4
      %v569 = vshll.u32 %v255, 16
      %v571 = vrot.slane %v569, 5
      %v572 = vsel %vm338, %v567, %v571
      %v573 = vshrl.u32 %v255, 16
      %v575 = vrot.slane %v573, 4
      %v576 = vor.u32 %v575, %v571
      %v577 = vrot.slane %v576, 4
      %v579 = vshll.u32 %v256, 16
      %v581 = vrot.slane %v579, 5
      %v582 = vsel %vm338, %v577, %v581
      %v583 = vshrl.u32 %v256, 16
      %v585 = vrot.slane %v583, 4
      %v586 = vor.u32 %v585, %v581
      %v587 = vrot.slane %v586, 4
      %v589 = vshll.u32 %v257, 16
      %v591 = vrot.slane %v589, 5
      %v592 = vsel %vm338, %v587, %v591
      %v593 = vshrl.u32 %v257, 16
      %v595 = vrot.slane %v593, 4
      %v596 = vor.u32 %v595, %v591
      %v597 = vrot.slane %v596, 4
      %v599 = vshll.u32 %v258, 16
      %v601 = vrot.slane %v599, 5
      %v602 = vsel %vm338, %v597, %v601
      %v603 = vshrl.u32 %v258, 16
      %v605 = vrot.slane %v603, 4
      %v606 = vor.u32 %v605, %v601
      %v607 = vrot.slane %v606, 4
      %v609 = vshll.u32 %v259, 16
      %v611 = vrot.slane %v609, 5
      %v612 = vsel %vm338, %v607, %v611
      %v613 = vshrl.u32 %v259, 16
      %v615 = vrot.slane %v613, 4
      %v616 = vor.u32 %v615, %v611
      %v617 = vrot.slane %v616, 4
      %v619 = vshll.u32 %v260, 16
      %v621 = vrot.slane %v619, 5
      %v622 = vsel %vm338, %v617, %v621
      %v623 = vshrl.u32 %v260, 16
      %v625 = vrot.slane %v623, 4
      %v626 = vor.u32 %v625, %v621
      %v627 = vrot.slane %v626, 4
      %v629 = vshll.u32 %v261, 16
      %v631 = vrot.slane %v629, 5
      %v632 = vsel %vm338, %v627, %v631
      %v633 = vshrl.u32 %v261, 16
      %v635 = vrot.slane %v633, 4
      %v636 = vor.u32 %v635, %v631
      %v637 = vrot.slane %v636, 4
      %v639 = vshll.u32 %v262, 16
      %v641 = vrot.slane %v639, 5
      %v642 = vsel %vm338, %v637, %v641
      %v643 = vshrl.u32 %v262, 16
      %v645 = vrot.slane %v643, 4
      %v646 = vor.u32 %v645, %v641
      %v647 = vrot.slane %v646, 4
      %v649 = vshll.u32 %v263, 16
      %v651 = vrot.slane %v649, 5
      %v652 = vsel %vm338, %v647, %v651
      %v653 = vshrl.u32 %v263, 16
      %v655 = vrot.slane %v653, 4
      %v656 = vor.u32 %v655, %v651
      %v657 = vrot.slane %v656, 4
      %v659 = vshll.u32 %v264, 16
      %v661 = vrot.slane %v659, 5
      %v662 = vsel %vm338, %v657, %v661
      %v663 = vshrl.u32 %v264, 16
      %v665 = vrot.slane %v663, 4
      %v666 = vor.u32 %v665, %v661
      %v667 = vrot.slane %v666, 4
      %v669 = vshll.u32 %v265, 16
      %v671 = vrot.slane %v669, 5
      %v672 = vsel %vm338, %v667, %v671
      %v673 = vshrl.u32 %v265, 16
      %v675 = vrot.slane %v673, 4
      %v676 = vor.u32 %v675, %v671
      %v677 = vrot.slane %v676, 4
      %v679 = vshll.u32 %v266, 16
      %v681 = vrot.slane %v679, 5
      %v682 = vsel %vm338, %v677, %v681
      %v683 = vshrl.u32 %v266, 16
      %v685 = vrot.slane %v683, 4
      %v686 = vor.u32 %v685, %v681
      %v687 = vrot.slane %v686, 4
      %v689 = vshll.u32 %v267, 16
      %v691 = vrot.slane %v689, 5
      %v692 = vsel %vm338, %v687, %v691
      %v693 = vshrl.u32 %v267, 16
      %v695 = vrot.slane %v693, 4
      %v696 = vor.u32 %v695, %v691
      %v697 = vrot.slane %v696, 4
      %v699 = vshll.u32 %v268, 16
      %v701 = vrot.slane %v699, 5
      %v702 = vsel %vm338, %v697, %v701
      %v703 = vshrl.u32 %v268, 16
      %v705 = vrot.slane %v703, 4
      %v706 = vor.u32 %v705, %v701
      %v707 = vrot.slane %v706, 4
      %v709 = vshll.u32 %v269, 16
      %v711 = vrot.slane %v709, 5
      %v712 = vsel %vm338, %v707, %v711
      %v713 = vshrl.u32 %v269, 16
      %v715 = vrot.slane %v713, 4
      %v716 = vor.u32 %v715, %v711
      %v717 = vrot.slane %v716, 4
      %v719 = vshll.u32 %v270, 16
      %v721 = vrot.slane %v719, 5
      %v722 = vsel %vm338, %v717, %v721
      %v723 = vshrl.u32 %v270, 16
      %v725 = vrot.slane %v723, 4
      %v726 = vor.u32 %v725, %v721
      %v727 = vrot.slane %v726, 4
      %v729 = vshll.u32 %v271, 16
      %v731 = vrot.slane %v729, 5
      %v732 = vsel %vm338, %v727, %v731
      %v733 = vshrl.u32 %v271, 16
      %v735 = vrot.slane %v733, 4
      %v736 = vor.u32 %v735, %v731
      %v737 = vrot.slane %v736, 4
      %v739 = vshll.u32 %v272, 16
      %v741 = vrot.slane %v739, 5
      %v742 = vsel %vm338, %v737, %v741
      %v743 = vshrl.u32 %v272, 16
      %v745 = vrot.slane %v743, 4
      %v746 = vor.u32 %v745, %v741
      %v747 = vrot.slane %v746, 4
      %v749 = vshll.u32 %v273, 16
      %v751 = vrot.slane %v749, 5
      %v752 = vsel %vm338, %v747, %v751
      %v753 = vshrl.u32 %v273, 16
      %v755 = vrot.slane %v753, 4
      %v756 = vor.u32 %v755, %v751
      %v757 = vrot.slane %v756, 4
      %v759 = vshll.u32 %v274, 16
      %v761 = vrot.slane %v759, 5
      %v762 = vsel %vm338, %v757, %v761
      %v763 = vshrl.u32 %v274, 16
      %v765 = vrot.slane %v763, 4
      %v766 = vor.u32 %v765, %v761
      %v767 = vrot.slane %v766, 4
      %v769 = vshll.u32 %v275, 16
      %v771 = vrot.slane %v769, 5
      %v772 = vsel %vm338, %v767, %v771
      %v773 = vshrl.u32 %v275, 16
      %v775 = vrot.slane %v773, 4
      %v776 = vor.u32 %v775, %v771
      %v777 = vrot.slane %v776, 4
      %v779 = vshll.u32 %v276, 16
      %v781 = vrot.slane %v779, 5
      %v782 = vsel %vm338, %v777, %v781
      %v783 = vshrl.u32 %v276, 16
      %v785 = vrot.slane %v783, 4
      %v786 = vor.u32 %v785, %v781
      %v787 = vrot.slane %v786, 4
      %v789 = vshll.u32 %v277, 16
      %v791 = vrot.slane %v789, 5
      %v792 = vsel %vm338, %v787, %v791
      %v793 = vshrl.u32 %v277, 16
      %v795 = vrot.slane %v793, 4
      %v796 = vor.u32 %v795, %v791
      %v797 = vrot.slane %v796, 4
      %v799 = vshll.u32 %v278, 16
      %v801 = vrot.slane %v799, 5
      %v802 = vsel %vm338, %v797, %v801
      %v803 = vshrl.u32 %v278, 16
      %v805 = vrot.slane %v803, 4
      %v806 = vor.u32 %v805, %v801
      %v807 = vrot.slane %v806, 4
      %v809 = vshll.u32 %v279, 16
      %v811 = vrot.slane %v809, 5
      %v812 = vsel %vm338, %v807, %v811
      %v813 = vshrl.u32 %v279, 16
      %v815 = vrot.slane %v813, 4
      %v816 = vor.u32 %v815, %v811
      %v817 = vrot.slane %v816, 4
      %v819 = vshll.u32 %v280, 16
      %v821 = vrot.slane %v819, 5
      %v822 = vsel %vm338, %v817, %v821
      %823 = vrot.lane.b32.xlu0 %v352, 4
      %v824 = vpop.permute.xlu0 %823
      %825 = vrot.lane.b32.xlu0 %v362, 4
      %v826 = vpop.permute.xlu0 %825
      %827 = vrot.lane.b32.xlu0 %v372, 4
      %v828 = vpop.permute.xlu0 %827
      %829 = vrot.lane.b32.xlu0 %v382, 4
      %v830 = vpop.permute.xlu0 %829
      %831 = vrot.lane.b32.xlu0 %v392, 4
      %v832 = vpop.permute.xlu0 %831
      %833 = vrot.lane.b32.xlu0 %v402, 4
      %v834 = vpop.permute.xlu0 %833
      %835 = vrot.lane.b32.xlu0 %v412, 4
      %v836 = vpop.permute.xlu0 %835
      %837 = vrot.lane.b32.xlu0 %v422, 4
      %v838 = vpop.permute.xlu0 %837
      %839 = vrot.lane.b32.xlu0 %v432, 4
      %v840 = vpop.permute.xlu0 %839
      %841 = vrot.lane.b32.xlu0 %v442, 4
      %v842 = vpop.permute.xlu0 %841
      %843 = vrot.lane.b32.xlu0 %v452, 4
      %v844 = vpop.permute.xlu0 %843
      %845 = vrot.lane.b32.xlu0 %v462, 4
      %v846 = vpop.permute.xlu0 %845
      %847 = vrot.lane.b32.xlu0 %v472, 4
      %v848 = vpop.permute.xlu0 %847
      %849 = vrot.lane.b32.xlu0 %v482, 4
      %v850 = vpop.permute.xlu0 %849
      %851 = vrot.lane.b32.xlu0 %v492, 4
      %v852 = vpop.permute.xlu0 %851
      %853 = vrot.lane.b32.xlu0 %v502, 4
      %v854 = vpop.permute.xlu0 %853
      %855 = vrot.lane.b32.xlu0 %v512, 4
      %v856 = vpop.permute.xlu0 %855
      %857 = vrot.lane.b32.xlu0 %v522, 4
      %v858 = vpop.permute.xlu0 %857
      %859 = vrot.lane.b32.xlu0 %v532, 4
      %v860 = vpop.permute.xlu0 %859
      %861 = vrot.lane.b32.xlu0 %v542, 4
      %v862 = vpop.permute.xlu0 %861
      %863 = vrot.lane.b32.xlu0 %v552, 4
      %v864 = vpop.permute.xlu0 %863
      %865 = vrot.lane.b32.xlu0 %v562, 4
      %v866 = vpop.permute.xlu0 %865
      %867 = vrot.lane.b32.xlu0 %v572, 4
      %v868 = vpop.permute.xlu0 %867
      %869 = vrot.lane.b32.xlu0 %v582, 4
      %v870 = vpop.permute.xlu0 %869
      %871 = vrot.lane.b32.xlu0 %v592, 4
      %v872 = vpop.permute.xlu0 %871
      %873 = vrot.lane.b32.xlu0 %v602, 4
      %v874 = vpop.permute.xlu0 %873
      %875 = vrot.lane.b32.xlu0 %v612, 4
      %v876 = vpop.permute.xlu0 %875
      %877 = vrot.lane.b32.xlu0 %v622, 4
      %v878 = vpop.permute.xlu0 %877
      %879 = vrot.lane.b32.xlu0 %v632, 4
      %v880 = vpop.permute.xlu0 %879
      %881 = vrot.lane.b32.xlu0 %v642, 4
      %v882 = vpop.permute.xlu0 %881
      %883 = vrot.lane.b32.xlu0 %v652, 4
      %v884 = vpop.permute.xlu0 %883
      %885 = vrot.lane.b32.xlu0 %v662, 4
      %v886 = vpop.permute.xlu0 %885
      %887 = vrot.lane.b32.xlu0 %v672, 4
      %v888 = vpop.permute.xlu0 %887
      %889 = vrot.lane.b32.xlu0 %v682, 4
      %v890 = vpop.permute.xlu0 %889
      %891 = vrot.lane.b32.xlu0 %v692, 4
      %v892 = vpop.permute.xlu0 %891
      %893 = vrot.lane.b32.xlu0 %v702, 4
      %v894 = vpop.permute.xlu0 %893
      %895 = vrot.lane.b32.xlu0 %v712, 4
      %v896 = vpop.permute.xlu0 %895
      %897 = vrot.lane.b32.xlu0 %v722, 4
      %v898 = vpop.permute.xlu0 %897
      %899 = vrot.lane.b32.xlu0 %v732, 4
      %v900 = vpop.permute.xlu0 %899
      %901 = vrot.lane.b32.xlu0 %v742, 4
      %v902 = vpop.permute.xlu0 %901
      %903 = vrot.lane.b32.xlu0 %v752, 4
      %v904 = vpop.permute.xlu0 %903
      %905 = vrot.lane.b32.xlu0 %v762, 4
      %v906 = vpop.permute.xlu0 %905
      %907 = vrot.lane.b32.xlu0 %v772, 4
      %v908 = vpop.permute.xlu0 %907
      %909 = vrot.lane.b32.xlu0 %v782, 4
      %v910 = vpop.permute.xlu0 %909
      %911 = vrot.lane.b32.xlu0 %v792, 4
      %v912 = vpop.permute.xlu0 %911
      %913 = vrot.lane.b32.xlu0 %v802, 4
      %v914 = vpop.permute.xlu0 %913
      %915 = vrot.lane.b32.xlu0 %v812, 4
      %v916 = vpop.permute.xlu0 %915
      %917 = vrot.lane.b32.xlu0 %v822, 4
      %v918 = vpop.permute.xlu0 %917
      %vm967 = vcmask 60448
      %968 = vst.msk [vmem:[#allocation2] sm:$0xf] %vm967, %v824
      %969 = vst.msk [vmem:[#allocation2 + $0x4] sm:$0xf] %vm967, %v826
      %970 = vst.msk [vmem:[#allocation2 + $0x8] sm:$0xf] %vm967, %v828
      %971 = vst.msk [vmem:[#allocation2 + $0xc] sm:$0xf] %vm967, %v830
      %972 = vst.msk [vmem:[#allocation2 + $0x10] sm:$0xf] %vm967, %v832
      %973 = vst.msk [vmem:[#allocation2 + $0x14] sm:$0xf] %vm967, %v834
      %974 = vst.msk [vmem:[#allocation2 + $0x18] sm:$0xf] %vm967, %v836
      %975 = vst.msk [vmem:[#allocation2 + $0x1c] sm:$0xf] %vm967, %v838
      %976 = vst.msk [vmem:[#allocation2 + $0x20] sm:$0xf] %vm967, %v840
      %977 = vst.msk [vmem:[#allocation2 + $0x24] sm:$0xf] %vm967, %v842
      %978 = vst.msk [vmem:[#allocation2 + $0x28] sm:$0xf] %vm967, %v844
      %979 = vst.msk [vmem:[#allocation2 + $0x2c] sm:$0xf] %vm967, %v846
      %980 = vst.msk [vmem:[#allocation2 + $0x30] sm:$0xf] %vm967, %v848
      %981 = vst.msk [vmem:[#allocation2 + $0x34] sm:$0xf] %vm967, %v850
      %982 = vst.msk [vmem:[#allocation2 + $0x38] sm:$0xf] %vm967, %v852
      %983 = vst.msk [vmem:[#allocation2 + $0x3c] sm:$0xf] %vm967, %v854
      %984 = vst.msk [vmem:[#allocation2 + $0x40] sm:$0xf] %vm967, %v856
      %985 = vst.msk [vmem:[#allocation2 + $0x44] sm:$0xf] %vm967, %v858
      %986 = vst.msk [vmem:[#allocation2 + $0x48] sm:$0xf] %vm967, %v860
      %987 = vst.msk [vmem:[#allocation2 + $0x4c] sm:$0xf] %vm967, %v862
      %988 = vst.msk [vmem:[#allocation2 + $0x50] sm:$0xf] %vm967, %v864
      %989 = vst.msk [vmem:[#allocation2 + $0x54] sm:$0xf] %vm967, %v866
      %990 = vst.msk [vmem:[#allocation2 + $0x58] sm:$0xf] %vm967, %v868
      %991 = vst.msk [vmem:[#allocation2 + $0x5c] sm:$0xf] %vm967, %v870
      %992 = vst.msk [vmem:[#allocation2 + $0x60] sm:$0xf] %vm967, %v872
      %993 = vst.msk [vmem:[#allocation2 + $0x64] sm:$0xf] %vm967, %v874
      %994 = vst.msk [vmem:[#allocation2 + $0x68] sm:$0xf] %vm967, %v876
      %995 = vst.msk [vmem:[#allocation2 + $0x6c] sm:$0xf] %vm967, %v878
      %996 = vst.msk [vmem:[#allocation2 + $0x70] sm:$0xf] %vm967, %v880
      %997 = vst.msk [vmem:[#allocation2 + $0x74] sm:$0xf] %vm967, %v882
      %998 = vst.msk [vmem:[#allocation2 + $0x78] sm:$0xf] %vm967, %v884
      %999 = vst.msk [vmem:[#allocation2 + $0x7c] sm:$0xf] %vm967, %v886
      %1000 = vst.msk [vmem:[#allocation2 + $0x80] sm:$0xf] %vm967, %v888
      %1001 = vst.msk [vmem:[#allocation2 + $0x84] sm:$0xf] %vm967, %v890
      %1002 = vst.msk [vmem:[#allocation2 + $0x88] sm:$0xf] %vm967, %v892
      %1003 = vst.msk [vmem:[#allocation2 + $0x8c] sm:$0xf] %vm967, %v894
      %1004 = vst.msk [vmem:[#allocation2 + $0x90] sm:$0xf] %vm967, %v896
      %1005 = vst.msk [vmem:[#allocation2 + $0x94] sm:$0xf] %vm967, %v898
      %1006 = vst.msk [vmem:[#allocation2 + $0x98] sm:$0xf] %vm967, %v900
      %1007 = vst.msk [vmem:[#allocation2 + $0x9c] sm:$0xf] %vm967, %v902
      %1008 = vst.msk [vmem:[#allocation2 + $0xa0] sm:$0xf] %vm967, %v904
      %1009 = vst.msk [vmem:[#allocation2 + $0xa4] sm:$0xf] %vm967, %v906
      %1010 = vst.msk [vmem:[#allocation2 + $0xa8] sm:$0xf] %vm967, %v908
      %1011 = vst.msk [vmem:[#allocation2 + $0xac] sm:$0xf] %vm967, %v910
      %1012 = vst.msk [vmem:[#allocation2 + $0xb0] sm:$0xf] %vm967, %v912
      %1013 = vst.msk [vmem:[#allocation2 + $0xb4] sm:$0xf] %vm967, %v914
      %1014 = vst.msk [vmem:[#allocation2 + $0xb8] sm:$0xf] %vm967, %v916
      %1015 = vst.msk [vmem:[#allocation2 + $0xbc] sm:$0xf] %vm967, %v918
      %vm1065 = vcmask 1042432
      %vm1066 = vcmask 1046532
      %vm1067 = vmor %vm1065, %vm1066
      %v1068 = vrot.slane %v232, 5
      %v1069 = vrot.slane %v1068, 4
      %v1070 = vrot.slane %v233, 5
      %v1071 = vsel %vm1067, %v1069, %v1070
      %v1072 = vrot.slane %v1070, 4
      %v1073 = vrot.slane %v234, 5
      %v1074 = vsel %vm1067, %v1072, %v1073
      %v1075 = vrot.slane %v1073, 4
      %v1076 = vrot.slane %v235, 5
      %v1077 = vsel %vm1067, %v1075, %v1076
      %v1078 = vrot.slane %v1076, 4
      %v1079 = vrot.slane %v236, 5
      %v1080 = vsel %vm1067, %v1078, %v1079
      %v1081 = vrot.slane %v1079, 4
      %v1082 = vrot.slane %v237, 5
      %v1083 = vsel %vm1067, %v1081, %v1082
      %v1084 = vrot.slane %v1082, 4
      %v1085 = vrot.slane %v238, 5
      %v1086 = vsel %vm1067, %v1084, %v1085
      %v1087 = vrot.slane %v1085, 4
      %v1088 = vrot.slane %v239, 5
      %v1089 = vsel %vm1067, %v1087, %v1088
      %v1090 = vrot.slane %v1088, 4
      %v1091 = vrot.slane %v240, 5
      %v1092 = vsel %vm1067, %v1090, %v1091
      %v1093 = vrot.slane %v1091, 4
      %v1094 = vrot.slane %v241, 5
      %v1095 = vsel %vm1067, %v1093, %v1094
      %v1096 = vrot.slane %v1094, 4
      %v1097 = vrot.slane %v242, 5
      %v1098 = vsel %vm1067, %v1096, %v1097
      %v1099 = vrot.slane %v1097, 4
      %v1100 = vrot.slane %v243, 5
      %v1101 = vsel %vm1067, %v1099, %v1100
      %v1102 = vrot.slane %v1100, 4
      %v1103 = vrot.slane %v244, 5
      %v1104 = vsel %vm1067, %v1102, %v1103
      %v1105 = vrot.slane %v1103, 4
      %v1106 = vrot.slane %v245, 5
      %v1107 = vsel %vm1067, %v1105, %v1106
      %v1108 = vrot.slane %v1106, 4
      %v1109 = vrot.slane %v246, 5
      %v1110 = vsel %vm1067, %v1108, %v1109
      %v1111 = vrot.slane %v1109, 4
      %v1112 = vrot.slane %v247, 5
      %v1113 = vsel %vm1067, %v1111, %v1112
      %v1114 = vrot.slane %v1112, 4
      %v1115 = vrot.slane %v248, 5
      %v1116 = vsel %vm1067, %v1114, %v1115
      %v1117 = vrot.slane %v1115, 4
      %v1118 = vrot.slane %v249, 5
      %v1119 = vsel %vm1067, %v1117, %v1118
      %v1120 = vrot.slane %v1118, 4
      %v1121 = vrot.slane %v250, 5
      %v1122 = vsel %vm1067, %v1120, %v1121
      %v1123 = vrot.slane %v1121, 4
      %v1124 = vrot.slane %v251, 5
      %v1125 = vsel %vm1067, %v1123, %v1124
      %v1126 = vrot.slane %v1124, 4
      %v1127 = vrot.slane %v252, 5
      %v1128 = vsel %vm1067, %v1126, %v1127
      %v1129 = vrot.slane %v1127, 4
      %v1130 = vrot.slane %v253, 5
      %v1131 = vsel %vm1067, %v1129, %v1130
      %v1132 = vrot.slane %v1130, 4
      %v1133 = vrot.slane %v254, 5
      %v1134 = vsel %vm1067, %v1132, %v1133
      %v1135 = vrot.slane %v1133, 4
      %v1136 = vrot.slane %v255, 5
      %v1137 = vsel %vm1067, %v1135, %v1136
      %v1138 = vrot.slane %v1136, 4
      %v1139 = vrot.slane %v256, 5
      %v1140 = vsel %vm1067, %v1138, %v1139
      %v1141 = vrot.slane %v1139, 4
      %v1142 = vrot.slane %v257, 5
      %v1143 = vsel %vm1067, %v1141, %v1142
      %v1144 = vrot.slane %v1142, 4
      %v1145 = vrot.slane %v258, 5
      %v1146 = vsel %vm1067, %v1144, %v1145
      %v1147 = vrot.slane %v1145, 4
      %v1148 = vrot.slane %v259, 5
      %v1149 = vsel %vm1067, %v1147, %v1148
      %v1150 = vrot.slane %v1148, 4
      %v1151 = vrot.slane %v260, 5
      %v1152 = vsel %vm1067, %v1150, %v1151
      %v1153 = vrot.slane %v1151, 4
      %v1154 = vrot.slane %v261, 5
      %v1155 = vsel %vm1067, %v1153, %v1154
      %v1156 = vrot.slane %v1154, 4
      %v1157 = vrot.slane %v262, 5
      %v1158 = vsel %vm1067, %v1156, %v1157
      %v1159 = vrot.slane %v1157, 4
      %v1160 = vrot.slane %v263, 5
      %v1161 = vsel %vm1067, %v1159, %v1160
      %v1162 = vrot.slane %v1160, 4
      %v1163 = vrot.slane %v264, 5
      %v1164 = vsel %vm1067, %v1162, %v1163
      %v1165 = vrot.slane %v1163, 4
      %v1166 = vrot.slane %v265, 5
      %v1167 = vsel %vm1067, %v1165, %v1166
      %v1168 = vrot.slane %v1166, 4
      %v1169 = vrot.slane %v266, 5
      %v1170 = vsel %vm1067, %v1168, %v1169
      %v1171 = vrot.slane %v1169, 4
      %v1172 = vrot.slane %v267, 5
      %v1173 = vsel %vm1067, %v1171, %v1172
      %v1174 = vrot.slane %v1172, 4
      %v1175 = vrot.slane %v268, 5
      %v1176 = vsel %vm1067, %v1174, %v1175
      %v1177 = vrot.slane %v1175, 4
      %v1178 = vrot.slane %v269, 5
      %v1179 = vsel %vm1067, %v1177, %v1178
      %v1180 = vrot.slane %v1178, 4
      %v1181 = vrot.slane %v270, 5
      %v1182 = vsel %vm1067, %v1180, %v1181
      %v1183 = vrot.slane %v1181, 4
      %v1184 = vrot.slane %v271, 5
      %v1185 = vsel %vm1067, %v1183, %v1184
      %v1186 = vrot.slane %v1184, 4
      %v1187 = vrot.slane %v272, 5
      %v1188 = vsel %vm1067, %v1186, %v1187
      %v1189 = vrot.slane %v1187, 4
      %v1190 = vrot.slane %v273, 5
      %v1191 = vsel %vm1067, %v1189, %v1190
      %v1192 = vrot.slane %v1190, 4
      %v1193 = vrot.slane %v274, 5
      %v1194 = vsel %vm1067, %v1192, %v1193
      %v1195 = vrot.slane %v1193, 4
      %v1196 = vrot.slane %v275, 5
      %v1197 = vsel %vm1067, %v1195, %v1196
      %v1198 = vrot.slane %v1196, 4
      %v1199 = vrot.slane %v276, 5
      %v1200 = vsel %vm1067, %v1198, %v1199
      %v1201 = vrot.slane %v1199, 4
      %v1202 = vrot.slane %v277, 5
      %v1203 = vsel %vm1067, %v1201, %v1202
      %v1204 = vrot.slane %v1202, 4
      %v1205 = vrot.slane %v278, 5
      %v1206 = vsel %vm1067, %v1204, %v1205
      %v1207 = vrot.slane %v1205, 4
      %v1208 = vrot.slane %v279, 5
      %v1209 = vsel %vm1067, %v1207, %v1208
      %v1210 = vrot.slane %v1208, 4
      %v1211 = vrot.slane %v280, 5
      %v1212 = vsel %vm1067, %v1210, %v1211
      %1213 = vrot.lane.b32.xlu0 %v1071, 8
      %v1214 = vpop.permute.xlu0 %1213
      %1215 = vrot.lane.b32.xlu0 %v1074, 8
      %v1216 = vpop.permute.xlu0 %1215
      %1217 = vrot.lane.b32.xlu0 %v1077, 8
      %v1218 = vpop.permute.xlu0 %1217
      %1219 = vrot.lane.b32.xlu0 %v1080, 8
      %v1220 = vpop.permute.xlu0 %1219
      %1221 = vrot.lane.b32.xlu0 %v1083, 8
      %v1222 = vpop.permute.xlu0 %1221
      %1223 = vrot.lane.b32.xlu0 %v1086, 8
      %v1224 = vpop.permute.xlu0 %1223
      %1225 = vrot.lane.b32.xlu0 %v1089, 8
      %v1226 = vpop.permute.xlu0 %1225
      %1227 = vrot.lane.b32.xlu0 %v1092, 8
      %v1228 = vpop.permute.xlu0 %1227
      %1229 = vrot.lane.b32.xlu0 %v1095, 8
      %v1230 = vpop.permute.xlu0 %1229
      %1231 = vrot.lane.b32.xlu0 %v1098, 8
      %v1232 = vpop.permute.xlu0 %1231
      %1233 = vrot.lane.b32.xlu0 %v1101, 8
      %v1234 = vpop.permute.xlu0 %1233
      %1235 = vrot.lane.b32.xlu0 %v1104, 8
      %v1236 = vpop.permute.xlu0 %1235
      %1237 = vrot.lane.b32.xlu0 %v1107, 8
      %v1238 = vpop.permute.xlu0 %1237
      %1239 = vrot.lane.b32.xlu0 %v1110, 8
      %v1240 = vpop.permute.xlu0 %1239
      %1241 = vrot.lane.b32.xlu0 %v1113, 8
      %v1242 = vpop.permute.xlu0 %1241
      %1243 = vrot.lane.b32.xlu0 %v1116, 8
      %v1244 = vpop.permute.xlu0 %1243
      %1245 = vrot.lane.b32.xlu0 %v1119, 8
      %v1246 = vpop.permute.xlu0 %1245
      %1247 = vrot.lane.b32.xlu0 %v1122, 8
      %v1248 = vpop.permute.xlu0 %1247
      %1249 = vrot.lane.b32.xlu0 %v1125, 8
      %v1250 = vpop.permute.xlu0 %1249
      %1251 = vrot.lane.b32.xlu0 %v1128, 8
      %v1252 = vpop.permute.xlu0 %1251
      %1253 = vrot.lane.b32.xlu0 %v1131, 8
      %v1254 = vpop.permute.xlu0 %1253
      %1255 = vrot.lane.b32.xlu0 %v1134, 8
      %v1256 = vpop.permute.xlu0 %1255
      %1257 = vrot.lane.b32.xlu0 %v1137, 8
      %v1258 = vpop.permute.xlu0 %1257
      %1259 = vrot.lane.b32.xlu0 %v1140, 8
      %v1260 = vpop.permute.xlu0 %1259
      %1261 = vrot.lane.b32.xlu0 %v1143, 8
      %v1262 = vpop.permute.xlu0 %1261
      %1263 = vrot.lane.b32.xlu0 %v1146, 8
      %v1264 = vpop.permute.xlu0 %1263
      %1265 = vrot.lane.b32.xlu0 %v1149, 8
      %v1266 = vpop.permute.xlu0 %1265
      %1267 = vrot.lane.b32.xlu0 %v1152, 8
      %v1268 = vpop.permute.xlu0 %1267
      %1269 = vrot.lane.b32.xlu0 %v1155, 8
      %v1270 = vpop.permute.xlu0 %1269
      %1271 = vrot.lane.b32.xlu0 %v1158, 8
      %v1272 = vpop.permute.xlu0 %1271
      %1273 = vrot.lane.b32.xlu0 %v1161, 8
      %v1274 = vpop.permute.xlu0 %1273
      %1275 = vrot.lane.b32.xlu0 %v1164, 8
      %v1276 = vpop.permute.xlu0 %1275
      %1277 = vrot.lane.b32.xlu0 %v1167, 8
      %v1278 = vpop.permute.xlu0 %1277
      %1279 = vrot.lane.b32.xlu0 %v1170, 8
      %v1280 = vpop.permute.xlu0 %1279
      %1281 = vrot.lane.b32.xlu0 %v1173, 8
      %v1282 = vpop.permute.xlu0 %1281
      %1283 = vrot.lane.b32.xlu0 %v1176, 8
      %v1284 = vpop.permute.xlu0 %1283
      %1285 = vrot.lane.b32.xlu0 %v1179, 8
      %v1286 = vpop.permute.xlu0 %1285
      %1287 = vrot.lane.b32.xlu0 %v1182, 8
      %v1288 = vpop.permute.xlu0 %1287
      %1289 = vrot.lane.b32.xlu0 %v1185, 8
      %v1290 = vpop.permute.xlu0 %1289
      %1291 = vrot.lane.b32.xlu0 %v1188, 8
      %v1292 = vpop.permute.xlu0 %1291
      %1293 = vrot.lane.b32.xlu0 %v1191, 8
      %v1294 = vpop.permute.xlu0 %1293
      %1295 = vrot.lane.b32.xlu0 %v1194, 8
      %v1296 = vpop.permute.xlu0 %1295
      %1297 = vrot.lane.b32.xlu0 %v1197, 8
      %v1298 = vpop.permute.xlu0 %1297
      %1299 = vrot.lane.b32.xlu0 %v1200, 8
      %v1300 = vpop.permute.xlu0 %1299
      %1301 = vrot.lane.b32.xlu0 %v1203, 8
      %v1302 = vpop.permute.xlu0 %1301
      %1303 = vrot.lane.b32.xlu0 %v1206, 8
      %v1304 = vpop.permute.xlu0 %1303
      %1305 = vrot.lane.b32.xlu0 %v1209, 8
      %v1306 = vpop.permute.xlu0 %1305
      %1307 = vrot.lane.b32.xlu0 %v1212, 8
      %v1308 = vpop.permute.xlu0 %1307
      %vm1357 = vcmask 93248
      %1358 = vst.msk [vmem:[#allocation2] sm:$0xf] %vm1357, %v1214
      %1359 = vst.msk [vmem:[#allocation2 + $0x4] sm:$0xf] %vm1357, %v1216
      %1360 = vst.msk [vmem:[#allocation2 + $0x8] sm:$0xf] %vm1357, %v1218
      %1361 = vst.msk [vmem:[#allocation2 + $0xc] sm:$0xf] %vm1357, %v1220
      %1362 = vst.msk [vmem:[#allocation2 + $0x10] sm:$0xf] %vm1357, %v1222
      %1363 = vst.msk [vmem:[#allocation2 + $0x14] sm:$0xf] %vm1357, %v1224
      %1364 = vst.msk [vmem:[#allocation2 + $0x18] sm:$0xf] %vm1357, %v1226
      %1365 = vst.msk [vmem:[#allocation2 + $0x1c] sm:$0xf] %vm1357, %v1228
      %1366 = vst.msk [vmem:[#allocation2 + $0x20] sm:$0xf] %vm1357, %v1230
      %1367 = vst.msk [vmem:[#allocation2 + $0x24] sm:$0xf] %vm1357, %v1232
      %1368 = vst.msk [vmem:[#allocation2 + $0x28] sm:$0xf] %vm1357, %v1234
      %1369 = vst.msk [vmem:[#allocation2 + $0x2c] sm:$0xf] %vm1357, %v1236
      %1370 = vst.msk [vmem:[#allocation2 + $0x30] sm:$0xf] %vm1357, %v1238
      %1371 = vst.msk [vmem:[#allocation2 + $0x34] sm:$0xf] %vm1357, %v1240
      %1372 = vst.msk [vmem:[#allocation2 + $0x38] sm:$0xf] %vm1357, %v1242
      %1373 = vst.msk [vmem:[#allocation2 + $0x3c] sm:$0xf] %vm1357, %v1244
      %1374 = vst.msk [vmem:[#allocation2 + $0x40] sm:$0xf] %vm1357, %v1246
      %1375 = vst.msk [vmem:[#allocation2 + $0x44] sm:$0xf] %vm1357, %v1248
      %1376 = vst.msk [vmem:[#allocation2 + $0x48] sm:$0xf] %vm1357, %v1250
      %1377 = vst.msk [vmem:[#allocation2 + $0x4c] sm:$0xf] %vm1357, %v1252
      %1378 = vst.msk [vmem:[#allocation2 + $0x50] sm:$0xf] %vm1357, %v1254
      %1379 = vst.msk [vmem:[#allocation2 + $0x54] sm:$0xf] %vm1357, %v1256
      %1380 = vst.msk [vmem:[#allocation2 + $0x58] sm:$0xf] %vm1357, %v1258
      %1381 = vst.msk [vmem:[#allocation2 + $0x5c] sm:$0xf] %vm1357, %v1260
      %1382 = vst.msk [vmem:[#allocation2 + $0x60] sm:$0xf] %vm1357, %v1262
      %1383 = vst.msk [vmem:[#allocation2 + $0x64] sm:$0xf] %vm1357, %v1264
      %1384 = vst.msk [vmem:[#allocation2 + $0x68] sm:$0xf] %vm1357, %v1266
      %1385 = vst.msk [vmem:[#allocation2 + $0x6c] sm:$0xf] %vm1357, %v1268
      %1386 = vst.msk [vmem:[#allocation2 + $0x70] sm:$0xf] %vm1357, %v1270
      %1387 = vst.msk [vmem:[#allocation2 + $0x74] sm:$0xf] %vm1357, %v1272
      %1388 = vst.msk [vmem:[#allocation2 + $0x78] sm:$0xf] %vm1357, %v1274
      %1389 = vst.msk [vmem:[#allocation2 + $0x7c] sm:$0xf] %vm1357, %v1276
      %1390 = vst.msk [vmem:[#allocation2 + $0x80] sm:$0xf] %vm1357, %v1278
      %1391 = vst.msk [vmem:[#allocation2 + $0x84] sm:$0xf] %vm1357, %v1280
      %1392 = vst.msk [vmem:[#allocation2 + $0x88] sm:$0xf] %vm1357, %v1282
      %1393 = vst.msk [vmem:[#allocation2 + $0x8c] sm:$0xf] %vm1357, %v1284
      %1394 = vst.msk [vmem:[#allocation2 + $0x90] sm:$0xf] %vm1357, %v1286
      %1395 = vst.msk [vmem:[#allocation2 + $0x94] sm:$0xf] %vm1357, %v1288
      %1396 = vst.msk [vmem:[#allocation2 + $0x98] sm:$0xf] %vm1357, %v1290
      %1397 = vst.msk [vmem:[#allocation2 + $0x9c] sm:$0xf] %vm1357, %v1292
      %1398 = vst.msk [vmem:[#allocation2 + $0xa0] sm:$0xf] %vm1357, %v1294
      %1399 = vst.msk [vmem:[#allocation2 + $0xa4] sm:$0xf] %vm1357, %v1296
      %1400 = vst.msk [vmem:[#allocation2 + $0xa8] sm:$0xf] %vm1357, %v1298
      %1401 = vst.msk [vmem:[#allocation2 + $0xac] sm:$0xf] %vm1357, %v1300
      %1402 = vst.msk [vmem:[#allocation2 + $0xb0] sm:$0xf] %vm1357, %v1302
      %1403 = vst.msk [vmem:[#allocation2 + $0xb4] sm:$0xf] %vm1357, %v1304
      %1404 = vst.msk [vmem:[#allocation2 + $0xb8] sm:$0xf] %vm1357, %v1306
      %1405 = vst.msk [vmem:[#allocation2 + $0xbc] sm:$0xf] %vm1357, %v1308
      %1408 = vrot.lane.b32.xlu0 %v235, 12
      %v1409 = vpop.permute.xlu0 %1408
      %1410 = vrot.lane.b32.xlu0 %v236, 12
      %v1411 = vpop.permute.xlu0 %1410
      %1412 = vrot.lane.b32.xlu0 %v237, 12
      %v1413 = vpop.permute.xlu0 %1412
      %1414 = vrot.lane.b32.xlu0 %v238, 12
      %v1415 = vpop.permute.xlu0 %1414
      %1416 = vrot.lane.b32.xlu0 %v239, 12
      %v1417 = vpop.permute.xlu0 %1416
      %1418 = vrot.lane.b32.xlu0 %v240, 12
      %v1419 = vpop.permute.xlu0 %1418
      %1420 = vrot.lane.b32.xlu0 %v241, 12
      %v1421 = vpop.permute.xlu0 %1420
      %1422 = vrot.lane.b32.xlu0 %v242, 12
      %v1423 = vpop.permute.xlu0 %1422
      %1424 = vrot.lane.b32.xlu0 %v243, 12
      %v1425 = vpop.permute.xlu0 %1424
      %1426 = vrot.lane.b32.xlu0 %v244, 12
      %v1427 = vpop.permute.xlu0 %1426
      %1428 = vrot.lane.b32.xlu0 %v245, 12
      %v1429 = vpop.permute.xlu0 %1428
      %1430 = vrot.lane.b32.xlu0 %v246, 12
      %v1431 = vpop.permute.xlu0 %1430
      %1432 = vrot.lane.b32.xlu0 %v247, 12
      %v1433 = vpop.permute.xlu0 %1432
      %1434 = vrot.lane.b32.xlu0 %v248, 12
      %v1435 = vpop.permute.xlu0 %1434
      %1436 = vrot.lane.b32.xlu0 %v249, 12
      %v1437 = vpop.permute.xlu0 %1436
      %1438 = vrot.lane.b32.xlu0 %v250, 12
      %v1439 = vpop.permute.xlu0 %1438
      %1440 = vrot.lane.b32.xlu0 %v251, 12
      %v1441 = vpop.permute.xlu0 %1440
      %1442 = vrot.lane.b32.xlu0 %v252, 12
      %v1443 = vpop.permute.xlu0 %1442
      %1444 = vrot.lane.b32.xlu0 %v253, 12
      %v1445 = vpop.permute.xlu0 %1444
      %1446 = vrot.lane.b32.xlu0 %v254, 12
      %v1447 = vpop.permute.xlu0 %1446
      %1448 = vrot.lane.b32.xlu0 %v255, 12
      %v1449 = vpop.permute.xlu0 %1448
      %1450 = vrot.lane.b32.xlu0 %v256, 12
      %v1451 = vpop.permute.xlu0 %1450
      %1452 = vrot.lane.b32.xlu0 %v257, 12
      %v1453 = vpop.permute.xlu0 %1452
      %1454 = vrot.lane.b32.xlu0 %v258, 12
      %v1455 = vpop.permute.xlu0 %1454
      %1456 = vrot.lane.b32.xlu0 %v259, 12
      %v1457 = vpop.permute.xlu0 %1456
      %1458 = vrot.lane.b32.xlu0 %v260, 12
      %v1459 = vpop.permute.xlu0 %1458
      %1460 = vrot.lane.b32.xlu0 %v261, 12
      %v1461 = vpop.permute.xlu0 %1460
      %1462 = vrot.lane.b32.xlu0 %v262, 12
      %v1463 = vpop.permute.xlu0 %1462
      %1464 = vrot.lane.b32.xlu0 %v263, 12
      %v1465 = vpop.permute.xlu0 %1464
      %1466 = vrot.lane.b32.xlu0 %v264, 12
      %v1467 = vpop.permute.xlu0 %1466
      %1468 = vrot.lane.b32.xlu0 %v265, 12
      %v1469 = vpop.permute.xlu0 %1468
      %1470 = vrot.lane.b32.xlu0 %v266, 12
      %v1471 = vpop.permute.xlu0 %1470
      %1472 = vrot.lane.b32.xlu0 %v267, 12
      %v1473 = vpop.permute.xlu0 %1472
      %1474 = vrot.lane.b32.xlu0 %v268, 12
      %v1475 = vpop.permute.xlu0 %1474
      %1476 = vrot.lane.b32.xlu0 %v269, 12
      %v1477 = vpop.permute.xlu0 %1476
      %1478 = vrot.lane.b32.xlu0 %v270, 12
      %v1479 = vpop.permute.xlu0 %1478
      %1480 = vrot.lane.b32.xlu0 %v271, 12
      %v1481 = vpop.permute.xlu0 %1480
      %1482 = vrot.lane.b32.xlu0 %v272, 12
      %v1483 = vpop.permute.xlu0 %1482
      %1484 = vrot.lane.b32.xlu0 %v273, 12
      %v1485 = vpop.permute.xlu0 %1484
      %1486 = vrot.lane.b32.xlu0 %v274, 12
      %v1487 = vpop.permute.xlu0 %1486
      %1488 = vrot.lane.b32.xlu0 %v275, 12
      %v1489 = vpop.permute.xlu0 %1488
      %1490 = vrot.lane.b32.xlu0 %v276, 12
      %v1491 = vpop.permute.xlu0 %1490
      %1492 = vrot.lane.b32.xlu0 %v277, 12
      %v1493 = vpop.permute.xlu0 %1492
      %1494 = vrot.lane.b32.xlu0 %v278, 12
      %v1495 = vpop.permute.xlu0 %1494
      %1496 = vrot.lane.b32.xlu0 %v279, 12
      %v1497 = vpop.permute.xlu0 %1496
      %1498 = vrot.lane.b32.xlu0 %v280, 12
      %v1499 = vpop.permute.xlu0 %1498
      %1500 = vrot.lane.b32.xlu0 %v281, 12
      %v1501 = vpop.permute.xlu0 %1500
      %1502 = vrot.lane.b32.xlu0 %v282, 12
      %v1503 = vpop.permute.xlu0 %1502
      %vm1552 = vcmask 126048
      %1553 = vst.msk [vmem:[#allocation2] sm:$0xf] %vm1552, %v1409
      %1554 = vst.msk [vmem:[#allocation2 + $0x4] sm:$0xf] %vm1552, %v1411
      %1555 = vst.msk [vmem:[#allocation2 + $0x8] sm:$0xf] %vm1552, %v1413
      %1556 = vst.msk [vmem:[#allocation2 + $0xc] sm:$0xf] %vm1552, %v1415
      %1557 = vst.msk [vmem:[#allocation2 + $0x10] sm:$0xf] %vm1552, %v1417
      %1558 = vst.msk [vmem:[#allocation2 + $0x14] sm:$0xf] %vm1552, %v1419
      %1559 = vst.msk [vmem:[#allocation2 + $0x18] sm:$0xf] %vm1552, %v1421
      %1560 = vst.msk [vmem:[#allocation2 + $0x1c] sm:$0xf] %vm1552, %v1423
      %1561 = vst.msk [vmem:[#allocation2 + $0x20] sm:$0xf] %vm1552, %v1425
      %1562 = vst.msk [vmem:[#allocation2 + $0x24] sm:$0xf] %vm1552, %v1427
      %1563 = vst.msk [vmem:[#allocation2 + $0x28] sm:$0xf] %vm1552, %v1429
      %1564 = vst.msk [vmem:[#allocation2 + $0x2c] sm:$0xf] %vm1552, %v1431
      %1565 = vst.msk [vmem:[#allocation2 + $0x30] sm:$0xf] %vm1552, %v1433
      %1566 = vst.msk [vmem:[#allocation2 + $0x34] sm:$0xf] %vm1552, %v1435
      %1567 = vst.msk [vmem:[#allocation2 + $0x38] sm:$0xf] %vm1552, %v1437
      %1568 = vst.msk [vmem:[#allocation2 + $0x3c] sm:$0xf] %vm1552, %v1439
      %1569 = vst.msk [vmem:[#allocation2 + $0x40] sm:$0xf] %vm1552, %v1441
      %1570 = vst.msk [vmem:[#allocation2 + $0x44] sm:$0xf] %vm1552, %v1443
      %1571 = vst.msk [vmem:[#allocation2 + $0x48] sm:$0xf] %vm1552, %v1445
      %1572 = vst.msk [vmem:[#allocation2 + $0x4c] sm:$0xf] %vm1552, %v1447
      %1573 = vst.msk [vmem:[#allocation2 + $0x50] sm:$0xf] %vm1552, %v1449
      %1574 = vst.msk [vmem:[#allocation2 + $0x54] sm:$0xf] %vm1552, %v1451
      %1575 = vst.msk [vmem:[#allocation2 + $0x58] sm:$0xf] %vm1552, %v1453
      %1576 = vst.msk [vmem:[#allocation2 + $0x5c] sm:$0xf] %vm1552, %v1455
      %1577 = vst.msk [vmem:[#allocation2 + $0x60] sm:$0xf] %vm1552, %v1457
      %1578 = vst.msk [vmem:[#allocation2 + $0x64] sm:$0xf] %vm1552, %v1459
      %1579 = vst.msk [vmem:[#allocation2 + $0x68] sm:$0xf] %vm1552, %v1461
      %1580 = vst.msk [vmem:[#allocation2 + $0x6c] sm:$0xf] %vm1552, %v1463
      %1581 = vst.msk [vmem:[#allocation2 + $0x70] sm:$0xf] %vm1552, %v1465
      %1582 = vst.msk [vmem:[#allocation2 + $0x74] sm:$0xf] %vm1552, %v1467
      %1583 = vst.msk [vmem:[#allocation2 + $0x78] sm:$0xf] %vm1552, %v1469
      %1584 = vst.msk [vmem:[#allocation2 + $0x7c] sm:$0xf] %vm1552, %v1471
      %1585 = vst.msk [vmem:[#allocation2 + $0x80] sm:$0xf] %vm1552, %v1473
      %1586 = vst.msk [vmem:[#allocation2 + $0x84] sm:$0xf] %vm1552, %v1475
      %1587 = vst.msk [vmem:[#allocation2 + $0x88] sm:$0xf] %vm1552, %v1477
      %1588 = vst.msk [vmem:[#allocation2 + $0x8c] sm:$0xf] %vm1552, %v1479
      %1589 = vst.msk [vmem:[#allocation2 + $0x90] sm:$0xf] %vm1552, %v1481
      %1590 = vst.msk [vmem:[#allocation2 + $0x94] sm:$0xf] %vm1552, %v1483
      %1591 = vst.msk [vmem:[#allocation2 + $0x98] sm:$0xf] %vm1552, %v1485
      %1592 = vst.msk [vmem:[#allocation2 + $0x9c] sm:$0xf] %vm1552, %v1487
      %1593 = vst.msk [vmem:[#allocation2 + $0xa0] sm:$0xf] %vm1552, %v1489
      %1594 = vst.msk [vmem:[#allocation2 + $0xa4] sm:$0xf] %vm1552, %v1491
      %1595 = vst.msk [vmem:[#allocation2 + $0xa8] sm:$0xf] %vm1552, %v1493
      %1596 = vst.msk [vmem:[#allocation2 + $0xac] sm:$0xf] %vm1552, %v1495
      %1597 = vst.msk [vmem:[#allocation2 + $0xb0] sm:$0xf] %vm1552, %v1497
      %1598 = vst.msk [vmem:[#allocation2 + $0xb4] sm:$0xf] %vm1552, %v1499
      %1599 = vst.msk [vmem:[#allocation2 + $0xb8] sm:$0xf] %vm1552, %v1501
      %1600 = vst.msk [vmem:[#allocation2 + $0xbc] sm:$0xf] %vm1552, %v1503
      %v1601 = vshrl.u32 %v280, 16
      %v1603 = vrot.slane %v1601, 4
      %v1604 = vor.u32 %v1603, %v821
      %v1605 = vrot.slane %v1604, 4
      %v1607 = vshll.u32 %v281, 16
      %v1609 = vrot.slane %v1607, 5
      %v1610 = vsel %vm338, %v1605, %v1609
      %v1611 = vshrl.u32 %v281, 16
      %v1613 = vrot.slane %v1611, 4
      %v1614 = vor.u32 %v1613, %v1609
      %v1615 = vrot.slane %v1614, 4
      %v1617 = vshll.u32 %v282, 16
      %v1619 = vrot.slane %v1617, 5
      %v1620 = vsel %vm338, %v1615, %v1619
      %v1621 = vshrl.u32 %v282, 16
      %v1623 = vrot.slane %v1621, 4
      %v1624 = vor.u32 %v1623, %v1619
      %v1625 = vrot.slane %v1624, 4
      %v1627 = vshll.u32 %v283, 16
      %v1629 = vrot.slane %v1627, 5
      %v1630 = vsel %vm338, %v1625, %v1629
      %1631 = vrot.lane.b32.xlu0 %v382, 16
      %v1632 = vpop.permute.xlu0 %1631
      %1633 = vrot.lane.b32.xlu0 %v392, 16
      %v1634 = vpop.permute.xlu0 %1633
      %1635 = vrot.lane.b32.xlu0 %v402, 16
      %v1636 = vpop.permute.xlu0 %1635
      %1637 = vrot.lane.b32.xlu0 %v412, 16
      %v1638 = vpop.permute.xlu0 %1637
      %1639 = vrot.lane.b32.xlu0 %v422, 16
      %v1640 = vpop.permute.xlu0 %1639
      %1641 = vrot.lane.b32.xlu0 %v432, 16
      %v1642 = vpop.permute.xlu0 %1641
      %1643 = vrot.lane.b32.xlu0 %v442, 16
      %v1644 = vpop.permute.xlu0 %1643
      %1645 = vrot.lane.b32.xlu0 %v452, 16
      %v1646 = vpop.permute.xlu0 %1645
      %1647 = vrot.lane.b32.xlu0 %v462, 16
      %v1648 = vpop.permute.xlu0 %1647
      %1649 = vrot.lane.b32.xlu0 %v472, 16
      %v1650 = vpop.permute.xlu0 %1649
      %1651 = vrot.lane.b32.xlu0 %v482, 16
      %v1652 = vpop.permute.xlu0 %1651
      %1653 = vrot.lane.b32.xlu0 %v492, 16
      %v1654 = vpop.permute.xlu0 %1653
      %1655 = vrot.lane.b32.xlu0 %v502, 16
      %v1656 = vpop.permute.xlu0 %1655
      %1657 = vrot.lane.b32.xlu0 %v512, 16
      %v1658 = vpop.permute.xlu0 %1657
      %1659 = vrot.lane.b32.xlu0 %v522, 16
      %v1660 = vpop.permute.xlu0 %1659
      %1661 = vrot.lane.b32.xlu0 %v532, 16
      %v1662 = vpop.permute.xlu0 %1661
      %1663 = vrot.lane.b32.xlu0 %v542, 16
      %v1664 = vpop.permute.xlu0 %1663
      %1665 = vrot.lane.b32.xlu0 %v552, 16
      %v1666 = vpop.permute.xlu0 %1665
      %1667 = vrot.lane.b32.xlu0 %v562, 16
      %v1668 = vpop.permute.xlu0 %1667
      %1669 = vrot.lane.b32.xlu0 %v572, 16
      %v1670 = vpop.permute.xlu0 %1669
      %1671 = vrot.lane.b32.xlu0 %v582, 16
      %v1672 = vpop.permute.xlu0 %1671
      %1673 = vrot.lane.b32.xlu0 %v592, 16
      %v1674 = vpop.permute.xlu0 %1673
      %1675 = vrot.lane.b32.xlu0 %v602, 16
      %v1676 = vpop.permute.xlu0 %1675
      %1677 = vrot.lane.b32.xlu0 %v612, 16
      %v1678 = vpop.permute.xlu0 %1677
      %1679 = vrot.lane.b32.xlu0 %v622, 16
      %v1680 = vpop.permute.xlu0 %1679
      %1681 = vrot.lane.b32.xlu0 %v632, 16
      %v1682 = vpop.permute.xlu0 %1681
      %1683 = vrot.lane.b32.xlu0 %v642, 16
      %v1684 = vpop.permute.xlu0 %1683
      %1685 = vrot.lane.b32.xlu0 %v652, 16
      %v1686 = vpop.permute.xlu0 %1685
      %1687 = vrot.lane.b32.xlu0 %v662, 16
      %v1688 = vpop.permute.xlu0 %1687
      %1689 = vrot.lane.b32.xlu0 %v672, 16
      %v1690 = vpop.permute.xlu0 %1689
      %1691 = vrot.lane.b32.xlu0 %v682, 16
      %v1692 = vpop.permute.xlu0 %1691
      %1693 = vrot.lane.b32.xlu0 %v692, 16
      %v1694 = vpop.permute.xlu0 %1693
      %1695 = vrot.lane.b32.xlu0 %v702, 16
      %v1696 = vpop.permute.xlu0 %1695
      %1697 = vrot.lane.b32.xlu0 %v712, 16
      %v1698 = vpop.permute.xlu0 %1697
      %1699 = vrot.lane.b32.xlu0 %v722, 16
      %v1700 = vpop.permute.xlu0 %1699
      %1701 = vrot.lane.b32.xlu0 %v732, 16
      %v1702 = vpop.permute.xlu0 %1701
      %1703 = vrot.lane.b32.xlu0 %v742, 16
      %v1704 = vpop.permute.xlu0 %1703
      %1705 = vrot.lane.b32.xlu0 %v752, 16
      %v1706 = vpop.permute.xlu0 %1705
      %1707 = vrot.lane.b32.xlu0 %v762, 16
      %v1708 = vpop.permute.xlu0 %1707
      %1709 = vrot.lane.b32.xlu0 %v772, 16
      %v1710 = vpop.permute.xlu0 %1709
      %1711 = vrot.lane.b32.xlu0 %v782, 16
      %v1712 = vpop.permute.xlu0 %1711
      %1713 = vrot.lane.b32.xlu0 %v792, 16
      %v1714 = vpop.permute.xlu0 %1713
      %1715 = vrot.lane.b32.xlu0 %v802, 16
      %v1716 = vpop.permute.xlu0 %1715
      %1717 = vrot.lane.b32.xlu0 %v812, 16
      %v1718 = vpop.permute.xlu0 %1717
      %1719 = vrot.lane.b32.xlu0 %v822, 16
      %v1720 = vpop.permute.xlu0 %1719
      %1721 = vrot.lane.b32.xlu0 %v1610, 16
      %v1722 = vpop.permute.xlu0 %1721
      %1723 = vrot.lane.b32.xlu0 %v1620, 16
      %v1724 = vpop.permute.xlu0 %1723
      %1725 = vrot.lane.b32.xlu0 %v1630, 16
      %v1726 = vpop.permute.xlu0 %1725
      %vm1775 = vcmask 158848
      %1776 = vst.msk [vmem:[#allocation2] sm:$0xf] %vm1775, %v1632
      %1777 = vst.msk [vmem:[#allocation2 + $0x4] sm:$0xf] %vm1775, %v1634
      %1778 = vst.msk [vmem:[#allocation2 + $0x8] sm:$0xf] %vm1775, %v1636
      %1779 = vst.msk [vmem:[#allocation2 + $0xc] sm:$0xf] %vm1775, %v1638
      %1780 = vst.msk [vmem:[#allocation2 + $0x10] sm:$0xf] %vm1775, %v1640
      %1781 = vst.msk [vmem:[#allocation2 + $0x14] sm:$0xf] %vm1775, %v1642
      %1782 = vst.msk [vmem:[#allocation2 + $0x18] sm:$0xf] %vm1775, %v1644
      %1783 = vst.msk [vmem:[#allocation2 + $0x1c] sm:$0xf] %vm1775, %v1646
      %1784 = vst.msk [vmem:[#allocation2 + $0x20] sm:$0xf] %vm1775, %v1648
      %1785 = vst.msk [vmem:[#allocation2 + $0x24] sm:$0xf] %vm1775, %v1650
      %1786 = vst.msk [vmem:[#allocation2 + $0x28] sm:$0xf] %vm1775, %v1652
      %1787 = vst.msk [vmem:[#allocation2 + $0x2c] sm:$0xf] %vm1775, %v1654
      %1788 = vst.msk [vmem:[#allocation2 + $0x30] sm:$0xf] %vm1775, %v1656
      %1789 = vst.msk [vmem:[#allocation2 + $0x34] sm:$0xf] %vm1775, %v1658
      %1790 = vst.msk [vmem:[#allocation2 + $0x38] sm:$0xf] %vm1775, %v1660
      %1791 = vst.msk [vmem:[#allocation2 + $0x3c] sm:$0xf] %vm1775, %v1662
      %1792 = vst.msk [vmem:[#allocation2 + $0x40] sm:$0xf] %vm1775, %v1664
      %1793 = vst.msk [vmem:[#allocation2 + $0x44] sm:$0xf] %vm1775, %v1666
      %1794 = vst.msk [vmem:[#allocation2 + $0x48] sm:$0xf] %vm1775, %v1668
      %1795 = vst.msk [vmem:[#allocation2 + $0x4c] sm:$0xf] %vm1775, %v1670
      %1796 = vst.msk [vmem:[#allocation2 + $0x50] sm:$0xf] %vm1775, %v1672
      %1797 = vst.msk [vmem:[#allocation2 + $0x54] sm:$0xf] %vm1775, %v1674
      %1798 = vst.msk [vmem:[#allocation2 + $0x58] sm:$0xf] %vm1775, %v1676
      %1799 = vst.msk [vmem:[#allocation2 + $0x5c] sm:$0xf] %vm1775, %v1678
      %1800 = vst.msk [vmem:[#allocation2 + $0x60] sm:$0xf] %vm1775, %v1680
      %1801 = vst.msk [vmem:[#allocation2 + $0x64] sm:$0xf] %vm1775, %v1682
      %1802 = vst.msk [vmem:[#allocation2 + $0x68] sm:$0xf] %vm1775, %v1684
      %1803 = vst.msk [vmem:[#allocation2 + $0x6c] sm:$0xf] %vm1775, %v1686
      %1804 = vst.msk [vmem:[#allocation2 + $0x70] sm:$0xf] %vm1775, %v1688
      %1805 = vst.msk [vmem:[#allocation2 + $0x74] sm:$0xf] %vm1775, %v1690
      %1806 = vst.msk [vmem:[#allocation2 + $0x78] sm:$0xf] %vm1775, %v1692
      %1807 = vst.msk [vmem:[#allocation2 + $0x7c] sm:$0xf] %vm1775, %v1694
      %1808 = vst.msk [vmem:[#allocation2 + $0x80] sm:$0xf] %vm1775, %v1696
      %1809 = vst.msk [vmem:[#allocation2 + $0x84] sm:$0xf] %vm1775, %v1698
      %1810 = vst.msk [vmem:[#allocation2 + $0x88] sm:$0xf] %vm1775, %v1700
      %1811 = vst.msk [vmem:[#allocation2 + $0x8c] sm:$0xf] %vm1775, %v1702
      %1812 = vst.msk [vmem:[#allocation2 + $0x90] sm:$0xf] %vm1775, %v1704
      %1813 = vst.msk [vmem:[#allocation2 + $0x94] sm:$0xf] %vm1775, %v1706
      %1814 = vst.msk [vmem:[#allocation2 + $0x98] sm:$0xf] %vm1775, %v1708
      %1815 = vst.msk [vmem:[#allocation2 + $0x9c] sm:$0xf] %vm1775, %v1710
      %1816 = vst.msk [vmem:[#allocation2 + $0xa0] sm:$0xf] %vm1775, %v1712
      %1817 = vst.msk [vmem:[#allocation2 + $0xa4] sm:$0xf] %vm1775, %v1714
      %1818 = vst.msk [vmem:[#allocation2 + $0xa8] sm:$0xf] %vm1775, %v1716
      %1819 = vst.msk [vmem:[#allocation2 + $0xac] sm:$0xf] %vm1775, %v1718
      %1820 = vst.msk [vmem:[#allocation2 + $0xb0] sm:$0xf] %vm1775, %v1720
      %1821 = vst.msk [vmem:[#allocation2 + $0xb4] sm:$0xf] %vm1775, %v1722
      %1822 = vst.msk [vmem:[#allocation2 + $0xb8] sm:$0xf] %vm1775, %v1724
      %1823 = vst.msk [vmem:[#allocation2 + $0xbc] sm:$0xf] %vm1775, %v1726
      %v1825 = vrot.slane %v1211, 4
      %v1826 = vrot.slane %v281, 5
      %v1827 = vsel %vm1067, %v1825, %v1826
      %v1828 = vrot.slane %v1826, 4
      %v1829 = vrot.slane %v282, 5
      %v1830 = vsel %vm1067, %v1828, %v1829
      %v1831 = vrot.slane %v1829, 4
      %v1832 = vrot.slane %v283, 5
      %v1833 = vsel %vm1067, %v1831, %v1832
      %1834 = vrot.lane.b32.xlu0 %v1080, 20
      %v1835 = vpop.permute.xlu0 %1834
      %1836 = vrot.lane.b32.xlu0 %v1083, 20
      %v1837 = vpop.permute.xlu0 %1836
      %1838 = vrot.lane.b32.xlu0 %v1086, 20
      %v1839 = vpop.permute.xlu0 %1838
      %1840 = vrot.lane.b32.xlu0 %v1089, 20
      %v1841 = vpop.permute.xlu0 %1840
      %1842 = vrot.lane.b32.xlu0 %v1092, 20
      %v1843 = vpop.permute.xlu0 %1842
      %1844 = vrot.lane.b32.xlu0 %v1095, 20
      %v1845 = vpop.permute.xlu0 %1844
      %1846 = vrot.lane.b32.xlu0 %v1098, 20
      %v1847 = vpop.permute.xlu0 %1846
      %1848 = vrot.lane.b32.xlu0 %v1101, 20
      %v1849 = vpop.permute.xlu0 %1848
      %1850 = vrot.lane.b32.xlu0 %v1104, 20
      %v1851 = vpop.permute.xlu0 %1850
      %1852 = vrot.lane.b32.xlu0 %v1107, 20
      %v1853 = vpop.permute.xlu0 %1852
      %1854 = vrot.lane.b32.xlu0 %v1110, 20
      %v1855 = vpop.permute.xlu0 %1854
      %1856 = vrot.lane.b32.xlu0 %v1113, 20
      %v1857 = vpop.permute.xlu0 %1856
      %1858 = vrot.lane.b32.xlu0 %v1116, 20
      %v1859 = vpop.permute.xlu0 %1858
      %1860 = vrot.lane.b32.xlu0 %v1119, 20
      %v1861 = vpop.permute.xlu0 %1860
      %1862 = vrot.lane.b32.xlu0 %v1122, 20
      %v1863 = vpop.permute.xlu0 %1862
      %1864 = vrot.lane.b32.xlu0 %v1125, 20
      %v1865 = vpop.permute.xlu0 %1864
      %1866 = vrot.lane.b32.xlu0 %v1128, 20
      %v1867 = vpop.permute.xlu0 %1866
      %1868 = vrot.lane.b32.xlu0 %v1131, 20
      %v1869 = vpop.permute.xlu0 %1868
      %1870 = vrot.lane.b32.xlu0 %v1134, 20
      %v1871 = vpop.permute.xlu0 %1870
      %1872 = vrot.lane.b32.xlu0 %v1137, 20
      %v1873 = vpop.permute.xlu0 %1872
      %1874 = vrot.lane.b32.xlu0 %v1140, 20
      %v1875 = vpop.permute.xlu0 %1874
      %1876 = vrot.lane.b32.xlu0 %v1143, 20
      %v1877 = vpop.permute.xlu0 %1876
      %1878 = vrot.lane.b32.xlu0 %v1146, 20
      %v1879 = vpop.permute.xlu0 %1878
      %1880 = vrot.lane.b32.xlu0 %v1149, 20
      %v1881 = vpop.permute.xlu0 %1880
      %1882 = vrot.lane.b32.xlu0 %v1152, 20
      %v1883 = vpop.permute.xlu0 %1882
      %1884 = vrot.lane.b32.xlu0 %v1155, 20
      %v1885 = vpop.permute.xlu0 %1884
      %1886 = vrot.lane.b32.xlu0 %v1158, 20
      %v1887 = vpop.permute.xlu0 %1886
      %1888 = vrot.lane.b32.xlu0 %v1161, 20
      %v1889 = vpop.permute.xlu0 %1888
      %1890 = vrot.lane.b32.xlu0 %v1164, 20
      %v1891 = vpop.permute.xlu0 %1890
      %1892 = vrot.lane.b32.xlu0 %v1167, 20
      %v1893 = vpop.permute.xlu0 %1892
      %1894 = vrot.lane.b32.xlu0 %v1170, 20
      %v1895 = vpop.permute.xlu0 %1894
      %1896 = vrot.lane.b32.xlu0 %v1173, 20
      %v1897 = vpop.permute.xlu0 %1896
      %1898 = vrot.lane.b32.xlu0 %v1176, 20
      %v1899 = vpop.permute.xlu0 %1898
      %1900 = vrot.lane.b32.xlu0 %v1179, 20
      %v1901 = vpop.permute.xlu0 %1900
      %1902 = vrot.lane.b32.xlu0 %v1182, 20
      %v1903 = vpop.permute.xlu0 %1902
      %1904 = vrot.lane.b32.xlu0 %v1185, 20
      %v1905 = vpop.permute.xlu0 %1904
      %1906 = vrot.lane.b32.xlu0 %v1188, 20
      %v1907 = vpop.permute.xlu0 %1906
      %1908 = vrot.lane.b32.xlu0 %v1191, 20
      %v1909 = vpop.permute.xlu0 %1908
      %1910 = vrot.lane.b32.xlu0 %v1194, 20
      %v1911 = vpop.permute.xlu0 %1910
      %1912 = vrot.lane.b32.xlu0 %v1197, 20
      %v1913 = vpop.permute.xlu0 %1912
      %1914 = vrot.lane.b32.xlu0 %v1200, 20
      %v1915 = vpop.permute.xlu0 %1914
      %1916 = vrot.lane.b32.xlu0 %v1203, 20
      %v1917 = vpop.permute.xlu0 %1916
      %1918 = vrot.lane.b32.xlu0 %v1206, 20
      %v1919 = vpop.permute.xlu0 %1918
      %1920 = vrot.lane.b32.xlu0 %v1209, 20
      %v1921 = vpop.permute.xlu0 %1920
      %1922 = vrot.lane.b32.xlu0 %v1212, 20
      %v1923 = vpop.permute.xlu0 %1922
      %1924 = vrot.lane.b32.xlu0 %v1827, 20
      %v1925 = vpop.permute.xlu0 %1924
      %1926 = vrot.lane.b32.xlu0 %v1830, 20
      %v1927 = vpop.permute.xlu0 %1926
      %1928 = vrot.lane.b32.xlu0 %v1833, 20
      %v1929 = vpop.permute.xlu0 %1928
      %vm1978 = vcmask 191648
      %1979 = vst.msk [vmem:[#allocation2] sm:$0xf] %vm1978, %v1835
      %1980 = vst.msk [vmem:[#allocation2 + $0x4] sm:$0xf] %vm1978, %v1837
      %1981 = vst.msk [vmem:[#allocation2 + $0x8] sm:$0xf] %vm1978, %v1839
      %1982 = vst.msk [vmem:[#allocation2 + $0xc] sm:$0xf] %vm1978, %v1841
      %1983 = vst.msk [vmem:[#allocation2 + $0x10] sm:$0xf] %vm1978, %v1843
      %1984 = vst.msk [vmem:[#allocation2 + $0x14] sm:$0xf] %vm1978, %v1845
      %1985 = vst.msk [vmem:[#allocation2 + $0x18] sm:$0xf] %vm1978, %v1847
      %1986 = vst.msk [vmem:[#allocation2 + $0x1c] sm:$0xf] %vm1978, %v1849
      %1987 = vst.msk [vmem:[#allocation2 + $0x20] sm:$0xf] %vm1978, %v1851
      %1988 = vst.msk [vmem:[#allocation2 + $0x24] sm:$0xf] %vm1978, %v1853
      %1989 = vst.msk [vmem:[#allocation2 + $0x28] sm:$0xf] %vm1978, %v1855
      %1990 = vst.msk [vmem:[#allocation2 + $0x2c] sm:$0xf] %vm1978, %v1857
      %1991 = vst.msk [vmem:[#allocation2 + $0x30] sm:$0xf] %vm1978, %v1859
      %1992 = vst.msk [vmem:[#allocation2 + $0x34] sm:$0xf] %vm1978, %v1861
      %1993 = vst.msk [vmem:[#allocation2 + $0x38] sm:$0xf] %vm1978, %v1863
      %1994 = vst.msk [vmem:[#allocation2 + $0x3c] sm:$0xf] %vm1978, %v1865
      %1995 = vst.msk [vmem:[#allocation2 + $0x40] sm:$0xf] %vm1978, %v1867
      %1996 = vst.msk [vmem:[#allocation2 + $0x44] sm:$0xf] %vm1978, %v1869
      %1997 = vst.msk [vmem:[#allocation2 + $0x48] sm:$0xf] %vm1978, %v1871
      %1998 = vst.msk [vmem:[#allocation2 + $0x4c] sm:$0xf] %vm1978, %v1873
      %1999 = vst.msk [vmem:[#allocation2 + $0x50] sm:$0xf] %vm1978, %v1875
      %2000 = vst.msk [vmem:[#allocation2 + $0x54] sm:$0xf] %vm1978, %v1877
      %2001 = vst.msk [vmem:[#allocation2 + $0x58] sm:$0xf] %vm1978, %v1879
      %2002 = vst.msk [vmem:[#allocation2 + $0x5c] sm:$0xf] %vm1978, %v1881
      %2003 = vst.msk [vmem:[#allocation2 + $0x60] sm:$0xf] %vm1978, %v1883
      %2004 = vst.msk [vmem:[#allocation2 + $0x64] sm:$0xf] %vm1978, %v1885
      %2005 = vst.msk [vmem:[#allocation2 + $0x68] sm:$0xf] %vm1978, %v1887
      %2006 = vst.msk [vmem:[#allocation2 + $0x6c] sm:$0xf] %vm1978, %v1889
      %2007 = vst.msk [vmem:[#allocation2 + $0x70] sm:$0xf] %vm1978, %v1891
      %2008 = vst.msk [vmem:[#allocation2 + $0x74] sm:$0xf] %vm1978, %v1893
      %2009 = vst.msk [vmem:[#allocation2 + $0x78] sm:$0xf] %vm1978, %v1895
      %2010 = vst.msk [vmem:[#allocation2 + $0x7c] sm:$0xf] %vm1978, %v1897
      %2011 = vst.msk [vmem:[#allocation2 + $0x80] sm:$0xf] %vm1978, %v1899
      %2012 = vst.msk [vmem:[#allocation2 + $0x84] sm:$0xf] %vm1978, %v1901
      %2013 = vst.msk [vmem:[#allocation2 + $0x88] sm:$0xf] %vm1978, %v1903
      %2014 = vst.msk [vmem:[#allocation2 + $0x8c] sm:$0xf] %vm1978, %v1905
      %2015 = vst.msk [vmem:[#allocation2 + $0x90] sm:$0xf] %vm1978, %v1907
      %2016 = vst.msk [vmem:[#allocation2 + $0x94] sm:$0xf] %vm1978, %v1909
      %2017 = vst.msk [vmem:[#allocation2 + $0x98] sm:$0xf] %vm1978, %v1911
      %2018 = vst.msk [vmem:[#allocation2 + $0x9c] sm:$0xf] %vm1978, %v1913
      %2019 = vst.msk [vmem:[#allocation2 + $0xa0] sm:$0xf] %vm1978, %v1915
      %2020 = vst.msk [vmem:[#allocation2 + $0xa4] sm:$0xf] %vm1978, %v1917
      %2021 = vst.msk [vmem:[#allocation2 + $0xa8] sm:$0xf] %vm1978, %v1919
      %2022 = vst.msk [vmem:[#allocation2 + $0xac] sm:$0xf] %vm1978, %v1921
      %2023 = vst.msk [vmem:[#allocation2 + $0xb0] sm:$0xf] %vm1978, %v1923
      %2024 = vst.msk [vmem:[#allocation2 + $0xb4] sm:$0xf] %vm1978, %v1925
      %2025 = vst.msk [vmem:[#allocation2 + $0xb8] sm:$0xf] %vm1978, %v1927
      %2026 = vst.msk [vmem:[#allocation2 + $0xbc] sm:$0xf] %vm1978, %v1929
      %2029 = vrot.lane.b32.xlu0 %v238, 24
      %v2030 = vpop.permute.xlu0 %2029
      %2031 = vrot.lane.b32.xlu0 %v239, 24
      %v2032 = vpop.permute.xlu0 %2031
      %2033 = vrot.lane.b32.xlu0 %v240, 24
      %v2034 = vpop.permute.xlu0 %2033
      %2035 = vrot.lane.b32.xlu0 %v241, 24
      %v2036 = vpop.permute.xlu0 %2035
      %2037 = vrot.lane.b32.xlu0 %v242, 24
      %v2038 = vpop.permute.xlu0 %2037
      %2039 = vrot.lane.b32.xlu0 %v243, 24
      %v2040 = vpop.permute.xlu0 %2039
      %2041 = vrot.lane.b32.xlu0 %v244, 24
      %v2042 = vpop.permute.xlu0 %2041
      %2043 = vrot.lane.b32.xlu0 %v245, 24
      %v2044 = vpop.permute.xlu0 %2043
      %2045 = vrot.lane.b32.xlu0 %v246, 24
      %v2046 = vpop.permute.xlu0 %2045
      %2047 = vrot.lane.b32.xlu0 %v247, 24
      %v2048 = vpop.permute.xlu0 %2047
      %2049 = vrot.lane.b32.xlu0 %v248, 24
      %v2050 = vpop.permute.xlu0 %2049
      %2051 = vrot.lane.b32.xlu0 %v249, 24
      %v2052 = vpop.permute.xlu0 %2051
      %2053 = vrot.lane.b32.xlu0 %v250, 24
      %v2054 = vpop.permute.xlu0 %2053
      %2055 = vrot.lane.b32.xlu0 %v251, 24
      %v2056 = vpop.permute.xlu0 %2055
      %2057 = vrot.lane.b32.xlu0 %v252, 24
      %v2058 = vpop.permute.xlu0 %2057
      %2059 = vrot.lane.b32.xlu0 %v253, 24
      %v2060 = vpop.permute.xlu0 %2059
      %2061 = vrot.lane.b32.xlu0 %v254, 24
      %v2062 = vpop.permute.xlu0 %2061
      %2063 = vrot.lane.b32.xlu0 %v255, 24
      %v2064 = vpop.permute.xlu0 %2063
      %2065 = vrot.lane.b32.xlu0 %v256, 24
      %v2066 = vpop.permute.xlu0 %2065
      %2067 = vrot.lane.b32.xlu0 %v257, 24
      %v2068 = vpop.permute.xlu0 %2067
      %2069 = vrot.lane.b32.xlu0 %v258, 24
      %v2070 = vpop.permute.xlu0 %2069
      %2071 = vrot.lane.b32.xlu0 %v259, 24
      %v2072 = vpop.permute.xlu0 %2071
      %2073 = vrot.lane.b32.xlu0 %v260, 24
      %v2074 = vpop.permute.xlu0 %2073
      %2075 = vrot.lane.b32.xlu0 %v261, 24
      %v2076 = vpop.permute.xlu0 %2075
      %2077 = vrot.lane.b32.xlu0 %v262, 24
      %v2078 = vpop.permute.xlu0 %2077
      %2079 = vrot.lane.b32.xlu0 %v263, 24
      %v2080 = vpop.permute.xlu0 %2079
      %2081 = vrot.lane.b32.xlu0 %v264, 24
      %v2082 = vpop.permute.xlu0 %2081
      %2083 = vrot.lane.b32.xlu0 %v265, 24
      %v2084 = vpop.permute.xlu0 %2083
      %2085 = vrot.lane.b32.xlu0 %v266, 24
      %v2086 = vpop.permute.xlu0 %2085
      %2087 = vrot.lane.b32.xlu0 %v267, 24
      %v2088 = vpop.permute.xlu0 %2087
      %2089 = vrot.lane.b32.xlu0 %v268, 24
      %v2090 = vpop.permute.xlu0 %2089
      %2091 = vrot.lane.b32.xlu0 %v269, 24
      %v2092 = vpop.permute.xlu0 %2091
      %2093 = vrot.lane.b32.xlu0 %v270, 24
      %v2094 = vpop.permute.xlu0 %2093
      %2095 = vrot.lane.b32.xlu0 %v271, 24
      %v2096 = vpop.permute.xlu0 %2095
      %2097 = vrot.lane.b32.xlu0 %v272, 24
      %v2098 = vpop.permute.xlu0 %2097
      %2099 = vrot.lane.b32.xlu0 %v273, 24
      %v2100 = vpop.permute.xlu0 %2099
      %2101 = vrot.lane.b32.xlu0 %v274, 24
      %v2102 = vpop.permute.xlu0 %2101
      %2103 = vrot.lane.b32.xlu0 %v275, 24
      %v2104 = vpop.permute.xlu0 %2103
      %2105 = vrot.lane.b32.xlu0 %v276, 24
      %v2106 = vpop.permute.xlu0 %2105
      %2107 = vrot.lane.b32.xlu0 %v277, 24
      %v2108 = vpop.permute.xlu0 %2107
      %2109 = vrot.lane.b32.xlu0 %v278, 24
      %v2110 = vpop.permute.xlu0 %2109
      %2111 = vrot.lane.b32.xlu0 %v279, 24
      %v2112 = vpop.permute.xlu0 %2111
      %2113 = vrot.lane.b32.xlu0 %v280, 24
      %v2114 = vpop.permute.xlu0 %2113
      %2115 = vrot.lane.b32.xlu0 %v281, 24
      %v2116 = vpop.permute.xlu0 %2115
      %2117 = vrot.lane.b32.xlu0 %v282, 24
      %v2118 = vpop.permute.xlu0 %2117
      %2119 = vrot.lane.b32.xlu0 %v283, 24
      %v2120 = vpop.permute.xlu0 %2119
      %2121 = vrot.lane.b32.xlu0 %v284, 24
      %v2122 = vpop.permute.xlu0 %2121
      %2123 = vrot.lane.b32.xlu0 %v285, 24
      %v2124 = vpop.permute.xlu0 %2123
      %vm2173 = vcmask 224448
      %2174 = vst.msk [vmem:[#allocation2] sm:$0xf] %vm2173, %v2030
      %2175 = vst.msk [vmem:[#allocation2 + $0x4] sm:$0xf] %vm2173, %v2032
      %2176 = vst.msk [vmem:[#allocation2 + $0x8] sm:$0xf] %vm2173, %v2034
      %2177 = vst.msk [vmem:[#allocation2 + $0xc] sm:$0xf] %vm2173, %v2036
      %2178 = vst.msk [vmem:[#allocation2 + $0x10] sm:$0xf] %vm2173, %v2038
      %2179 = vst.msk [vmem:[#allocation2 + $0x14] sm:$0xf] %vm2173, %v2040
      %2180 = vst.msk [vmem:[#allocation2 + $0x18] sm:$0xf] %vm2173, %v2042
      %2181 = vst.msk [vmem:[#allocation2 + $0x1c] sm:$0xf] %vm2173, %v2044
      %2182 = vst.msk [vmem:[#allocation2 + $0x20] sm:$0xf] %vm2173, %v2046
      %2183 = vst.msk [vmem:[#allocation2 + $0x24] sm:$0xf] %vm2173, %v2048
      %2184 = vst.msk [vmem:[#allocation2 + $0x28] sm:$0xf] %vm2173, %v2050
      %2185 = vst.msk [vmem:[#allocation2 + $0x2c] sm:$0xf] %vm2173, %v2052
      %2186 = vst.msk [vmem:[#allocation2 + $0x30] sm:$0xf] %vm2173, %v2054
      %2187 = vst.msk [vmem:[#allocation2 + $0x34] sm:$0xf] %vm2173, %v2056
      %2188 = vst.msk [vmem:[#allocation2 + $0x38] sm:$0xf] %vm2173, %v2058
      %2189 = vst.msk [vmem:[#allocation2 + $0x3c] sm:$0xf] %vm2173, %v2060
      %2190 = vst.msk [vmem:[#allocation2 + $0x40] sm:$0xf] %vm2173, %v2062
      %2191 = vst.msk [vmem:[#allocation2 + $0x44] sm:$0xf] %vm2173, %v2064
      %2192 = vst.msk [vmem:[#allocation2 + $0x48] sm:$0xf] %vm2173, %v2066
      %2193 = vst.msk [vmem:[#allocation2 + $0x4c] sm:$0xf] %vm2173, %v2068
      %2194 = vst.msk [vmem:[#allocation2 + $0x50] sm:$0xf] %vm2173, %v2070
      %2195 = vst.msk [vmem:[#allocation2 + $0x54] sm:$0xf] %vm2173, %v2072
      %2196 = vst.msk [vmem:[#allocation2 + $0x58] sm:$0xf] %vm2173, %v2074
      %2197 = vst.msk [vmem:[#allocation2 + $0x5c] sm:$0xf] %vm2173, %v2076
      %2198 = vst.msk [vmem:[#allocation2 + $0x60] sm:$0xf] %vm2173, %v2078
      %2199 = vst.msk [vmem:[#allocation2 + $0x64] sm:$0xf] %vm2173, %v2080
      %2200 = vst.msk [vmem:[#allocation2 + $0x68] sm:$0xf] %vm2173, %v2082
      %2201 = vst.msk [vmem:[#allocation2 + $0x6c] sm:$0xf] %vm2173, %v2084
      %2202 = vst.msk [vmem:[#allocation2 + $0x70] sm:$0xf] %vm2173, %v2086
      %2203 = vst.msk [vmem:[#allocation2 + $0x74] sm:$0xf] %vm2173, %v2088
      %2204 = vst.msk [vmem:[#allocation2 + $0x78] sm:$0xf] %vm2173, %v2090
      %2205 = vst.msk [vmem:[#allocation2 + $0x7c] sm:$0xf] %vm2173, %v2092
      %2206 = vst.msk [vmem:[#allocation2 + $0x80] sm:$0xf] %vm2173, %v2094
      %2207 = vst.msk [vmem:[#allocation2 + $0x84] sm:$0xf] %vm2173, %v2096
      %2208 = vst.msk [vmem:[#allocation2 + $0x88] sm:$0xf] %vm2173, %v2098
      %2209 = vst.msk [vmem:[#allocation2 + $0x8c] sm:$0xf] %vm2173, %v2100
      %2210 = vst.msk [vmem:[#allocation2 + $0x90] sm:$0xf] %vm2173, %v2102
      %2211 = vst.msk [vmem:[#allocation2 + $0x94] sm:$0xf] %vm2173, %v2104
      %2212 = vst.msk [vmem:[#allocation2 + $0x98] sm:$0xf] %vm2173, %v2106
      %2213 = vst.msk [vmem:[#allocation2 + $0x9c] sm:$0xf] %vm2173, %v2108
      %2214 = vst.msk [vmem:[#allocation2 + $0xa0] sm:$0xf] %vm2173, %v2110
      %2215 = vst.msk [vmem:[#allocation2 + $0xa4] sm:$0xf] %vm2173, %v2112
      %2216 = vst.msk [vmem:[#allocation2 + $0xa8] sm:$0xf] %vm2173, %v2114
      %2217 = vst.msk [vmem:[#allocation2 + $0xac] sm:$0xf] %vm2173, %v2116
      %2218 = vst.msk [vmem:[#allocation2 + $0xb0] sm:$0xf] %vm2173, %v2118
      %2219 = vst.msk [vmem:[#allocation2 + $0xb4] sm:$0xf] %vm2173, %v2120
      %2220 = vst.msk [vmem:[#allocation2 + $0xb8] sm:$0xf] %vm2173, %v2122
      %2221 = vst.msk [vmem:[#allocation2 + $0xbc] sm:$0xf] %vm2173, %v2124
      %v2222 = vshrl.u32 %v283, 16
      %v2224 = vrot.slane %v2222, 4
      %v2225 = vor.u32 %v2224, %v1629
      %v2226 = vrot.slane %v2225, 4
      %v2228 = vshll.u32 %v284, 16
      %v2230 = vrot.slane %v2228, 5
      %v2231 = vsel %vm338, %v2226, %v2230
      %v2232 = vshrl.u32 %v284, 16
      %v2234 = vrot.slane %v2232, 4
      %v2235 = vor.u32 %v2234, %v2230
      %v2236 = vrot.slane %v2235, 4
      %v2238 = vshll.u32 %v285, 16
      %v2240 = vrot.slane %v2238, 5
      %v2241 = vsel %vm338, %v2236, %v2240
      %v2242 = vshrl.u32 %v285, 16
      %v2244 = vrot.slane %v2242, 4
      %v2245 = vor.u32 %v2244, %v2240
      %v2246 = vrot.slane %v2245, 4
      %v2248 = vshll.u32 %v286, 16
      %v2250 = vrot.slane %v2248, 5
      %v2251 = vsel %vm338, %v2246, %v2250
      %2252 = vrot.lane.b32.xlu0 %v412, 28
      %v2253 = vpop.permute.xlu0 %2252
      %2254 = vrot.lane.b32.xlu0 %v422, 28
      %v2255 = vpop.permute.xlu0 %2254
      %2256 = vrot.lane.b32.xlu0 %v432, 28
      %v2257 = vpop.permute.xlu0 %2256
      %2258 = vrot.lane.b32.xlu0 %v442, 28
      %v2259 = vpop.permute.xlu0 %2258
      %2260 = vrot.lane.b32.xlu0 %v452, 28
      %v2261 = vpop.permute.xlu0 %2260
      %2262 = vrot.lane.b32.xlu0 %v462, 28
      %v2263 = vpop.permute.xlu0 %2262
      %2264 = vrot.lane.b32.xlu0 %v472, 28
      %v2265 = vpop.permute.xlu0 %2264
      %2266 = vrot.lane.b32.xlu0 %v482, 28
      %v2267 = vpop.permute.xlu0 %2266
      %2268 = vrot.lane.b32.xlu0 %v492, 28
      %v2269 = vpop.permute.xlu0 %2268
      %2270 = vrot.lane.b32.xlu0 %v502, 28
      %v2271 = vpop.permute.xlu0 %2270
      %2272 = vrot.lane.b32.xlu0 %v512, 28
      %v2273 = vpop.permute.xlu0 %2272
      %2274 = vrot.lane.b32.xlu0 %v522, 28
      %v2275 = vpop.permute.xlu0 %2274
      %2276 = vrot.lane.b32.xlu0 %v532, 28
      %v2277 = vpop.permute.xlu0 %2276
      %2278 = vrot.lane.b32.xlu0 %v542, 28
      %v2279 = vpop.permute.xlu0 %2278
      %2280 = vrot.lane.b32.xlu0 %v552, 28
      %v2281 = vpop.permute.xlu0 %2280
      %2282 = vrot.lane.b32.xlu0 %v562, 28
      %v2283 = vpop.permute.xlu0 %2282
      %2284 = vrot.lane.b32.xlu0 %v572, 28
      %v2285 = vpop.permute.xlu0 %2284
      %2286 = vrot.lane.b32.xlu0 %v582, 28
      %v2287 = vpop.permute.xlu0 %2286
      %2288 = vrot.lane.b32.xlu0 %v592, 28
      %v2289 = vpop.permute.xlu0 %2288
      %2290 = vrot.lane.b32.xlu0 %v602, 28
      %v2291 = vpop.permute.xlu0 %2290
      %2292 = vrot.lane.b32.xlu0 %v612, 28
      %v2293 = vpop.permute.xlu0 %2292
      %2294 = vrot.lane.b32.xlu0 %v622, 28
      %v2295 = vpop.permute.xlu0 %2294
      %2296 = vrot.lane.b32.xlu0 %v632, 28
      %v2297 = vpop.permute.xlu0 %2296
      %2298 = vrot.lane.b32.xlu0 %v642, 28
      %v2299 = vpop.permute.xlu0 %2298
      %2300 = vrot.lane.b32.xlu0 %v652, 28
      %v2301 = vpop.permute.xlu0 %2300
      %2302 = vrot.lane.b32.xlu0 %v662, 28
      %v2303 = vpop.permute.xlu0 %2302
      %2304 = vrot.lane.b32.xlu0 %v672, 28
      %v2305 = vpop.permute.xlu0 %2304
      %2306 = vrot.lane.b32.xlu0 %v682, 28
      %v2307 = vpop.permute.xlu0 %2306
      %2308 = vrot.lane.b32.xlu0 %v692, 28
      %v2309 = vpop.permute.xlu0 %2308
      %2310 = vrot.lane.b32.xlu0 %v702, 28
      %v2311 = vpop.permute.xlu0 %2310
      %2312 = vrot.lane.b32.xlu0 %v712, 28
      %v2313 = vpop.permute.xlu0 %2312
      %2314 = vrot.lane.b32.xlu0 %v722, 28
      %v2315 = vpop.permute.xlu0 %2314
      %2316 = vrot.lane.b32.xlu0 %v732, 28
      %v2317 = vpop.permute.xlu0 %2316
      %2318 = vrot.lane.b32.xlu0 %v742, 28
      %v2319 = vpop.permute.xlu0 %2318
      %2320 = vrot.lane.b32.xlu0 %v752, 28
      %v2321 = vpop.permute.xlu0 %2320
      %2322 = vrot.lane.b32.xlu0 %v762, 28
      %v2323 = vpop.permute.xlu0 %2322
      %2324 = vrot.lane.b32.xlu0 %v772, 28
      %v2325 = vpop.permute.xlu0 %2324
      %2326 = vrot.lane.b32.xlu0 %v782, 28
      %v2327 = vpop.permute.xlu0 %2326
      %2328 = vrot.lane.b32.xlu0 %v792, 28
      %v2329 = vpop.permute.xlu0 %2328
      %2330 = vrot.lane.b32.xlu0 %v802, 28
      %v2331 = vpop.permute.xlu0 %2330
      %2332 = vrot.lane.b32.xlu0 %v812, 28
      %v2333 = vpop.permute.xlu0 %2332
      %2334 = vrot.lane.b32.xlu0 %v822, 28
      %v2335 = vpop.permute.xlu0 %2334
      %2336 = vrot.lane.b32.xlu0 %v1610, 28
      %v2337 = vpop.permute.xlu0 %2336
      %2338 = vrot.lane.b32.xlu0 %v1620, 28
      %v2339 = vpop.permute.xlu0 %2338
      %2340 = vrot.lane.b32.xlu0 %v1630, 28
      %v2341 = vpop.permute.xlu0 %2340
      %2342 = vrot.lane.b32.xlu0 %v2231, 28
      %v2343 = vpop.permute.xlu0 %2342
      %2344 = vrot.lane.b32.xlu0 %v2241, 28
      %v2345 = vpop.permute.xlu0 %2344
      %2346 = vrot.lane.b32.xlu0 %v2251, 28
      %v2347 = vpop.permute.xlu0 %2346
      %vm2396 = vcmask 257248
      %2397 = vst.msk [vmem:[#allocation2] sm:$0xf] %vm2396, %v2253
      %2398 = vst.msk [vmem:[#allocation2 + $0x4] sm:$0xf] %vm2396, %v2255
      %2399 = vst.msk [vmem:[#allocation2 + $0x8] sm:$0xf] %vm2396, %v2257
      %2400 = vst.msk [vmem:[#allocation2 + $0xc] sm:$0xf] %vm2396, %v2259
      %2401 = vst.msk [vmem:[#allocation2 + $0x10] sm:$0xf] %vm2396, %v2261
      %2402 = vst.msk [vmem:[#allocation2 + $0x14] sm:$0xf] %vm2396, %v2263
      %2403 = vst.msk [vmem:[#allocation2 + $0x18] sm:$0xf] %vm2396, %v2265
      %2404 = vst.msk [vmem:[#allocation2 + $0x1c] sm:$0xf] %vm2396, %v2267
      %2405 = vst.msk [vmem:[#allocation2 + $0x20] sm:$0xf] %vm2396, %v2269
      %2406 = vst.msk [vmem:[#allocation2 + $0x24] sm:$0xf] %vm2396, %v2271
      %2407 = vst.msk [vmem:[#allocation2 + $0x28] sm:$0xf] %vm2396, %v2273
      %2408 = vst.msk [vmem:[#allocation2 + $0x2c] sm:$0xf] %vm2396, %v2275
      %2409 = vst.msk [vmem:[#allocation2 + $0x30] sm:$0xf] %vm2396, %v2277
      %2410 = vst.msk [vmem:[#allocation2 + $0x34] sm:$0xf] %vm2396, %v2279
      %2411 = vst.msk [vmem:[#allocation2 + $0x38] sm:$0xf] %vm2396, %v2281
      %2412 = vst.msk [vmem:[#allocation2 + $0x3c] sm:$0xf] %vm2396, %v2283
      %2413 = vst.msk [vmem:[#allocation2 + $0x40] sm:$0xf] %vm2396, %v2285
      %2414 = vst.msk [vmem:[#allocation2 + $0x44] sm:$0xf] %vm2396, %v2287
      %2415 = vst.msk [vmem:[#allocation2 + $0x48] sm:$0xf] %vm2396, %v2289
      %2416 = vst.msk [vmem:[#allocation2 + $0x4c] sm:$0xf] %vm2396, %v2291
      %2417 = vst.msk [vmem:[#allocation2 + $0x50] sm:$0xf] %vm2396, %v2293
      %2418 = vst.msk [vmem:[#allocation2 + $0x54] sm:$0xf] %vm2396, %v2295
      %2419 = vst.msk [vmem:[#allocation2 + $0x58] sm:$0xf] %vm2396, %v2297
      %2420 = vst.msk [vmem:[#allocation2 + $0x5c] sm:$0xf] %vm2396, %v2299
      %2421 = vst.msk [vmem:[#allocation2 + $0x60] sm:$0xf] %vm2396, %v2301
      %2422 = vst.msk [vmem:[#allocation2 + $0x64] sm:$0xf] %vm2396, %v2303
      %2423 = vst.msk [vmem:[#allocation2 + $0x68] sm:$0xf] %vm2396, %v2305
      %2424 = vst.msk [vmem:[#allocation2 + $0x6c] sm:$0xf] %vm2396, %v2307
      %2425 = vst.msk [vmem:[#allocation2 + $0x70] sm:$0xf] %vm2396, %v2309
      %2426 = vst.msk [vmem:[#allocation2 + $0x74] sm:$0xf] %vm2396, %v2311
      %2427 = vst.msk [vmem:[#allocation2 + $0x78] sm:$0xf] %vm2396, %v2313
      %2428 = vst.msk [vmem:[#allocation2 + $0x7c] sm:$0xf] %vm2396, %v2315
      %2429 = vst.msk [vmem:[#allocation2 + $0x80] sm:$0xf] %vm2396, %v2317
      %2430 = vst.msk [vmem:[#allocation2 + $0x84] sm:$0xf] %vm2396, %v2319
      %2431 = vst.msk [vmem:[#allocation2 + $0x88] sm:$0xf] %vm2396, %v2321
      %2432 = vst.msk [vmem:[#allocation2 + $0x8c] sm:$0xf] %vm2396, %v2323
      %2433 = vst.msk [vmem:[#allocation2 + $0x90] sm:$0xf] %vm2396, %v2325
      %2434 = vst.msk [vmem:[#allocation2 + $0x94] sm:$0xf] %vm2396, %v2327
      %2435 = vst.msk [vmem:[#allocation2 + $0x98] sm:$0xf] %vm2396, %v2329
      %2436 = vst.msk [vmem:[#allocation2 + $0x9c] sm:$0xf] %vm2396, %v2331
      %2437 = vst.msk [vmem:[#allocation2 + $0xa0] sm:$0xf] %vm2396, %v2333
      %2438 = vst.msk [vmem:[#allocation2 + $0xa4] sm:$0xf] %vm2396, %v2335
      %2439 = vst.msk [vmem:[#allocation2 + $0xa8] sm:$0xf] %vm2396, %v2337
      %2440 = vst.msk [vmem:[#allocation2 + $0xac] sm:$0xf] %vm2396, %v2339
      %2441 = vst.msk [vmem:[#allocation2 + $0xb0] sm:$0xf] %vm2396, %v2341
      %2442 = vst.msk [vmem:[#allocation2 + $0xb4] sm:$0xf] %vm2396, %v2343
      %2443 = vst.msk [vmem:[#allocation2 + $0xb8] sm:$0xf] %vm2396, %v2345
      %2444 = vst.msk [vmem:[#allocation2 + $0xbc] sm:$0xf] %vm2396, %v2347
      %v2446 = vrot.slane %v1832, 4
      %v2447 = vrot.slane %v284, 5
      %v2448 = vsel %vm1067, %v2446, %v2447
      %v2449 = vrot.slane %v2447, 4
      %v2450 = vrot.slane %v285, 5
      %v2451 = vsel %vm1067, %v2449, %v2450
      %v2452 = vrot.slane %v2450, 4
      %v2453 = vrot.slane %v286, 5
      %v2454 = vsel %vm1067, %v2452, %v2453
      %2455 = vrot.lane.b32.xlu0 %v1089, 32
      %v2456 = vpop.permute.xlu0 %2455
      %2457 = vrot.lane.b32.xlu0 %v1092, 32
      %v2458 = vpop.permute.xlu0 %2457
      %2459 = vrot.lane.b32.xlu0 %v1095, 32
      %v2460 = vpop.permute.xlu0 %2459
      %2461 = vrot.lane.b32.xlu0 %v1098, 32
      %v2462 = vpop.permute.xlu0 %2461
      %2463 = vrot.lane.b32.xlu0 %v1101, 32
      %v2464 = vpop.permute.xlu0 %2463
      %2465 = vrot.lane.b32.xlu0 %v1104, 32
      %v2466 = vpop.permute.xlu0 %2465
      %2467 = vrot.lane.b32.xlu0 %v1107, 32
      %v2468 = vpop.permute.xlu0 %2467
      %2469 = vrot.lane.b32.xlu0 %v1110, 32
      %v2470 = vpop.permute.xlu0 %2469
      %2471 = vrot.lane.b32.xlu0 %v1113, 32
      %v2472 = vpop.permute.xlu0 %2471
      %2473 = vrot.lane.b32.xlu0 %v1116, 32
      %v2474 = vpop.permute.xlu0 %2473
      %2475 = vrot.lane.b32.xlu0 %v1119, 32
      %v2476 = vpop.permute.xlu0 %2475
      %2477 = vrot.lane.b32.xlu0 %v1122, 32
      %v2478 = vpop.permute.xlu0 %2477
      %2479 = vrot.lane.b32.xlu0 %v1125, 32
      %v2480 = vpop.permute.xlu0 %2479
      %2481 = vrot.lane.b32.xlu0 %v1128, 32
      %v2482 = vpop.permute.xlu0 %2481
      %2483 = vrot.lane.b32.xlu0 %v1131, 32
      %v2484 = vpop.permute.xlu0 %2483
      %2485 = vrot.lane.b32.xlu0 %v1134, 32
      %v2486 = vpop.permute.xlu0 %2485
      %2487 = vrot.lane.b32.xlu0 %v1137, 32
      %v2488 = vpop.permute.xlu0 %2487
      %2489 = vrot.lane.b32.xlu0 %v1140, 32
      %v2490 = vpop.permute.xlu0 %2489
      %2491 = vrot.lane.b32.xlu0 %v1143, 32
      %v2492 = vpop.permute.xlu0 %2491
      %2493 = vrot.lane.b32.xlu0 %v1146, 32
      %v2494 = vpop.permute.xlu0 %2493
      %2495 = vrot.lane.b32.xlu0 %v1149, 32
      %v2496 = vpop.permute.xlu0 %2495
      %2497 = vrot.lane.b32.xlu0 %v1152, 32
      %v2498 = vpop.permute.xlu0 %2497
      %2499 = vrot.lane.b32.xlu0 %v1155, 32
      %v2500 = vpop.permute.xlu0 %2499
      %2501 = vrot.lane.b32.xlu0 %v1158, 32
      %v2502 = vpop.permute.xlu0 %2501
      %2503 = vrot.lane.b32.xlu0 %v1161, 32
      %v2504 = vpop.permute.xlu0 %2503
      %2505 = vrot.lane.b32.xlu0 %v1164, 32
      %v2506 = vpop.permute.xlu0 %2505
      %2507 = vrot.lane.b32.xlu0 %v1167, 32
      %v2508 = vpop.permute.xlu0 %2507
      %2509 = vrot.lane.b32.xlu0 %v1170, 32
      %v2510 = vpop.permute.xlu0 %2509
      %2511 = vrot.lane.b32.xlu0 %v1173, 32
      %v2512 = vpop.permute.xlu0 %2511
      %2513 = vrot.lane.b32.xlu0 %v1176, 32
      %v2514 = vpop.permute.xlu0 %2513
      %2515 = vrot.lane.b32.xlu0 %v1179, 32
      %v2516 = vpop.permute.xlu0 %2515
      %2517 = vrot.lane.b32.xlu0 %v1182, 32
      %v2518 = vpop.permute.xlu0 %2517
      %2519 = vrot.lane.b32.xlu0 %v1185, 32
      %v2520 = vpop.permute.xlu0 %2519
      %2521 = vrot.lane.b32.xlu0 %v1188, 32
      %v2522 = vpop.permute.xlu0 %2521
      %2523 = vrot.lane.b32.xlu0 %v1191, 32
      %v2524 = vpop.permute.xlu0 %2523
      %2525 = vrot.lane.b32.xlu0 %v1194, 32
      %v2526 = vpop.permute.xlu0 %2525
      %2527 = vrot.lane.b32.xlu0 %v1197, 32
      %v2528 = vpop.permute.xlu0 %2527
      %2529 = vrot.lane.b32.xlu0 %v1200, 32
      %v2530 = vpop.permute.xlu0 %2529
      %2531 = vrot.lane.b32.xlu0 %v1203, 32
      %v2532 = vpop.permute.xlu0 %2531
      %2533 = vrot.lane.b32.xlu0 %v1206, 32
      %v2534 = vpop.permute.xlu0 %2533
      %2535 = vrot.lane.b32.xlu0 %v1209, 32
      %v2536 = vpop.permute.xlu0 %2535
      %2537 = vrot.lane.b32.xlu0 %v1212, 32
      %v2538 = vpop.permute.xlu0 %2537
      %2539 = vrot.lane.b32.xlu0 %v1827, 32
      %v2540 = vpop.permute.xlu0 %2539
      %2541 = vrot.lane.b32.xlu0 %v1830, 32
      %v2542 = vpop.permute.xlu0 %2541
      %2543 = vrot.lane.b32.xlu0 %v1833, 32
      %v2544 = vpop.permute.xlu0 %2543
      %2545 = vrot.lane.b32.xlu0 %v2448, 32
      %v2546 = vpop.permute.xlu0 %2545
      %2547 = vrot.lane.b32.xlu0 %v2451, 32
      %v2548 = vpop.permute.xlu0 %2547
      %2549 = vrot.lane.b32.xlu0 %v2454, 32
      %v2550 = vpop.permute.xlu0 %2549
      %vm2599 = vcmask 290048
      %2600 = vst.msk [vmem:[#allocation2] sm:$0xf] %vm2599, %v2456
      %2601 = vst.msk [vmem:[#allocation2 + $0x4] sm:$0xf] %vm2599, %v2458
      %2602 = vst.msk [vmem:[#allocation2 + $0x8] sm:$0xf] %vm2599, %v2460
      %2603 = vst.msk [vmem:[#allocation2 + $0xc] sm:$0xf] %vm2599, %v2462
      %2604 = vst.msk [vmem:[#allocation2 + $0x10] sm:$0xf] %vm2599, %v2464
      %2605 = vst.msk [vmem:[#allocation2 + $0x14] sm:$0xf] %vm2599, %v2466
      %2606 = vst.msk [vmem:[#allocation2 + $0x18] sm:$0xf] %vm2599, %v2468
      %2607 = vst.msk [vmem:[#allocation2 + $0x1c] sm:$0xf] %vm2599, %v2470
      %2608 = vst.msk [vmem:[#allocation2 + $0x20] sm:$0xf] %vm2599, %v2472
      %2609 = vst.msk [vmem:[#allocation2 + $0x24] sm:$0xf] %vm2599, %v2474
      %2610 = vst.msk [vmem:[#allocation2 + $0x28] sm:$0xf] %vm2599, %v2476
      %2611 = vst.msk [vmem:[#allocation2 + $0x2c] sm:$0xf] %vm2599, %v2478
      %2612 = vst.msk [vmem:[#allocation2 + $0x30] sm:$0xf] %vm2599, %v2480
      %2613 = vst.msk [vmem:[#allocation2 + $0x34] sm:$0xf] %vm2599, %v2482
      %2614 = vst.msk [vmem:[#allocation2 + $0x38] sm:$0xf] %vm2599, %v2484
      %2615 = vst.msk [vmem:[#allocation2 + $0x3c] sm:$0xf] %vm2599, %v2486
      %2616 = vst.msk [vmem:[#allocation2 + $0x40] sm:$0xf] %vm2599, %v2488
      %2617 = vst.msk [vmem:[#allocation2 + $0x44] sm:$0xf] %vm2599, %v2490
      %2618 = vst.msk [vmem:[#allocation2 + $0x48] sm:$0xf] %vm2599, %v2492
      %2619 = vst.msk [vmem:[#allocation2 + $0x4c] sm:$0xf] %vm2599, %v2494
      %2620 = vst.msk [vmem:[#allocation2 + $0x50] sm:$0xf] %vm2599, %v2496
      %2621 = vst.msk [vmem:[#allocation2 + $0x54] sm:$0xf] %vm2599, %v2498
      %2622 = vst.msk [vmem:[#allocation2 + $0x58] sm:$0xf] %vm2599, %v2500
      %2623 = vst.msk [vmem:[#allocation2 + $0x5c] sm:$0xf] %vm2599, %v2502
      %2624 = vst.msk [vmem:[#allocation2 + $0x60] sm:$0xf] %vm2599, %v2504
      %2625 = vst.msk [vmem:[#allocation2 + $0x64] sm:$0xf] %vm2599, %v2506
      %2626 = vst.msk [vmem:[#allocation2 + $0x68] sm:$0xf] %vm2599, %v2508
      %2627 = vst.msk [vmem:[#allocation2 + $0x6c] sm:$0xf] %vm2599, %v2510
      %2628 = vst.msk [vmem:[#allocation2 + $0x70] sm:$0xf] %vm2599, %v2512
      %2629 = vst.msk [vmem:[#allocation2 + $0x74] sm:$0xf] %vm2599, %v2514
      %2630 = vst.msk [vmem:[#allocation2 + $0x78] sm:$0xf] %vm2599, %v2516
      %2631 = vst.msk [vmem:[#allocation2 + $0x7c] sm:$0xf] %vm2599, %v2518
      %2632 = vst.msk [vmem:[#allocation2 + $0x80] sm:$0xf] %vm2599, %v2520
      %2633 = vst.msk [vmem:[#allocation2 + $0x84] sm:$0xf] %vm2599, %v2522
      %2634 = vst.msk [vmem:[#allocation2 + $0x88] sm:$0xf] %vm2599, %v2524
      %2635 = vst.msk [vmem:[#allocation2 + $0x8c] sm:$0xf] %vm2599, %v2526
      %2636 = vst.msk [vmem:[#allocation2 + $0x90] sm:$0xf] %vm2599, %v2528
      %2637 = vst.msk [vmem:[#allocation2 + $0x94] sm:$0xf] %vm2599, %v2530
      %2638 = vst.msk [vmem:[#allocation2 + $0x98] sm:$0xf] %vm2599, %v2532
      %2639 = vst.msk [vmem:[#allocation2 + $0x9c] sm:$0xf] %vm2599, %v2534
      %2640 = vst.msk [vmem:[#allocation2 + $0xa0] sm:$0xf] %vm2599, %v2536
      %2641 = vst.msk [vmem:[#allocation2 + $0xa4] sm:$0xf] %vm2599, %v2538
      %2642 = vst.msk [vmem:[#allocation2 + $0xa8] sm:$0xf] %vm2599, %v2540
      %2643 = vst.msk [vmem:[#allocation2 + $0xac] sm:$0xf] %vm2599, %v2542
      %2644 = vst.msk [vmem:[#allocation2 + $0xb0] sm:$0xf] %vm2599, %v2544
      %2645 = vst.msk [vmem:[#allocation2 + $0xb4] sm:$0xf] %vm2599, %v2546
      %2646 = vst.msk [vmem:[#allocation2 + $0xb8] sm:$0xf] %vm2599, %v2548
      %2647 = vst.msk [vmem:[#allocation2 + $0xbc] sm:$0xf] %vm2599, %v2550
      %v2648 = vld [vmem:[#allocation2] sm:$0xf]
      %v2649 = vld [vmem:[#allocation2 + $0x4] sm:$0xf]
      %v2650 = vld [vmem:[#allocation2 + $0x8] sm:$0xf]
      %v2651 = vld [vmem:[#allocation2 + $0xc] sm:$0xf]
      %v2652 = vld [vmem:[#allocation2 + $0x10] sm:$0xf]
      %v2653 = vld [vmem:[#allocation2 + $0x14] sm:$0xf]
      %v2654 = vld [vmem:[#allocation2 + $0x18] sm:$0xf]
      %v2655 = vld [vmem:[#allocation2 + $0x1c] sm:$0xf]
      %v2656 = vld [vmem:[#allocation2 + $0x20] sm:$0xf]
      %v2657 = vld [vmem:[#allocation2 + $0x24] sm:$0xf]
      %v2658 = vld [vmem:[#allocation2 + $0x28] sm:$0xf]
      %v2659 = vld [vmem:[#allocation2 + $0x2c] sm:$0xf]
      %v2660 = vld [vmem:[#allocation2 + $0x30] sm:$0xf]
      %v2661 = vld [vmem:[#allocation2 + $0x34] sm:$0xf]
      %v2662 = vld [vmem:[#allocation2 + $0x38] sm:$0xf]
      %v2663 = vld [vmem:[#allocation2 + $0x3c] sm:$0xf]
      %v2664 = vld [vmem:[#allocation2 + $0x40] sm:$0xf]
      %v2665 = vld [vmem:[#allocation2 + $0x44] sm:$0xf]
      %v2666 = vld [vmem:[#allocation2 + $0x48] sm:$0xf]
      %v2667 = vld [vmem:[#allocation2 + $0x4c] sm:$0xf]
      %v2668 = vld [vmem:[#allocation2 + $0x50] sm:$0xf]
      %v2669 = vld [vmem:[#allocation2 + $0x54] sm:$0xf]
      %v2670 = vld [vmem:[#allocation2 + $0x58] sm:$0xf]
      %v2671 = vld [vmem:[#allocation2 + $0x5c] sm:$0xf]
      %v2672 = vld [vmem:[#allocation2 + $0x60] sm:$0xf]
      %v2673 = vld [vmem:[#allocation2 + $0x64] sm:$0xf]
      %v2674 = vld [vmem:[#allocation2 + $0x68] sm:$0xf]
      %v2675 = vld [vmem:[#allocation2 + $0x6c] sm:$0xf]
      %v2676 = vld [vmem:[#allocation2 + $0x70] sm:$0xf]
      %v2677 = vld [vmem:[#allocation2 + $0x74] sm:$0xf]
      %v2678 = vld [vmem:[#allocation2 + $0x78] sm:$0xf]
      %v2679 = vld [vmem:[#allocation2 + $0x7c] sm:$0xf]
      %v2680 = vld [vmem:[#allocation2 + $0x80] sm:$0xf]
      %v2681 = vld [vmem:[#allocation2 + $0x84] sm:$0xf]
      %v2682 = vld [vmem:[#allocation2 + $0x88] sm:$0xf]
      %v2683 = vld [vmem:[#allocation2 + $0x8c] sm:$0xf]
      %v2684 = vld [vmem:[#allocation2 + $0x90] sm:$0xf]
      %v2685 = vld [vmem:[#allocation2 + $0x94] sm:$0xf]
      %v2686 = vld [vmem:[#allocation2 + $0x98] sm:$0xf]
      %v2687 = vld [vmem:[#allocation2 + $0x9c] sm:$0xf]
      %v2688 = vld [vmem:[#allocation2 + $0xa0] sm:$0xf]
      %v2689 = vld [vmem:[#allocation2 + $0xa4] sm:$0xf]
      %v2690 = vld [vmem:[#allocation2 + $0xa8] sm:$0xf]
      %v2691 = vld [vmem:[#allocation2 + $0xac] sm:$0xf]
      %v2692 = vld [vmem:[#allocation2 + $0xb0] sm:$0xf]
      %v2693 = vld [vmem:[#allocation2 + $0xb4] sm:$0xf]
      %v2694 = vld [vmem:[#allocation2 + $0xb8] sm:$0xf]
      %v2695 = vld [vmem:[#allocation2 + $0xbc] sm:$0xf]
      %v2696 = vld [vmem:[%s1] sm:$0xf]
      %v2697 = vld [vmem:[%s1 + $0x4] sm:$0xf]
      %v2698 = vld [vmem:[%s1 + $0x8] sm:$0xf]
      %v2699 = vld [vmem:[%s1 + $0xc] sm:$0xf]
      %v2700 = vld [vmem:[%s1 + $0x10] sm:$0x3]
      %v2749 = vunpack.c.l.b16 %v2648
      %v2750 = vunpack.c.l.b16 %v2649
      %v2751 = vunpack.c.l.b16 %v2650
      %v2752 = vunpack.c.l.b16 %v2651
      %v2753 = vunpack.c.l.b16 %v2652
      %v2754 = vunpack.c.l.b16 %v2653
      %v2755 = vunpack.c.l.b16 %v2654
      %v2756 = vunpack.c.l.b16 %v2655
      %v2757 = vunpack.c.l.b16 %v2656
      %v2758 = vunpack.c.l.b16 %v2657
      %v2759 = vunpack.c.l.b16 %v2658
      %v2760 = vunpack.c.l.b16 %v2659
      %v2761 = vunpack.c.l.b16 %v2660
      %v2762 = vunpack.c.l.b16 %v2661
      %v2763 = vunpack.c.l.b16 %v2662
      %v2764 = vunpack.c.l.b16 %v2663
      %v2765 = vunpack.c.l.b16 %v2664
      %v2766 = vunpack.c.l.b16 %v2665
      %v2767 = vunpack.c.l.b16 %v2666
      %v2768 = vunpack.c.l.b16 %v2667
      %v2769 = vunpack.c.l.b16 %v2668
      %v2770 = vunpack.c.l.b16 %v2669
      %v2771 = vunpack.c.l.b16 %v2670
      %v2772 = vunpack.c.l.b16 %v2671
      %v2773 = vunpack.c.l.b16 %v2672
      %v2774 = vunpack.c.l.b16 %v2673
      %v2775 = vunpack.c.l.b16 %v2674
      %v2776 = vunpack.c.l.b16 %v2675
      %v2777 = vunpack.c.l.b16 %v2676
      %v2778 = vunpack.c.l.b16 %v2677
      %v2779 = vunpack.c.l.b16 %v2678
      %v2780 = vunpack.c.l.b16 %v2679
      %v2781 = vunpack.c.l.b16 %v2680
      %v2782 = vunpack.c.l.b16 %v2681
      %v2783 = vunpack.c.l.b16 %v2682
      %v2784 = vunpack.c.l.b16 %v2683
      %v2785 = vunpack.c.l.b16 %v2684
      %v2786 = vunpack.c.l.b16 %v2685
      %v2787 = vunpack.c.l.b16 %v2686
      %v2788 = vunpack.c.l.b16 %v2687
      %v2789 = vunpack.c.l.b16 %v2688
      %v2790 = vunpack.c.l.b16 %v2689
      %v2791 = vunpack.c.l.b16 %v2690
      %v2792 = vunpack.c.l.b16 %v2691
      %v2793 = vunpack.c.l.b16 %v2692
      %v2794 = vunpack.c.l.b16 %v2693
      %v2795 = vunpack.c.l.b16 %v2694
      %v2796 = vunpack.c.l.b16 %v2695
      %v2797 = vpack.c.b16 %v2750, %v2749
      %v2798 = vpack.c.b16 %v2752, %v2751
      %v2799 = vpack.c.b16 %v2754, %v2753
      %v2800 = vpack.c.b16 %v2756, %v2755
      %v2801 = vpack.c.b16 %v2758, %v2757
      %v2802 = vpack.c.b16 %v2760, %v2759
      %v2803 = vpack.c.b16 %v2762, %v2761
      %v2804 = vpack.c.b16 %v2764, %v2763
      %v2805 = vpack.c.b16 %v2766, %v2765
      %v2806 = vpack.c.b16 %v2768, %v2767
      %v2807 = vpack.c.b16 %v2770, %v2769
      %v2808 = vpack.c.b16 %v2772, %v2771
      %v2809 = vpack.c.b16 %v2774, %v2773
      %v2810 = vpack.c.b16 %v2776, %v2775
      %v2811 = vpack.c.b16 %v2778, %v2777
      %v2812 = vpack.c.b16 %v2780, %v2779
      %v2813 = vpack.c.b16 %v2782, %v2781
      %v2814 = vpack.c.b16 %v2784, %v2783
      %v2815 = vpack.c.b16 %v2786, %v2785
      %v2816 = vpack.c.b16 %v2788, %v2787
      %v2817 = vpack.c.b16 %v2790, %v2789
      %v2818 = vpack.c.b16 %v2792, %v2791
      %v2819 = vpack.c.b16 %v2794, %v2793
      %v2820 = vpack.c.b16 %v2796, %v2795
      %v2826 = vunpack.c.l.b16 %v2696
      %v2827 = vunpack.c.l.b16 %v2697
      %v2828 = vunpack.c.l.b16 %v2698
      %v2829 = vunpack.c.l.b16 %v2699
      %v2830 = vunpack.c.l.b16 %v2700
      %v2831 = vpack.c.b16 %v2827, %v2826
      %v2832 = vpack.c.b16 %v2829, %v2828
      %v2833 = vpack.c.b16 %v2830, %v2830
      %vm2836 = vcmask 293888
      %v2838 = vsel %vm2836, %v2797, 0
      %v2841 = vsel %vm2836, %v2798, 0
      %v2844 = vsel %vm2836, %v2799, 0
      %v2847 = vsel %vm2836, %v2800, 0
      %v2850 = vsel %vm2836, %v2801, 0
      %v2853 = vsel %vm2836, %v2802, 0
      %v2856 = vsel %vm2836, %v2803, 0
      %v2859 = vsel %vm2836, %v2804, 0
      %v2862 = vsel %vm2836, %v2805, 0
      %v2865 = vsel %vm2836, %v2806, 0
      %v2868 = vsel %vm2836, %v2807, 0
      %v2871 = vsel %vm2836, %v2808, 0
      %v2874 = vsel %vm2836, %v2809, 0
      %v2877 = vsel %vm2836, %v2810, 0
      %v2880 = vsel %vm2836, %v2811, 0
      %v2883 = vsel %vm2836, %v2812, 0
      %v2886 = vsel %vm2836, %v2813, 0
      %v2889 = vsel %vm2836, %v2814, 0
      %v2892 = vsel %vm2836, %v2815, 0
      %v2895 = vsel %vm2836, %v2816, 0
      %v2898 = vsel %vm2836, %v2817, 0
      %v2901 = vsel %vm2836, %v2818, 0
      %v2904 = vsel %vm2836, %v2819, 0
      %v2907 = vsel %vm2836, %v2820, 0
      %vm2909 = vcmask 1041408
      %v2911 = vsel %vm2909, %v2833, 0
      %2913 = vmatpush.bf16.msra.mxu0 0
      %2914 = vmatpush.bf16.msra.mxu0 0
      %2915 = vmatpush.bf16.msra.mxu0 0
      %2916 = vmatpush.bf16.msra.mxu0 0
      %2917 = vmatpush.bf16.msra.mxu0 0
      %2918 = vmatpush.bf16.msra.mxu0 %v2911
      %2919 = vmatpush.bf16.msra.mxu0 %v2832
      %2920 = vmatpush.bf16.msra.mxu0 %v2831
      %2921 = vmatmul.bf16.gmra.mxu0 %v2838
      %v2922 = vpop.f32.mrf.mxu0
      %v2923 = vadd.f32 0.0, %v2922
      %v2924 = vpop.f32.mrf.mxu0
      %v2925 = vadd.f32 0.0, %v2924
      %2926 = vmatmul.bf16.gmra.mxu0 %v2841
      %v2927 = vpop.f32.mrf.mxu0
      %v2928 = vadd.f32 0.0, %v2927
      %v2929 = vpop.f32.mrf.mxu0
      %v2930 = vadd.f32 0.0, %v2929
      %2931 = vmatmul.bf16.gmra.mxu0 %v2844
      %v2932 = vpop.f32.mrf.mxu0
      %v2933 = vadd.f32 0.0, %v2932
      %v2934 = vpop.f32.mrf.mxu0
      %v2935 = vadd.f32 0.0, %v2934
      %2936 = vmatmul.bf16.gmra.mxu0 %v2847
      %v2937 = vpop.f32.mrf.mxu0
      %v2938 = vadd.f32 0.0, %v2937
      %v2939 = vpop.f32.mrf.mxu0
      %v2940 = vadd.f32 0.0, %v2939
      %2941 = vmatmul.bf16.gmra.mxu0 %v2850
      %v2942 = vpop.f32.mrf.mxu0
      %v2943 = vadd.f32 0.0, %v2942
      %v2944 = vpop.f32.mrf.mxu0
      %v2945 = vadd.f32 0.0, %v2944
      %2946 = vmatmul.bf16.gmra.mxu0 %v2853
      %v2947 = vpop.f32.mrf.mxu0
      %v2948 = vadd.f32 0.0, %v2947
      %v2949 = vpop.f32.mrf.mxu0
      %v2950 = vadd.f32 0.0, %v2949
      %2951 = vmatmul.bf16.gmra.mxu0 %v2856
      %v2952 = vpop.f32.mrf.mxu0
      %v2953 = vadd.f32 0.0, %v2952
      %v2954 = vpop.f32.mrf.mxu0
      %v2955 = vadd.f32 0.0, %v2954
      %2956 = vmatmul.bf16.gmra.mxu0 %v2859
      %v2957 = vpop.f32.mrf.mxu0
      %v2958 = vadd.f32 0.0, %v2957
      %v2959 = vpop.f32.mrf.mxu0
      %v2960 = vadd.f32 0.0, %v2959
      %2961 = vmatmul.bf16.gmra.mxu0 %v2862
      %v2962 = vpop.f32.mrf.mxu0
      %v2963 = vadd.f32 0.0, %v2962
      %v2964 = vpop.f32.mrf.mxu0
      %v2965 = vadd.f32 0.0, %v2964
      %2966 = vmatmul.bf16.gmra.mxu0 %v2865
      %v2967 = vpop.f32.mrf.mxu0
      %v2968 = vadd.f32 0.0, %v2967
      %v2969 = vpop.f32.mrf.mxu0
      %v2970 = vadd.f32 0.0, %v2969
      %2971 = vmatmul.bf16.gmra.mxu0 %v2868
      %v2972 = vpop.f32.mrf.mxu0
      %v2973 = vadd.f32 0.0, %v2972
      %v2974 = vpop.f32.mrf.mxu0
      %v2975 = vadd.f32 0.0, %v2974
      %2976 = vmatmul.bf16.gmra.mxu0 %v2871
      %v2977 = vpop.f32.mrf.mxu0
      %v2978 = vadd.f32 0.0, %v2977
      %v2979 = vpop.f32.mrf.mxu0
      %v2980 = vadd.f32 0.0, %v2979
      %2981 = vmatmul.bf16.gmra.mxu0 %v2874
      %v2982 = vpop.f32.mrf.mxu0
      %v2983 = vadd.f32 0.0, %v2982
      %v2984 = vpop.f32.mrf.mxu0
      %v2985 = vadd.f32 0.0, %v2984
      %2986 = vmatmul.bf16.gmra.mxu0 %v2877
      %v2987 = vpop.f32.mrf.mxu0
      %v2988 = vadd.f32 0.0, %v2987
      %v2989 = vpop.f32.mrf.mxu0
      %v2990 = vadd.f32 0.0, %v2989
      %2991 = vmatmul.bf16.gmra.mxu0 %v2880
      %v2992 = vpop.f32.mrf.mxu0
      %v2993 = vadd.f32 0.0, %v2992
      %v2994 = vpop.f32.mrf.mxu0
      %v2995 = vadd.f32 0.0, %v2994
      %2996 = vmatmul.bf16.gmra.mxu0 %v2883
      %v2997 = vpop.f32.mrf.mxu0
      %v2998 = vadd.f32 0.0, %v2997
      %v2999 = vpop.f32.mrf.mxu0
      %v3000 = vadd.f32 0.0, %v2999
      %3001 = vmatmul.bf16.gmra.mxu0 %v2886
      %v3002 = vpop.f32.mrf.mxu0
      %v3003 = vadd.f32 0.0, %v3002
      %v3004 = vpop.f32.mrf.mxu0
      %v3005 = vadd.f32 0.0, %v3004
      %3006 = vmatmul.bf16.gmra.mxu0 %v2889
      %v3007 = vpop.f32.mrf.mxu0
      %v3008 = vadd.f32 0.0, %v3007
      %v3009 = vpop.f32.mrf.mxu0
      %v3010 = vadd.f32 0.0, %v3009
      %3011 = vmatmul.bf16.gmra.mxu0 %v2892
      %v3012 = vpop.f32.mrf.mxu0
      %v3013 = vadd.f32 0.0, %v3012
      %v3014 = vpop.f32.mrf.mxu0
      %v3015 = vadd.f32 0.0, %v3014
      %3016 = vmatmul.bf16.gmra.mxu0 %v2895
      %v3017 = vpop.f32.mrf.mxu0
      %v3018 = vadd.f32 0.0, %v3017
      %v3019 = vpop.f32.mrf.mxu0
      %v3020 = vadd.f32 0.0, %v3019
      %3021 = vmatmul.bf16.gmra.mxu0 %v2898
      %v3022 = vpop.f32.mrf.mxu0
      %v3023 = vadd.f32 0.0, %v3022
      %v3024 = vpop.f32.mrf.mxu0
      %v3025 = vadd.f32 0.0, %v3024
      %3026 = vmatmul.bf16.gmra.mxu0 %v2901
      %v3027 = vpop.f32.mrf.mxu0
      %v3028 = vadd.f32 0.0, %v3027
      %v3029 = vpop.f32.mrf.mxu0
      %v3030 = vadd.f32 0.0, %v3029
      %3031 = vmatmul.bf16.gmra.mxu0 %v2904
      %v3032 = vpop.f32.mrf.mxu0
      %v3033 = vadd.f32 0.0, %v3032
      %v3034 = vpop.f32.mrf.mxu0
      %v3035 = vadd.f32 0.0, %v3034
      %3036 = vmatmul.bf16.gmra.mxu0 %v2907
      %v3037 = vpop.f32.mrf.mxu0
      %v3038 = vadd.f32 0.0, %v3037
      %v3039 = vpop.f32.mrf.mxu0
      %v3040 = vadd.f32 0.0, %v3039
      %3041 = vdwg.mxu0
      %v3042 = vpack.c.bf16 %v2923, %v2923
      %v3043 = vpack.c.bf16 %v2925, %v2925
      %v3044 = vpack.c.bf16 %v2928, %v2928
      %v3045 = vpack.c.bf16 %v2930, %v2930
      %v3046 = vpack.c.bf16 %v2933, %v2933
      %v3047 = vpack.c.bf16 %v2935, %v2935
      %v3048 = vpack.c.bf16 %v2938, %v2938
      %v3049 = vpack.c.bf16 %v2940, %v2940
      %v3050 = vpack.c.bf16 %v2943, %v2943
      %v3051 = vpack.c.bf16 %v2945, %v2945
      %v3052 = vpack.c.bf16 %v2948, %v2948
      %v3053 = vpack.c.bf16 %v2950, %v2950
      %v3054 = vpack.c.bf16 %v2953, %v2953
      %v3055 = vpack.c.bf16 %v2955, %v2955
      %v3056 = vpack.c.bf16 %v2958, %v2958
      %v3057 = vpack.c.bf16 %v2960, %v2960
      %v3058 = vpack.c.bf16 %v2963, %v2963
      %v3059 = vpack.c.bf16 %v2965, %v2965
      %v3060 = vpack.c.bf16 %v2968, %v2968
      %v3061 = vpack.c.bf16 %v2970, %v2970
      %v3062 = vpack.c.bf16 %v2973, %v2973
      %v3063 = vpack.c.bf16 %v2975, %v2975
      %v3064 = vpack.c.bf16 %v2978, %v2978
      %v3065 = vpack.c.bf16 %v2980, %v2980
      %v3066 = vpack.c.bf16 %v2983, %v2983
      %v3067 = vpack.c.bf16 %v2985, %v2985
      %v3068 = vpack.c.bf16 %v2988, %v2988
      %v3069 = vpack.c.bf16 %v2990, %v2990
      %v3070 = vpack.c.bf16 %v2993, %v2993
      %v3071 = vpack.c.bf16 %v2995, %v2995
      %v3072 = vpack.c.bf16 %v2998, %v2998
      %v3073 = vpack.c.bf16 %v3000, %v3000
      %v3074 = vpack.c.bf16 %v3003, %v3003
      %v3075 = vpack.c.bf16 %v3005, %v3005
      %v3076 = vpack.c.bf16 %v3008, %v3008
      %v3077 = vpack.c.bf16 %v3010, %v3010
      %v3078 = vpack.c.bf16 %v3013, %v3013
      %v3079 = vpack.c.bf16 %v3015, %v3015
      %v3080 = vpack.c.bf16 %v3018, %v3018
      %v3081 = vpack.c.bf16 %v3020, %v3020
      %v3082 = vpack.c.bf16 %v3023, %v3023
      %v3083 = vpack.c.bf16 %v3025, %v3025
      %v3084 = vpack.c.bf16 %v3028, %v3028
      %v3085 = vpack.c.bf16 %v3030, %v3030
      %v3086 = vpack.c.bf16 %v3033, %v3033
      %v3087 = vpack.c.bf16 %v3035, %v3035
      %v3088 = vpack.c.bf16 %v3038, %v3038
      %v3089 = vpack.c.bf16 %v3040, %v3040
      %vm3090 = vcmask 60416
      %3091 = vst.msk [vmem:[%s215] sm:$0xf] %vm3090, %v3042
      %3092 = vst.msk [vmem:[%s215 + $0x4] sm:$0xf] %vm3090, %v3043
      %3093 = vst.msk [vmem:[%s215 + $0x8] sm:$0xf] %vm3090, %v3044
      %3094 = vst.msk [vmem:[%s215 + $0xc] sm:$0xf] %vm3090, %v3045
      %3095 = vst.msk [vmem:[%s215 + $0x10] sm:$0xf] %vm3090, %v3046
      %3096 = vst.msk [vmem:[%s215 + $0x14] sm:$0xf] %vm3090, %v3047
      %3097 = vst.msk [vmem:[%s215 + $0x18] sm:$0xf] %vm3090, %v3048
      %3098 = vst.msk [vmem:[%s215 + $0x1c] sm:$0xf] %vm3090, %v3049
      %3099 = vst.msk [vmem:[%s215 + $0x20] sm:$0xf] %vm3090, %v3050
      %3100 = vst.msk [vmem:[%s215 + $0x24] sm:$0xf] %vm3090, %v3051
      %3101 = vst.msk [vmem:[%s215 + $0x28] sm:$0xf] %vm3090, %v3052
      %3102 = vst.msk [vmem:[%s215 + $0x2c] sm:$0xf] %vm3090, %v3053
      %3103 = vst.msk [vmem:[%s215 + $0x30] sm:$0xf] %vm3090, %v3054
      %3104 = vst.msk [vmem:[%s215 + $0x34] sm:$0xf] %vm3090, %v3055
      %3105 = vst.msk [vmem:[%s215 + $0x38] sm:$0xf] %vm3090, %v3056
      %3106 = vst.msk [vmem:[%s215 + $0x3c] sm:$0xf] %vm3090, %v3057
      %3107 = vst.msk [vmem:[%s215 + $0x40] sm:$0xf] %vm3090, %v3058
      %3108 = vst.msk [vmem:[%s215 + $0x44] sm:$0xf] %vm3090, %v3059
      %3109 = vst.msk [vmem:[%s215 + $0x48] sm:$0xf] %vm3090, %v3060
      %3110 = vst.msk [vmem:[%s215 + $0x4c] sm:$0xf] %vm3090, %v3061
      %3111 = vst.msk [vmem:[%s215 + $0x50] sm:$0xf] %vm3090, %v3062
      %3112 = vst.msk [vmem:[%s215 + $0x54] sm:$0xf] %vm3090, %v3063
      %3113 = vst.msk [vmem:[%s215 + $0x58] sm:$0xf] %vm3090, %v3064
      %3114 = vst.msk [vmem:[%s215 + $0x5c] sm:$0xf] %vm3090, %v3065
      %3115 = vst.msk [vmem:[%s215 + $0x60] sm:$0xf] %vm3090, %v3066
      %3116 = vst.msk [vmem:[%s215 + $0x64] sm:$0xf] %vm3090, %v3067
      %3117 = vst.msk [vmem:[%s215 + $0x68] sm:$0xf] %vm3090, %v3068
      %3118 = vst.msk [vmem:[%s215 + $0x6c] sm:$0xf] %vm3090, %v3069
      %3119 = vst.msk [vmem:[%s215 + $0x70] sm:$0xf] %vm3090, %v3070
      %3120 = vst.msk [vmem:[%s215 + $0x74] sm:$0xf] %vm3090, %v3071
      %3121 = vst.msk [vmem:[%s215 + $0x78] sm:$0xf] %vm3090, %v3072
      %3122 = vst.msk [vmem:[%s215 + $0x7c] sm:$0xf] %vm3090, %v3073
      %3123 = vst.msk [vmem:[%s215 + $0x80] sm:$0xf] %vm3090, %v3074
      %3124 = vst.msk [vmem:[%s215 + $0x84] sm:$0xf] %vm3090, %v3075
      %3125 = vst.msk [vmem:[%s215 + $0x88] sm:$0xf] %vm3090, %v3076
      %3126 = vst.msk [vmem:[%s215 + $0x8c] sm:$0xf] %vm3090, %v3077
      %3127 = vst.msk [vmem:[%s215 + $0x90] sm:$0xf] %vm3090, %v3078
      %3128 = vst.msk [vmem:[%s215 + $0x94] sm:$0xf] %vm3090, %v3079
      %3129 = vst.msk [vmem:[%s215 + $0x98] sm:$0xf] %vm3090, %v3080
      %3130 = vst.msk [vmem:[%s215 + $0x9c] sm:$0xf] %vm3090, %v3081
      %3131 = vst.msk [vmem:[%s215 + $0xa0] sm:$0xf] %vm3090, %v3082
      %3132 = vst.msk [vmem:[%s215 + $0xa4] sm:$0xf] %vm3090, %v3083
      %3133 = vst.msk [vmem:[%s215 + $0xa8] sm:$0xf] %vm3090, %v3084
      %3134 = vst.msk [vmem:[%s215 + $0xac] sm:$0xf] %vm3090, %v3085
      %3135 = vst.msk [vmem:[%s215 + $0xb0] sm:$0xf] %vm3090, %v3086
      %3136 = vst.msk [vmem:[%s215 + $0xb4] sm:$0xf] %vm3090, %v3087
      %3137 = vst.msk [vmem:[%s215 + $0xb8] sm:$0xf] %vm3090, %v3088
      %3138 = vst.msk [vmem:[%s215 + $0xbc] sm:$0xf] %vm3090, %v3089
      %v3139 = vlaneseq
      %v3140 = vshrl.u32 %v3139, 7
      %v3141 = vadd.s32 %v3140, 8
      %v3142 = vadd.s32 %v3140, 16
      %v3143 = vadd.s32 %v3140, 24
      %v3144 = vadd.s32 %v3140, 32
      %v3145 = vadd.s32 %v3140, 40
      %v3146 = vadd.s32 %v3140, 48
      %v3147 = vadd.s32 %v3140, 56
      %v3148 = vadd.s32 %v3140, 64
      %v3149 = vadd.s32 %v3140, 72
      %v3150 = vadd.s32 %v3140, 80
      %v3151 = vadd.s32 %v3140, 88
      %v3152 = vadd.s32 %v3140, 96
      %v3153 = vadd.s32 %v3140, 104
      %v3154 = vadd.s32 %v3140, 112
      %v3155 = vadd.s32 %v3140, 120
      %v3156 = vadd.s32 %v3140, 128
      %v3157 = vadd.s32 %v3140, 136
      %v3158 = vadd.s32 %v3140, 144
      %v3159 = vadd.s32 %v3140, 152
      %v3160 = vadd.s32 %v3140, 160
      %v3161 = vadd.s32 %v3140, 168
      %v3162 = vadd.s32 %v3140, 176
      %v3163 = vadd.s32 %v3140, 184
      %v3164 = vadd.s32 %v3140, 192
      %v3165 = vadd.s32 %v3140, 200
      %v3166 = vadd.s32 %v3140, 208
      %v3167 = vadd.s32 %v3140, 216
      %v3168 = vadd.s32 %v3140, 224
      %v3169 = vadd.s32 %v3140, 232
      %v3170 = vadd.s32 %v3140, 240
      %v3171 = vadd.s32 %v3140, 248
      %v3172 = vadd.s32 %v3140, 256
      %v3173 = vadd.s32 %v3140, 264
      %v3174 = vadd.s32 %v3140, 272
      %v3175 = vadd.s32 %v3140, 280
      %v3176 = vadd.s32 %v3140, 288
      %v3177 = vadd.s32 %v3140, 296
      %v3178 = vadd.s32 %v3140, 304
      %v3179 = vadd.s32 %v3140, 312
      %v3180 = vadd.s32 %v3140, 320
      %v3181 = vadd.s32 %v3140, 328
      %v3182 = vadd.s32 %v3140, 336
      %v3183 = vadd.s32 %v3140, 344
      %v3184 = vadd.s32 %v3140, 352
      %v3185 = vadd.s32 %v3140, 360
      %v3186 = vadd.s32 %v3140, 368
      %v3187 = vadd.s32 %v3140, 376
      %vm3188 = vcmp.lt.s32.totalorder %v3140, 0
      %v3189 = vsub.s32 0, %v3140
      %v3190 = vsel %vm3188, %v3189, %v3140
      %v3191 = vand.u32 %v3190, 65535
      %v3192 = vshrl.u32 %v3190, 16
      %v3194 = vmul.u32 %v3191, 43691
      %v3195 = vmul.u32 %v3191, 43690
      %v3196 = vmul.u32 %v3192, 43691
      %v3197 = vmul.u32 %v3192, 43690
      %v3198 = vshll.u32 %v3195, 16
      %v3199 = vshrl.u32 %v3195, 16
      %v3200 = vshll.u32 %v3196, 16
      %v3201 = vshrl.u32 %v3196, 16
      %vm3202 = vc.u32 %v3194, %v3198
      %v3203 = vsel %vm3202, 1, 0
      %v3204 = vadd.s32 %v3194, %v3198
      %v3205 = vadd.s32 %v3197, %v3203
      %vm3206 = vc.u32 %v3204, %v3200
      %v3207 = vsel %vm3206, 1, 0
      %v3208 = vadd.s32 %v3204, %v3200
      %v3209 = vadd.s32 %v3205, %v3207
      %v3210 = vadd.s32 %v3209, %v3199
      %v3211 = vadd.s32 %v3210, %v3201
      %v3212 = vshrl.u32 %v3211, 4
      %v3213 = vmul.u32 %v3212, 24
      %v3214 = vsub.s32 %v3190, %v3213
      %v3215 = vsub.s32 0, %v3214
      %v3216 = vsel %vm3188, %v3215, %v3214
      %vm3217 = vcmp.lt.s32.totalorder %v3141, 0
      %v3218 = vsub.s32 0, %v3141
      %v3219 = vsel %vm3217, %v3218, %v3141
      %v3220 = vand.u32 %v3219, 65535
      %v3221 = vshrl.u32 %v3219, 16
      %v3223 = vmul.u32 %v3220, 43691
      %v3224 = vmul.u32 %v3220, 43690
      %v3225 = vmul.u32 %v3221, 43691
      %v3226 = vmul.u32 %v3221, 43690
      %v3227 = vshll.u32 %v3224, 16
      %v3228 = vshrl.u32 %v3224, 16
      %v3229 = vshll.u32 %v3225, 16
      %v3230 = vshrl.u32 %v3225, 16
      %vm3231 = vc.u32 %v3223, %v3227
      %v3232 = vsel %vm3231, 1, 0
      %v3233 = vadd.s32 %v3223, %v3227
      %v3234 = vadd.s32 %v3226, %v3232
      %vm3235 = vc.u32 %v3233, %v3229
      %v3236 = vsel %vm3235, 1, 0
      %v3237 = vadd.s32 %v3233, %v3229
      %v3238 = vadd.s32 %v3234, %v3236
      %v3239 = vadd.s32 %v3238, %v3228
      %v3240 = vadd.s32 %v3239, %v3230
      %v3241 = vshrl.u32 %v3240, 4
      %v3242 = vmul.u32 %v3241, 24
      %v3243 = vsub.s32 %v3219, %v3242
      %v3244 = vsub.s32 0, %v3243
      %v3245 = vsel %vm3217, %v3244, %v3243
      %vm3246 = vcmp.lt.s32.totalorder %v3142, 0
      %v3247 = vsub.s32 0, %v3142
      %v3248 = vsel %vm3246, %v3247, %v3142
      %v3249 = vand.u32 %v3248, 65535
      %v3250 = vshrl.u32 %v3248, 16
      %v3252 = vmul.u32 %v3249, 43691
      %v3253 = vmul.u32 %v3249, 43690
      %v3254 = vmul.u32 %v3250, 43691
      %v3255 = vmul.u32 %v3250, 43690
      %v3256 = vshll.u32 %v3253, 16
      %v3257 = vshrl.u32 %v3253, 16
      %v3258 = vshll.u32 %v3254, 16
      %v3259 = vshrl.u32 %v3254, 16
      %vm3260 = vc.u32 %v3252, %v3256
      %v3261 = vsel %vm3260, 1, 0
      %v3262 = vadd.s32 %v3252, %v3256
      %v3263 = vadd.s32 %v3255, %v3261
      %vm3264 = vc.u32 %v3262, %v3258
      %v3265 = vsel %vm3264, 1, 0
      %v3266 = vadd.s32 %v3262, %v3258
      %v3267 = vadd.s32 %v3263, %v3265
      %v3268 = vadd.s32 %v3267, %v3257
      %v3269 = vadd.s32 %v3268, %v3259
      %v3270 = vshrl.u32 %v3269, 4
      %v3271 = vmul.u32 %v3270, 24
      %v3272 = vsub.s32 %v3248, %v3271
      %v3273 = vsub.s32 0, %v3272
      %v3274 = vsel %vm3246, %v3273, %v3272
      %vm3275 = vcmp.lt.s32.totalorder %v3143, 0
      %v3276 = vsub.s32 0, %v3143
      %v3277 = vsel %vm3275, %v3276, %v3143
      %v3278 = vand.u32 %v3277, 65535
      %v3279 = vshrl.u32 %v3277, 16
      %v3281 = vmul.u32 %v3278, 43691
      %v3282 = vmul.u32 %v3278, 43690
      %v3283 = vmul.u32 %v3279, 43691
      %v3284 = vmul.u32 %v3279, 43690
      %v3285 = vshll.u32 %v3282, 16
      %v3286 = vshrl.u32 %v3282, 16
      %v3287 = vshll.u32 %v3283, 16
      %v3288 = vshrl.u32 %v3283, 16
      %vm3289 = vc.u32 %v3281, %v3285
      %v3290 = vsel %vm3289, 1, 0
      %v3291 = vadd.s32 %v3281, %v3285
      %v3292 = vadd.s32 %v3284, %v3290
      %vm3293 = vc.u32 %v3291, %v3287
      %v3294 = vsel %vm3293, 1, 0
      %v3295 = vadd.s32 %v3291, %v3287
      %v3296 = vadd.s32 %v3292, %v3294
      %v3297 = vadd.s32 %v3296, %v3286
      %v3298 = vadd.s32 %v3297, %v3288
      %v3299 = vshrl.u32 %v3298, 4
      %v3300 = vmul.u32 %v3299, 24
      %v3301 = vsub.s32 %v3277, %v3300
      %v3302 = vsub.s32 0, %v3301
      %v3303 = vsel %vm3275, %v3302, %v3301
      %vm3304 = vcmp.lt.s32.totalorder %v3144, 0
      %v3305 = vsub.s32 0, %v3144
      %v3306 = vsel %vm3304, %v3305, %v3144
      %v3307 = vand.u32 %v3306, 65535
      %v3308 = vshrl.u32 %v3306, 16
      %v3310 = vmul.u32 %v3307, 43691
      %v3311 = vmul.u32 %v3307, 43690
      %v3312 = vmul.u32 %v3308, 43691
      %v3313 = vmul.u32 %v3308, 43690
      %v3314 = vshll.u32 %v3311, 16
      %v3315 = vshrl.u32 %v3311, 16
      %v3316 = vshll.u32 %v3312, 16
      %v3317 = vshrl.u32 %v3312, 16
      %vm3318 = vc.u32 %v3310, %v3314
      %v3319 = vsel %vm3318, 1, 0
      %v3320 = vadd.s32 %v3310, %v3314
      %v3321 = vadd.s32 %v3313, %v3319
      %vm3322 = vc.u32 %v3320, %v3316
      %v3323 = vsel %vm3322, 1, 0
      %v3324 = vadd.s32 %v3320, %v3316
      %v3325 = vadd.s32 %v3321, %v3323
      %v3326 = vadd.s32 %v3325, %v3315
      %v3327 = vadd.s32 %v3326, %v3317
      %v3328 = vshrl.u32 %v3327, 4
      %v3329 = vmul.u32 %v3328, 24
      %v3330 = vsub.s32 %v3306, %v3329
      %v3331 = vsub.s32 0, %v3330
      %v3332 = vsel %vm3304, %v3331, %v3330
      %vm3333 = vcmp.lt.s32.totalorder %v3145, 0
      %v3334 = vsub.s32 0, %v3145
      %v3335 = vsel %vm3333, %v3334, %v3145
      %v3336 = vand.u32 %v3335, 65535
      %v3337 = vshrl.u32 %v3335, 16
      %v3339 = vmul.u32 %v3336, 43691
      %v3340 = vmul.u32 %v3336, 43690
      %v3341 = vmul.u32 %v3337, 43691
      %v3342 = vmul.u32 %v3337, 43690
      %v3343 = vshll.u32 %v3340, 16
      %v3344 = vshrl.u32 %v3340, 16
      %v3345 = vshll.u32 %v3341, 16
      %v3346 = vshrl.u32 %v3341, 16
      %vm3347 = vc.u32 %v3339, %v3343
      %v3348 = vsel %vm3347, 1, 0
      %v3349 = vadd.s32 %v3339, %v3343
      %v3350 = vadd.s32 %v3342, %v3348
      %vm3351 = vc.u32 %v3349, %v3345
      %v3352 = vsel %vm3351, 1, 0
      %v3353 = vadd.s32 %v3349, %v3345
      %v3354 = vadd.s32 %v3350, %v3352
      %v3355 = vadd.s32 %v3354, %v3344
      %v3356 = vadd.s32 %v3355, %v3346
      %v3357 = vshrl.u32 %v3356, 4
      %v3358 = vmul.u32 %v3357, 24
      %v3359 = vsub.s32 %v3335, %v3358
      %v3360 = vsub.s32 0, %v3359
      %v3361 = vsel %vm3333, %v3360, %v3359
      %vm3362 = vcmp.lt.s32.totalorder %v3146, 0
      %v3363 = vsub.s32 0, %v3146
      %v3364 = vsel %vm3362, %v3363, %v3146
      %v3365 = vand.u32 %v3364, 65535
      %v3366 = vshrl.u32 %v3364, 16
      %v3368 = vmul.u32 %v3365, 43691
      %v3369 = vmul.u32 %v3365, 43690
      %v3370 = vmul.u32 %v3366, 43691
      %v3371 = vmul.u32 %v3366, 43690
      %v3372 = vshll.u32 %v3369, 16
      %v3373 = vshrl.u32 %v3369, 16
      %v3374 = vshll.u32 %v3370, 16
      %v3375 = vshrl.u32 %v3370, 16
      %vm3376 = vc.u32 %v3368, %v3372
      %v3377 = vsel %vm3376, 1, 0
      %v3378 = vadd.s32 %v3368, %v3372
      %v3379 = vadd.s32 %v3371, %v3377
      %vm3380 = vc.u32 %v3378, %v3374
      %v3381 = vsel %vm3380, 1, 0
      %v3382 = vadd.s32 %v3378, %v3374
      %v3383 = vadd.s32 %v3379, %v3381
      %v3384 = vadd.s32 %v3383, %v3373
      %v3385 = vadd.s32 %v3384, %v3375
      %v3386 = vshrl.u32 %v3385, 4
      %v3387 = vmul.u32 %v3386, 24
      %v3388 = vsub.s32 %v3364, %v3387
      %v3389 = vsub.s32 0, %v3388
      %v3390 = vsel %vm3362, %v3389, %v3388
      %vm3391 = vcmp.lt.s32.totalorder %v3147, 0
      %v3392 = vsub.s32 0, %v3147
      %v3393 = vsel %vm3391, %v3392, %v3147
      %v3394 = vand.u32 %v3393, 65535
      %v3395 = vshrl.u32 %v3393, 16
      %v3397 = vmul.u32 %v3394, 43691
      %v3398 = vmul.u32 %v3394, 43690
      %v3399 = vmul.u32 %v3395, 43691
      %v3400 = vmul.u32 %v3395, 43690
      %v3401 = vshll.u32 %v3398, 16
      %v3402 = vshrl.u32 %v3398, 16
      %v3403 = vshll.u32 %v3399, 16
      %v3404 = vshrl.u32 %v3399, 16
      %vm3405 = vc.u32 %v3397, %v3401
      %v3406 = vsel %vm3405, 1, 0
      %v3407 = vadd.s32 %v3397, %v3401
      %v3408 = vadd.s32 %v3400, %v3406
      %vm3409 = vc.u32 %v3407, %v3403
      %v3410 = vsel %vm3409, 1, 0
      %v3411 = vadd.s32 %v3407, %v3403
      %v3412 = vadd.s32 %v3408, %v3410
      %v3413 = vadd.s32 %v3412, %v3402
      %v3414 = vadd.s32 %v3413, %v3404
      %v3415 = vshrl.u32 %v3414, 4
      %v3416 = vmul.u32 %v3415, 24
      %v3417 = vsub.s32 %v3393, %v3416
      %v3418 = vsub.s32 0, %v3417
      %v3419 = vsel %vm3391, %v3418, %v3417
      %vm3420 = vcmp.lt.s32.totalorder %v3148, 0
      %v3421 = vsub.s32 0, %v3148
      %v3422 = vsel %vm3420, %v3421, %v3148
      %v3423 = vand.u32 %v3422, 65535
      %v3424 = vshrl.u32 %v3422, 16
      %v3426 = vmul.u32 %v3423, 43691
      %v3427 = vmul.u32 %v3423, 43690
      %v3428 = vmul.u32 %v3424, 43691
      %v3429 = vmul.u32 %v3424, 43690
      %v3430 = vshll.u32 %v3427, 16
      %v3431 = vshrl.u32 %v3427, 16
      %v3432 = vshll.u32 %v3428, 16
      %v3433 = vshrl.u32 %v3428, 16
      %vm3434 = vc.u32 %v3426, %v3430
      %v3435 = vsel %vm3434, 1, 0
      %v3436 = vadd.s32 %v3426, %v3430
      %v3437 = vadd.s32 %v3429, %v3435
      %vm3438 = vc.u32 %v3436, %v3432
      %v3439 = vsel %vm3438, 1, 0
      %v3440 = vadd.s32 %v3436, %v3432
      %v3441 = vadd.s32 %v3437, %v3439
      %v3442 = vadd.s32 %v3441, %v3431
      %v3443 = vadd.s32 %v3442, %v3433
      %v3444 = vshrl.u32 %v3443, 4
      %v3445 = vmul.u32 %v3444, 24
      %v3446 = vsub.s32 %v3422, %v3445
      %v3447 = vsub.s32 0, %v3446
      %v3448 = vsel %vm3420, %v3447, %v3446
      %vm3449 = vcmp.lt.s32.totalorder %v3149, 0
      %v3450 = vsub.s32 0, %v3149
      %v3451 = vsel %vm3449, %v3450, %v3149
      %v3452 = vand.u32 %v3451, 65535
      %v3453 = vshrl.u32 %v3451, 16
      %v3455 = vmul.u32 %v3452, 43691
      %v3456 = vmul.u32 %v3452, 43690
      %v3457 = vmul.u32 %v3453, 43691
      %v3458 = vmul.u32 %v3453, 43690
      %v3459 = vshll.u32 %v3456, 16
      %v3460 = vshrl.u32 %v3456, 16
      %v3461 = vshll.u32 %v3457, 16
      %v3462 = vshrl.u32 %v3457, 16
      %vm3463 = vc.u32 %v3455, %v3459
      %v3464 = vsel %vm3463, 1, 0
      %v3465 = vadd.s32 %v3455, %v3459
      %v3466 = vadd.s32 %v3458, %v3464
      %vm3467 = vc.u32 %v3465, %v3461
      %v3468 = vsel %vm3467, 1, 0
      %v3469 = vadd.s32 %v3465, %v3461
      %v3470 = vadd.s32 %v3466, %v3468
      %v3471 = vadd.s32 %v3470, %v3460
      %v3472 = vadd.s32 %v3471, %v3462
      %v3473 = vshrl.u32 %v3472, 4
      %v3474 = vmul.u32 %v3473, 24
      %v3475 = vsub.s32 %v3451, %v3474
      %v3476 = vsub.s32 0, %v3475
      %v3477 = vsel %vm3449, %v3476, %v3475
      %vm3478 = vcmp.lt.s32.totalorder %v3150, 0
      %v3479 = vsub.s32 0, %v3150
      %v3480 = vsel %vm3478, %v3479, %v3150
      %v3481 = vand.u32 %v3480, 65535
      %v3482 = vshrl.u32 %v3480, 16
      %v3484 = vmul.u32 %v3481, 43691
      %v3485 = vmul.u32 %v3481, 43690
      %v3486 = vmul.u32 %v3482, 43691
      %v3487 = vmul.u32 %v3482, 43690
      %v3488 = vshll.u32 %v3485, 16
      %v3489 = vshrl.u32 %v3485, 16
      %v3490 = vshll.u32 %v3486, 16
      %v3491 = vshrl.u32 %v3486, 16
      %vm3492 = vc.u32 %v3484, %v3488
      %v3493 = vsel %vm3492, 1, 0
      %v3494 = vadd.s32 %v3484, %v3488
      %v3495 = vadd.s32 %v3487, %v3493
      %vm3496 = vc.u32 %v3494, %v3490
      %v3497 = vsel %vm3496, 1, 0
      %v3498 = vadd.s32 %v3494, %v3490
      %v3499 = vadd.s32 %v3495, %v3497
      %v3500 = vadd.s32 %v3499, %v3489
      %v3501 = vadd.s32 %v3500, %v3491
      %v3502 = vshrl.u32 %v3501, 4
      %v3503 = vmul.u32 %v3502, 24
      %v3504 = vsub.s32 %v3480, %v3503
      %v3505 = vsub.s32 0, %v3504
      %v3506 = vsel %vm3478, %v3505, %v3504
      %vm3507 = vcmp.lt.s32.totalorder %v3151, 0
      %v3508 = vsub.s32 0, %v3151
      %v3509 = vsel %vm3507, %v3508, %v3151
      %v3510 = vand.u32 %v3509, 65535
      %v3511 = vshrl.u32 %v3509, 16
      %v3513 = vmul.u32 %v3510, 43691
      %v3514 = vmul.u32 %v3510, 43690
      %v3515 = vmul.u32 %v3511, 43691
      %v3516 = vmul.u32 %v3511, 43690
      %v3517 = vshll.u32 %v3514, 16
      %v3518 = vshrl.u32 %v3514, 16
      %v3519 = vshll.u32 %v3515, 16
      %v3520 = vshrl.u32 %v3515, 16
      %vm3521 = vc.u32 %v3513, %v3517
      %v3522 = vsel %vm3521, 1, 0
      %v3523 = vadd.s32 %v3513, %v3517
      %v3524 = vadd.s32 %v3516, %v3522
      %vm3525 = vc.u32 %v3523, %v3519
      %v3526 = vsel %vm3525, 1, 0
      %v3527 = vadd.s32 %v3523, %v3519
      %v3528 = vadd.s32 %v3524, %v3526
      %v3529 = vadd.s32 %v3528, %v3518
      %v3530 = vadd.s32 %v3529, %v3520
      %v3531 = vshrl.u32 %v3530, 4
      %v3532 = vmul.u32 %v3531, 24
      %v3533 = vsub.s32 %v3509, %v3532
      %v3534 = vsub.s32 0, %v3533
      %v3535 = vsel %vm3507, %v3534, %v3533
      %vm3536 = vcmp.lt.s32.totalorder %v3152, 0
      %v3537 = vsub.s32 0, %v3152
      %v3538 = vsel %vm3536, %v3537, %v3152
      %v3539 = vand.u32 %v3538, 65535
      %v3540 = vshrl.u32 %v3538, 16
      %v3542 = vmul.u32 %v3539, 43691
      %v3543 = vmul.u32 %v3539, 43690
      %v3544 = vmul.u32 %v3540, 43691
      %v3545 = vmul.u32 %v3540, 43690
      %v3546 = vshll.u32 %v3543, 16
      %v3547 = vshrl.u32 %v3543, 16
      %v3548 = vshll.u32 %v3544, 16
      %v3549 = vshrl.u32 %v3544, 16
      %vm3550 = vc.u32 %v3542, %v3546
      %v3551 = vsel %vm3550, 1, 0
      %v3552 = vadd.s32 %v3542, %v3546
      %v3553 = vadd.s32 %v3545, %v3551
      %vm3554 = vc.u32 %v3552, %v3548
      %v3555 = vsel %vm3554, 1, 0
      %v3556 = vadd.s32 %v3552, %v3548
      %v3557 = vadd.s32 %v3553, %v3555
      %v3558 = vadd.s32 %v3557, %v3547
      %v3559 = vadd.s32 %v3558, %v3549
      %v3560 = vshrl.u32 %v3559, 4
      %v3561 = vmul.u32 %v3560, 24
      %v3562 = vsub.s32 %v3538, %v3561
      %v3563 = vsub.s32 0, %v3562
      %v3564 = vsel %vm3536, %v3563, %v3562
      %vm3565 = vcmp.lt.s32.totalorder %v3153, 0
      %v3566 = vsub.s32 0, %v3153
      %v3567 = vsel %vm3565, %v3566, %v3153
      %v3568 = vand.u32 %v3567, 65535
      %v3569 = vshrl.u32 %v3567, 16
      %v3571 = vmul.u32 %v3568, 43691
      %v3572 = vmul.u32 %v3568, 43690
      %v3573 = vmul.u32 %v3569, 43691
      %v3574 = vmul.u32 %v3569, 43690
      %v3575 = vshll.u32 %v3572, 16
      %v3576 = vshrl.u32 %v3572, 16
      %v3577 = vshll.u32 %v3573, 16
      %v3578 = vshrl.u32 %v3573, 16
      %vm3579 = vc.u32 %v3571, %v3575
      %v3580 = vsel %vm3579, 1, 0
      %v3581 = vadd.s32 %v3571, %v3575
      %v3582 = vadd.s32 %v3574, %v3580
      %vm3583 = vc.u32 %v3581, %v3577
      %v3584 = vsel %vm3583, 1, 0
      %v3585 = vadd.s32 %v3581, %v3577
      %v3586 = vadd.s32 %v3582, %v3584
      %v3587 = vadd.s32 %v3586, %v3576
      %v3588 = vadd.s32 %v3587, %v3578
      %v3589 = vshrl.u32 %v3588, 4
      %v3590 = vmul.u32 %v3589, 24
      %v3591 = vsub.s32 %v3567, %v3590
      %v3592 = vsub.s32 0, %v3591
      %v3593 = vsel %vm3565, %v3592, %v3591
      %vm3594 = vcmp.lt.s32.totalorder %v3154, 0
      %v3595 = vsub.s32 0, %v3154
      %v3596 = vsel %vm3594, %v3595, %v3154
      %v3597 = vand.u32 %v3596, 65535
      %v3598 = vshrl.u32 %v3596, 16
      %v3600 = vmul.u32 %v3597, 43691
      %v3601 = vmul.u32 %v3597, 43690
      %v3602 = vmul.u32 %v3598, 43691
      %v3603 = vmul.u32 %v3598, 43690
      %v3604 = vshll.u32 %v3601, 16
      %v3605 = vshrl.u32 %v3601, 16
      %v3606 = vshll.u32 %v3602, 16
      %v3607 = vshrl.u32 %v3602, 16
      %vm3608 = vc.u32 %v3600, %v3604
      %v3609 = vsel %vm3608, 1, 0
      %v3610 = vadd.s32 %v3600, %v3604
      %v3611 = vadd.s32 %v3603, %v3609
      %vm3612 = vc.u32 %v3610, %v3606
      %v3613 = vsel %vm3612, 1, 0
      %v3614 = vadd.s32 %v3610, %v3606
      %v3615 = vadd.s32 %v3611, %v3613
      %v3616 = vadd.s32 %v3615, %v3605
      %v3617 = vadd.s32 %v3616, %v3607
      %v3618 = vshrl.u32 %v3617, 4
      %v3619 = vmul.u32 %v3618, 24
      %v3620 = vsub.s32 %v3596, %v3619
      %v3621 = vsub.s32 0, %v3620
      %v3622 = vsel %vm3594, %v3621, %v3620
      %vm3623 = vcmp.lt.s32.totalorder %v3155, 0
      %v3624 = vsub.s32 0, %v3155
      %v3625 = vsel %vm3623, %v3624, %v3155
      %v3626 = vand.u32 %v3625, 65535
      %v3627 = vshrl.u32 %v3625, 16
      %v3629 = vmul.u32 %v3626, 43691
      %v3630 = vmul.u32 %v3626, 43690
      %v3631 = vmul.u32 %v3627, 43691
      %v3632 = vmul.u32 %v3627, 43690
      %v3633 = vshll.u32 %v3630, 16
      %v3634 = vshrl.u32 %v3630, 16
      %v3635 = vshll.u32 %v3631, 16
      %v3636 = vshrl.u32 %v3631, 16
      %vm3637 = vc.u32 %v3629, %v3633
      %v3638 = vsel %vm3637, 1, 0
      %v3639 = vadd.s32 %v3629, %v3633
      %v3640 = vadd.s32 %v3632, %v3638
      %vm3641 = vc.u32 %v3639, %v3635
      %v3642 = vsel %vm3641, 1, 0
      %v3643 = vadd.s32 %v3639, %v3635
      %v3644 = vadd.s32 %v3640, %v3642
      %v3645 = vadd.s32 %v3644, %v3634
      %v3646 = vadd.s32 %v3645, %v3636
      %v3647 = vshrl.u32 %v3646, 4
      %v3648 = vmul.u32 %v3647, 24
      %v3649 = vsub.s32 %v3625, %v3648
      %v3650 = vsub.s32 0, %v3649
      %v3651 = vsel %vm3623, %v3650, %v3649
      %vm3652 = vcmp.lt.s32.totalorder %v3156, 0
      %v3653 = vsub.s32 0, %v3156
      %v3654 = vsel %vm3652, %v3653, %v3156
      %v3655 = vand.u32 %v3654, 65535
      %v3656 = vshrl.u32 %v3654, 16
      %v3658 = vmul.u32 %v3655, 43691
      %v3659 = vmul.u32 %v3655, 43690
      %v3660 = vmul.u32 %v3656, 43691
      %v3661 = vmul.u32 %v3656, 43690
      %v3662 = vshll.u32 %v3659, 16
      %v3663 = vshrl.u32 %v3659, 16
      %v3664 = vshll.u32 %v3660, 16
      %v3665 = vshrl.u32 %v3660, 16
      %vm3666 = vc.u32 %v3658, %v3662
      %v3667 = vsel %vm3666, 1, 0
      %v3668 = vadd.s32 %v3658, %v3662
      %v3669 = vadd.s32 %v3661, %v3667
      %vm3670 = vc.u32 %v3668, %v3664
      %v3671 = vsel %vm3670, 1, 0
      %v3672 = vadd.s32 %v3668, %v3664
      %v3673 = vadd.s32 %v3669, %v3671
      %v3674 = vadd.s32 %v3673, %v3663
      %v3675 = vadd.s32 %v3674, %v3665
      %v3676 = vshrl.u32 %v3675, 4
      %v3677 = vmul.u32 %v3676, 24
      %v3678 = vsub.s32 %v3654, %v3677
      %v3679 = vsub.s32 0, %v3678
      %v3680 = vsel %vm3652, %v3679, %v3678
      %vm3681 = vcmp.lt.s32.totalorder %v3157, 0
      %v3682 = vsub.s32 0, %v3157
      %v3683 = vsel %vm3681, %v3682, %v3157
      %v3684 = vand.u32 %v3683, 65535
      %v3685 = vshrl.u32 %v3683, 16
      %v3687 = vmul.u32 %v3684, 43691
      %v3688 = vmul.u32 %v3684, 43690
      %v3689 = vmul.u32 %v3685, 43691
      %v3690 = vmul.u32 %v3685, 43690
      %v3691 = vshll.u32 %v3688, 16
      %v3692 = vshrl.u32 %v3688, 16
      %v3693 = vshll.u32 %v3689, 16
      %v3694 = vshrl.u32 %v3689, 16
      %vm3695 = vc.u32 %v3687, %v3691
      %v3696 = vsel %vm3695, 1, 0
      %v3697 = vadd.s32 %v3687, %v3691
      %v3698 = vadd.s32 %v3690, %v3696
      %vm3699 = vc.u32 %v3697, %v3693
      %v3700 = vsel %vm3699, 1, 0
      %v3701 = vadd.s32 %v3697, %v3693
      %v3702 = vadd.s32 %v3698, %v3700
      %v3703 = vadd.s32 %v3702, %v3692
      %v3704 = vadd.s32 %v3703, %v3694
      %v3705 = vshrl.u32 %v3704, 4
      %v3706 = vmul.u32 %v3705, 24
      %v3707 = vsub.s32 %v3683, %v3706
      %v3708 = vsub.s32 0, %v3707
      %v3709 = vsel %vm3681, %v3708, %v3707
      %vm3710 = vcmp.lt.s32.totalorder %v3158, 0
      %v3711 = vsub.s32 0, %v3158
      %v3712 = vsel %vm3710, %v3711, %v3158
      %v3713 = vand.u32 %v3712, 65535
      %v3714 = vshrl.u32 %v3712, 16
      %v3716 = vmul.u32 %v3713, 43691
      %v3717 = vmul.u32 %v3713, 43690
      %v3718 = vmul.u32 %v3714, 43691
      %v3719 = vmul.u32 %v3714, 43690
      %v3720 = vshll.u32 %v3717, 16
      %v3721 = vshrl.u32 %v3717, 16
      %v3722 = vshll.u32 %v3718, 16
      %v3723 = vshrl.u32 %v3718, 16
      %vm3724 = vc.u32 %v3716, %v3720
      %v3725 = vsel %vm3724, 1, 0
      %v3726 = vadd.s32 %v3716, %v3720
      %v3727 = vadd.s32 %v3719, %v3725
      %vm3728 = vc.u32 %v3726, %v3722
      %v3729 = vsel %vm3728, 1, 0
      %v3730 = vadd.s32 %v3726, %v3722
      %v3731 = vadd.s32 %v3727, %v3729
      %v3732 = vadd.s32 %v3731, %v3721
      %v3733 = vadd.s32 %v3732, %v3723
      %v3734 = vshrl.u32 %v3733, 4
      %v3735 = vmul.u32 %v3734, 24
      %v3736 = vsub.s32 %v3712, %v3735
      %v3737 = vsub.s32 0, %v3736
      %v3738 = vsel %vm3710, %v3737, %v3736
      %vm3739 = vcmp.lt.s32.totalorder %v3159, 0
      %v3740 = vsub.s32 0, %v3159
      %v3741 = vsel %vm3739, %v3740, %v3159
      %v3742 = vand.u32 %v3741, 65535
      %v3743 = vshrl.u32 %v3741, 16
      %v3745 = vmul.u32 %v3742, 43691
      %v3746 = vmul.u32 %v3742, 43690
      %v3747 = vmul.u32 %v3743, 43691
      %v3748 = vmul.u32 %v3743, 43690
      %v3749 = vshll.u32 %v3746, 16
      %v3750 = vshrl.u32 %v3746, 16
      %v3751 = vshll.u32 %v3747, 16
      %v3752 = vshrl.u32 %v3747, 16
      %vm3753 = vc.u32 %v3745, %v3749
      %v3754 = vsel %vm3753, 1, 0
      %v3755 = vadd.s32 %v3745, %v3749
      %v3756 = vadd.s32 %v3748, %v3754
      %vm3757 = vc.u32 %v3755, %v3751
      %v3758 = vsel %vm3757, 1, 0
      %v3759 = vadd.s32 %v3755, %v3751
      %v3760 = vadd.s32 %v3756, %v3758
      %v3761 = vadd.s32 %v3760, %v3750
      %v3762 = vadd.s32 %v3761, %v3752
      %v3763 = vshrl.u32 %v3762, 4
      %v3764 = vmul.u32 %v3763, 24
      %v3765 = vsub.s32 %v3741, %v3764
      %v3766 = vsub.s32 0, %v3765
      %v3767 = vsel %vm3739, %v3766, %v3765
      %vm3768 = vcmp.lt.s32.totalorder %v3160, 0
      %v3769 = vsub.s32 0, %v3160
      %v3770 = vsel %vm3768, %v3769, %v3160
      %v3771 = vand.u32 %v3770, 65535
      %v3772 = vshrl.u32 %v3770, 16
      %v3774 = vmul.u32 %v3771, 43691
      %v3775 = vmul.u32 %v3771, 43690
      %v3776 = vmul.u32 %v3772, 43691
      %v3777 = vmul.u32 %v3772, 43690
      %v3778 = vshll.u32 %v3775, 16
      %v3779 = vshrl.u32 %v3775, 16
      %v3780 = vshll.u32 %v3776, 16
      %v3781 = vshrl.u32 %v3776, 16
      %vm3782 = vc.u32 %v3774, %v3778
      %v3783 = vsel %vm3782, 1, 0
      %v3784 = vadd.s32 %v3774, %v3778
      %v3785 = vadd.s32 %v3777, %v3783
      %vm3786 = vc.u32 %v3784, %v3780
      %v3787 = vsel %vm3786, 1, 0
      %v3788 = vadd.s32 %v3784, %v3780
      %v3789 = vadd.s32 %v3785, %v3787
      %v3790 = vadd.s32 %v3789, %v3779
      %v3791 = vadd.s32 %v3790, %v3781
      %v3792 = vshrl.u32 %v3791, 4
      %v3793 = vmul.u32 %v3792, 24
      %v3794 = vsub.s32 %v3770, %v3793
      %v3795 = vsub.s32 0, %v3794
      %v3796 = vsel %vm3768, %v3795, %v3794
      %vm3797 = vcmp.lt.s32.totalorder %v3161, 0
      %v3798 = vsub.s32 0, %v3161
      %v3799 = vsel %vm3797, %v3798, %v3161
      %v3800 = vand.u32 %v3799, 65535
      %v3801 = vshrl.u32 %v3799, 16
      %v3803 = vmul.u32 %v3800, 43691
      %v3804 = vmul.u32 %v3800, 43690
      %v3805 = vmul.u32 %v3801, 43691
      %v3806 = vmul.u32 %v3801, 43690
      %v3807 = vshll.u32 %v3804, 16
      %v3808 = vshrl.u32 %v3804, 16
      %v3809 = vshll.u32 %v3805, 16
      %v3810 = vshrl.u32 %v3805, 16
      %vm3811 = vc.u32 %v3803, %v3807
      %v3812 = vsel %vm3811, 1, 0
      %v3813 = vadd.s32 %v3803, %v3807
      %v3814 = vadd.s32 %v3806, %v3812
      %vm3815 = vc.u32 %v3813, %v3809
      %v3816 = vsel %vm3815, 1, 0
      %v3817 = vadd.s32 %v3813, %v3809
      %v3818 = vadd.s32 %v3814, %v3816
      %v3819 = vadd.s32 %v3818, %v3808
      %v3820 = vadd.s32 %v3819, %v3810
      %v3821 = vshrl.u32 %v3820, 4
      %v3822 = vmul.u32 %v3821, 24
      %v3823 = vsub.s32 %v3799, %v3822
      %v3824 = vsub.s32 0, %v3823
      %v3825 = vsel %vm3797, %v3824, %v3823
      %vm3826 = vcmp.lt.s32.totalorder %v3162, 0
      %v3827 = vsub.s32 0, %v3162
      %v3828 = vsel %vm3826, %v3827, %v3162
      %v3829 = vand.u32 %v3828, 65535
      %v3830 = vshrl.u32 %v3828, 16
      %v3832 = vmul.u32 %v3829, 43691
      %v3833 = vmul.u32 %v3829, 43690
      %v3834 = vmul.u32 %v3830, 43691
      %v3835 = vmul.u32 %v3830, 43690
      %v3836 = vshll.u32 %v3833, 16
      %v3837 = vshrl.u32 %v3833, 16
      %v3838 = vshll.u32 %v3834, 16
      %v3839 = vshrl.u32 %v3834, 16
      %vm3840 = vc.u32 %v3832, %v3836
      %v3841 = vsel %vm3840, 1, 0
      %v3842 = vadd.s32 %v3832, %v3836
      %v3843 = vadd.s32 %v3835, %v3841
      %vm3844 = vc.u32 %v3842, %v3838
      %v3845 = vsel %vm3844, 1, 0
      %v3846 = vadd.s32 %v3842, %v3838
      %v3847 = vadd.s32 %v3843, %v3845
      %v3848 = vadd.s32 %v3847, %v3837
      %v3849 = vadd.s32 %v3848, %v3839
      %v3850 = vshrl.u32 %v3849, 4
      %v3851 = vmul.u32 %v3850, 24
      %v3852 = vsub.s32 %v3828, %v3851
      %v3853 = vsub.s32 0, %v3852
      %v3854 = vsel %vm3826, %v3853, %v3852
      %vm3855 = vcmp.lt.s32.totalorder %v3163, 0
      %v3856 = vsub.s32 0, %v3163
      %v3857 = vsel %vm3855, %v3856, %v3163
      %v3858 = vand.u32 %v3857, 65535
      %v3859 = vshrl.u32 %v3857, 16
      %v3861 = vmul.u32 %v3858, 43691
      %v3862 = vmul.u32 %v3858, 43690
      %v3863 = vmul.u32 %v3859, 43691
      %v3864 = vmul.u32 %v3859, 43690
      %v3865 = vshll.u32 %v3862, 16
      %v3866 = vshrl.u32 %v3862, 16
      %v3867 = vshll.u32 %v3863, 16
      %v3868 = vshrl.u32 %v3863, 16
      %vm3869 = vc.u32 %v3861, %v3865
      %v3870 = vsel %vm3869, 1, 0
      %v3871 = vadd.s32 %v3861, %v3865
      %v3872 = vadd.s32 %v3864, %v3870
      %vm3873 = vc.u32 %v3871, %v3867
      %v3874 = vsel %vm3873, 1, 0
      %v3875 = vadd.s32 %v3871, %v3867
      %v3876 = vadd.s32 %v3872, %v3874
      %v3877 = vadd.s32 %v3876, %v3866
      %v3878 = vadd.s32 %v3877, %v3868
      %v3879 = vshrl.u32 %v3878, 4
      %v3880 = vmul.u32 %v3879, 24
      %v3881 = vsub.s32 %v3857, %v3880
      %v3882 = vsub.s32 0, %v3881
      %v3883 = vsel %vm3855, %v3882, %v3881
      %vm3884 = vcmp.lt.s32.totalorder %v3164, 0
      %v3885 = vsub.s32 0, %v3164
      %v3886 = vsel %vm3884, %v3885, %v3164
      %v3887 = vand.u32 %v3886, 65535
      %v3888 = vshrl.u32 %v3886, 16
      %v3890 = vmul.u32 %v3887, 43691
      %v3891 = vmul.u32 %v3887, 43690
      %v3892 = vmul.u32 %v3888, 43691
      %v3893 = vmul.u32 %v3888, 43690
      %v3894 = vshll.u32 %v3891, 16
      %v3895 = vshrl.u32 %v3891, 16
      %v3896 = vshll.u32 %v3892, 16
      %v3897 = vshrl.u32 %v3892, 16
      %vm3898 = vc.u32 %v3890, %v3894
      %v3899 = vsel %vm3898, 1, 0
      %v3900 = vadd.s32 %v3890, %v3894
      %v3901 = vadd.s32 %v3893, %v3899
      %vm3902 = vc.u32 %v3900, %v3896
      %v3903 = vsel %vm3902, 1, 0
      %v3904 = vadd.s32 %v3900, %v3896
      %v3905 = vadd.s32 %v3901, %v3903
      %v3906 = vadd.s32 %v3905, %v3895
      %v3907 = vadd.s32 %v3906, %v3897
      %v3908 = vshrl.u32 %v3907, 4
      %v3909 = vmul.u32 %v3908, 24
      %v3910 = vsub.s32 %v3886, %v3909
      %v3911 = vsub.s32 0, %v3910
      %v3912 = vsel %vm3884, %v3911, %v3910
      %vm3913 = vcmp.lt.s32.totalorder %v3165, 0
      %v3914 = vsub.s32 0, %v3165
      %v3915 = vsel %vm3913, %v3914, %v3165
      %v3916 = vand.u32 %v3915, 65535
      %v3917 = vshrl.u32 %v3915, 16
      %v3919 = vmul.u32 %v3916, 43691
      %v3920 = vmul.u32 %v3916, 43690
      %v3921 = vmul.u32 %v3917, 43691
      %v3922 = vmul.u32 %v3917, 43690
      %v3923 = vshll.u32 %v3920, 16
      %v3924 = vshrl.u32 %v3920, 16
      %v3925 = vshll.u32 %v3921, 16
      %v3926 = vshrl.u32 %v3921, 16
      %vm3927 = vc.u32 %v3919, %v3923
      %v3928 = vsel %vm3927, 1, 0
      %v3929 = vadd.s32 %v3919, %v3923
      %v3930 = vadd.s32 %v3922, %v3928
      %vm3931 = vc.u32 %v3929, %v3925
      %v3932 = vsel %vm3931, 1, 0
      %v3933 = vadd.s32 %v3929, %v3925
      %v3934 = vadd.s32 %v3930, %v3932
      %v3935 = vadd.s32 %v3934, %v3924
      %v3936 = vadd.s32 %v3935, %v3926
      %v3937 = vshrl.u32 %v3936, 4
      %v3938 = vmul.u32 %v3937, 24
      %v3939 = vsub.s32 %v3915, %v3938
      %v3940 = vsub.s32 0, %v3939
      %v3941 = vsel %vm3913, %v3940, %v3939
      %vm3942 = vcmp.lt.s32.totalorder %v3166, 0
      %v3943 = vsub.s32 0, %v3166
      %v3944 = vsel %vm3942, %v3943, %v3166
      %v3945 = vand.u32 %v3944, 65535
      %v3946 = vshrl.u32 %v3944, 16
      %v3948 = vmul.u32 %v3945, 43691
      %v3949 = vmul.u32 %v3945, 43690
      %v3950 = vmul.u32 %v3946, 43691
      %v3951 = vmul.u32 %v3946, 43690
      %v3952 = vshll.u32 %v3949, 16
      %v3953 = vshrl.u32 %v3949, 16
      %v3954 = vshll.u32 %v3950, 16
      %v3955 = vshrl.u32 %v3950, 16
      %vm3956 = vc.u32 %v3948, %v3952
      %v3957 = vsel %vm3956, 1, 0
      %v3958 = vadd.s32 %v3948, %v3952
      %v3959 = vadd.s32 %v3951, %v3957
      %vm3960 = vc.u32 %v3958, %v3954
      %v3961 = vsel %vm3960, 1, 0
      %v3962 = vadd.s32 %v3958, %v3954
      %v3963 = vadd.s32 %v3959, %v3961
      %v3964 = vadd.s32 %v3963, %v3953
      %v3965 = vadd.s32 %v3964, %v3955
      %v3966 = vshrl.u32 %v3965, 4
      %v3967 = vmul.u32 %v3966, 24
      %v3968 = vsub.s32 %v3944, %v3967
      %v3969 = vsub.s32 0, %v3968
      %v3970 = vsel %vm3942, %v3969, %v3968
      %vm3971 = vcmp.lt.s32.totalorder %v3167, 0
      %v3972 = vsub.s32 0, %v3167
      %v3973 = vsel %vm3971, %v3972, %v3167
      %v3974 = vand.u32 %v3973, 65535
      %v3975 = vshrl.u32 %v3973, 16
      %v3977 = vmul.u32 %v3974, 43691
      %v3978 = vmul.u32 %v3974, 43690
      %v3979 = vmul.u32 %v3975, 43691
      %v3980 = vmul.u32 %v3975, 43690
      %v3981 = vshll.u32 %v3978, 16
      %v3982 = vshrl.u32 %v3978, 16
      %v3983 = vshll.u32 %v3979, 16
      %v3984 = vshrl.u32 %v3979, 16
      %vm3985 = vc.u32 %v3977, %v3981
      %v3986 = vsel %vm3985, 1, 0
      %v3987 = vadd.s32 %v3977, %v3981
      %v3988 = vadd.s32 %v3980, %v3986
      %vm3989 = vc.u32 %v3987, %v3983
      %v3990 = vsel %vm3989, 1, 0
      %v3991 = vadd.s32 %v3987, %v3983
      %v3992 = vadd.s32 %v3988, %v3990
      %v3993 = vadd.s32 %v3992, %v3982
      %v3994 = vadd.s32 %v3993, %v3984
      %v3995 = vshrl.u32 %v3994, 4
      %v3996 = vmul.u32 %v3995, 24
      %v3997 = vsub.s32 %v3973, %v3996
      %v3998 = vsub.s32 0, %v3997
      %v3999 = vsel %vm3971, %v3998, %v3997
      %vm4000 = vcmp.lt.s32.totalorder %v3168, 0
      %v4001 = vsub.s32 0, %v3168
      %v4002 = vsel %vm4000, %v4001, %v3168
      %v4003 = vand.u32 %v4002, 65535
      %v4004 = vshrl.u32 %v4002, 16
      %v4006 = vmul.u32 %v4003, 43691
      %v4007 = vmul.u32 %v4003, 43690
      %v4008 = vmul.u32 %v4004, 43691
      %v4009 = vmul.u32 %v4004, 43690
      %v4010 = vshll.u32 %v4007, 16
      %v4011 = vshrl.u32 %v4007, 16
      %v4012 = vshll.u32 %v4008, 16
      %v4013 = vshrl.u32 %v4008, 16
      %vm4014 = vc.u32 %v4006, %v4010
      %v4015 = vsel %vm4014, 1, 0
      %v4016 = vadd.s32 %v4006, %v4010
      %v4017 = vadd.s32 %v4009, %v4015
      %vm4018 = vc.u32 %v4016, %v4012
      %v4019 = vsel %vm4018, 1, 0
      %v4020 = vadd.s32 %v4016, %v4012
      %v4021 = vadd.s32 %v4017, %v4019
      %v4022 = vadd.s32 %v4021, %v4011
      %v4023 = vadd.s32 %v4022, %v4013
      %v4024 = vshrl.u32 %v4023, 4
      %v4025 = vmul.u32 %v4024, 24
      %v4026 = vsub.s32 %v4002, %v4025
      %v4027 = vsub.s32 0, %v4026
      %v4028 = vsel %vm4000, %v4027, %v4026
      %vm4029 = vcmp.lt.s32.totalorder %v3169, 0
      %v4030 = vsub.s32 0, %v3169
      %v4031 = vsel %vm4029, %v4030, %v3169
      %v4032 = vand.u32 %v4031, 65535
      %v4033 = vshrl.u32 %v4031, 16
      %v4035 = vmul.u32 %v4032, 43691
      %v4036 = vmul.u32 %v4032, 43690
      %v4037 = vmul.u32 %v4033, 43691
      %v4038 = vmul.u32 %v4033, 43690
      %v4039 = vshll.u32 %v4036, 16
      %v4040 = vshrl.u32 %v4036, 16
      %v4041 = vshll.u32 %v4037, 16
      %v4042 = vshrl.u32 %v4037, 16
      %vm4043 = vc.u32 %v4035, %v4039
      %v4044 = vsel %vm4043, 1, 0
      %v4045 = vadd.s32 %v4035, %v4039
      %v4046 = vadd.s32 %v4038, %v4044
      %vm4047 = vc.u32 %v4045, %v4041
      %v4048 = vsel %vm4047, 1, 0
      %v4049 = vadd.s32 %v4045, %v4041
      %v4050 = vadd.s32 %v4046, %v4048
      %v4051 = vadd.s32 %v4050, %v4040
      %v4052 = vadd.s32 %v4051, %v4042
      %v4053 = vshrl.u32 %v4052, 4
      %v4054 = vmul.u32 %v4053, 24
      %v4055 = vsub.s32 %v4031, %v4054
      %v4056 = vsub.s32 0, %v4055
      %v4057 = vsel %vm4029, %v4056, %v4055
      %vm4058 = vcmp.lt.s32.totalorder %v3170, 0
      %v4059 = vsub.s32 0, %v3170
      %v4060 = vsel %vm4058, %v4059, %v3170
      %v4061 = vand.u32 %v4060, 65535
      %v4062 = vshrl.u32 %v4060, 16
      %v4064 = vmul.u32 %v4061, 43691
      %v4065 = vmul.u32 %v4061, 43690
      %v4066 = vmul.u32 %v4062, 43691
      %v4067 = vmul.u32 %v4062, 43690
      %v4068 = vshll.u32 %v4065, 16
      %v4069 = vshrl.u32 %v4065, 16
      %v4070 = vshll.u32 %v4066, 16
      %v4071 = vshrl.u32 %v4066, 16
      %vm4072 = vc.u32 %v4064, %v4068
      %v4073 = vsel %vm4072, 1, 0
      %v4074 = vadd.s32 %v4064, %v4068
      %v4075 = vadd.s32 %v4067, %v4073
      %vm4076 = vc.u32 %v4074, %v4070
      %v4077 = vsel %vm4076, 1, 0
      %v4078 = vadd.s32 %v4074, %v4070
      %v4079 = vadd.s32 %v4075, %v4077
      %v4080 = vadd.s32 %v4079, %v4069
      %v4081 = vadd.s32 %v4080, %v4071
      %v4082 = vshrl.u32 %v4081, 4
      %v4083 = vmul.u32 %v4082, 24
      %v4084 = vsub.s32 %v4060, %v4083
      %v4085 = vsub.s32 0, %v4084
      %v4086 = vsel %vm4058, %v4085, %v4084
      %vm4087 = vcmp.lt.s32.totalorder %v3171, 0
      %v4088 = vsub.s32 0, %v3171
      %v4089 = vsel %vm4087, %v4088, %v3171
      %v4090 = vand.u32 %v4089, 65535
      %v4091 = vshrl.u32 %v4089, 16
      %v4093 = vmul.u32 %v4090, 43691
      %v4094 = vmul.u32 %v4090, 43690
      %v4095 = vmul.u32 %v4091, 43691
      %v4096 = vmul.u32 %v4091, 43690
      %v4097 = vshll.u32 %v4094, 16
      %v4098 = vshrl.u32 %v4094, 16
      %v4099 = vshll.u32 %v4095, 16
      %v4100 = vshrl.u32 %v4095, 16
      %vm4101 = vc.u32 %v4093, %v4097
      %v4102 = vsel %vm4101, 1, 0
      %v4103 = vadd.s32 %v4093, %v4097
      %v4104 = vadd.s32 %v4096, %v4102
      %vm4105 = vc.u32 %v4103, %v4099
      %v4106 = vsel %vm4105, 1, 0
      %v4107 = vadd.s32 %v4103, %v4099
      %v4108 = vadd.s32 %v4104, %v4106
      %v4109 = vadd.s32 %v4108, %v4098
      %v4110 = vadd.s32 %v4109, %v4100
      %v4111 = vshrl.u32 %v4110, 4
      %v4112 = vmul.u32 %v4111, 24
      %v4113 = vsub.s32 %v4089, %v4112
      %v4114 = vsub.s32 0, %v4113
      %v4115 = vsel %vm4087, %v4114, %v4113
      %vm4116 = vcmp.lt.s32.totalorder %v3172, 0
      %v4117 = vsub.s32 0, %v3172
      %v4118 = vsel %vm4116, %v4117, %v3172
      %v4119 = vand.u32 %v4118, 65535
      %v4120 = vshrl.u32 %v4118, 16
      %v4122 = vmul.u32 %v4119, 43691
      %v4123 = vmul.u32 %v4119, 43690
      %v4124 = vmul.u32 %v4120, 43691
      %v4125 = vmul.u32 %v4120, 43690
      %v4126 = vshll.u32 %v4123, 16
      %v4127 = vshrl.u32 %v4123, 16
      %v4128 = vshll.u32 %v4124, 16
      %v4129 = vshrl.u32 %v4124, 16
      %vm4130 = vc.u32 %v4122, %v4126
      %v4131 = vsel %vm4130, 1, 0
      %v4132 = vadd.s32 %v4122, %v4126
      %v4133 = vadd.s32 %v4125, %v4131
      %vm4134 = vc.u32 %v4132, %v4128
      %v4135 = vsel %vm4134, 1, 0
      %v4136 = vadd.s32 %v4132, %v4128
      %v4137 = vadd.s32 %v4133, %v4135
      %v4138 = vadd.s32 %v4137, %v4127
      %v4139 = vadd.s32 %v4138, %v4129
      %v4140 = vshrl.u32 %v4139, 4
      %v4141 = vmul.u32 %v4140, 24
      %v4142 = vsub.s32 %v4118, %v4141
      %v4143 = vsub.s32 0, %v4142
      %v4144 = vsel %vm4116, %v4143, %v4142
      %vm4145 = vcmp.lt.s32.totalorder %v3173, 0
      %v4146 = vsub.s32 0, %v3173
      %v4147 = vsel %vm4145, %v4146, %v3173
      %v4148 = vand.u32 %v4147, 65535
      %v4149 = vshrl.u32 %v4147, 16
      %v4151 = vmul.u32 %v4148, 43691
      %v4152 = vmul.u32 %v4148, 43690
      %v4153 = vmul.u32 %v4149, 43691
      %v4154 = vmul.u32 %v4149, 43690
      %v4155 = vshll.u32 %v4152, 16
      %v4156 = vshrl.u32 %v4152, 16
      %v4157 = vshll.u32 %v4153, 16
      %v4158 = vshrl.u32 %v4153, 16
      %vm4159 = vc.u32 %v4151, %v4155
      %v4160 = vsel %vm4159, 1, 0
      %v4161 = vadd.s32 %v4151, %v4155
      %v4162 = vadd.s32 %v4154, %v4160
      %vm4163 = vc.u32 %v4161, %v4157
      %v4164 = vsel %vm4163, 1, 0
      %v4165 = vadd.s32 %v4161, %v4157
      %v4166 = vadd.s32 %v4162, %v4164
      %v4167 = vadd.s32 %v4166, %v4156
      %v4168 = vadd.s32 %v4167, %v4158
      %v4169 = vshrl.u32 %v4168, 4
      %v4170 = vmul.u32 %v4169, 24
      %v4171 = vsub.s32 %v4147, %v4170
      %v4172 = vsub.s32 0, %v4171
      %v4173 = vsel %vm4145, %v4172, %v4171
      %vm4174 = vcmp.lt.s32.totalorder %v3174, 0
      %v4175 = vsub.s32 0, %v3174
      %v4176 = vsel %vm4174, %v4175, %v3174
      %v4177 = vand.u32 %v4176, 65535
      %v4178 = vshrl.u32 %v4176, 16
      %v4180 = vmul.u32 %v4177, 43691
      %v4181 = vmul.u32 %v4177, 43690
      %v4182 = vmul.u32 %v4178, 43691
      %v4183 = vmul.u32 %v4178, 43690
      %v4184 = vshll.u32 %v4181, 16
      %v4185 = vshrl.u32 %v4181, 16
      %v4186 = vshll.u32 %v4182, 16
      %v4187 = vshrl.u32 %v4182, 16
      %vm4188 = vc.u32 %v4180, %v4184
      %v4189 = vsel %vm4188, 1, 0
      %v4190 = vadd.s32 %v4180, %v4184
      %v4191 = vadd.s32 %v4183, %v4189
      %vm4192 = vc.u32 %v4190, %v4186
      %v4193 = vsel %vm4192, 1, 0
      %v4194 = vadd.s32 %v4190, %v4186
      %v4195 = vadd.s32 %v4191, %v4193
      %v4196 = vadd.s32 %v4195, %v4185
      %v4197 = vadd.s32 %v4196, %v4187
      %v4198 = vshrl.u32 %v4197, 4
      %v4199 = vmul.u32 %v4198, 24
      %v4200 = vsub.s32 %v4176, %v4199
      %v4201 = vsub.s32 0, %v4200
      %v4202 = vsel %vm4174, %v4201, %v4200
      %vm4203 = vcmp.lt.s32.totalorder %v3175, 0
      %v4204 = vsub.s32 0, %v3175
      %v4205 = vsel %vm4203, %v4204, %v3175
      %v4206 = vand.u32 %v4205, 65535
      %v4207 = vshrl.u32 %v4205, 16
      %v4209 = vmul.u32 %v4206, 43691
      %v4210 = vmul.u32 %v4206, 43690
      %v4211 = vmul.u32 %v4207, 43691
      %v4212 = vmul.u32 %v4207, 43690
      %v4213 = vshll.u32 %v4210, 16
      %v4214 = vshrl.u32 %v4210, 16
      %v4215 = vshll.u32 %v4211, 16
      %v4216 = vshrl.u32 %v4211, 16
      %vm4217 = vc.u32 %v4209, %v4213
      %v4218 = vsel %vm4217, 1, 0
      %v4219 = vadd.s32 %v4209, %v4213
      %v4220 = vadd.s32 %v4212, %v4218
      %vm4221 = vc.u32 %v4219, %v4215
      %v4222 = vsel %vm4221, 1, 0
      %v4223 = vadd.s32 %v4219, %v4215
      %v4224 = vadd.s32 %v4220, %v4222
      %v4225 = vadd.s32 %v4224, %v4214
      %v4226 = vadd.s32 %v4225, %v4216
      %v4227 = vshrl.u32 %v4226, 4
      %v4228 = vmul.u32 %v4227, 24
      %v4229 = vsub.s32 %v4205, %v4228
      %v4230 = vsub.s32 0, %v4229
      %v4231 = vsel %vm4203, %v4230, %v4229
      %vm4232 = vcmp.lt.s32.totalorder %v3176, 0
      %v4233 = vsub.s32 0, %v3176
      %v4234 = vsel %vm4232, %v4233, %v3176
      %v4235 = vand.u32 %v4234, 65535
      %v4236 = vshrl.u32 %v4234, 16
      %v4238 = vmul.u32 %v4235, 43691
      %v4239 = vmul.u32 %v4235, 43690
      %v4240 = vmul.u32 %v4236, 43691
      %v4241 = vmul.u32 %v4236, 43690
      %v4242 = vshll.u32 %v4239, 16
      %v4243 = vshrl.u32 %v4239, 16
      %v4244 = vshll.u32 %v4240, 16
      %v4245 = vshrl.u32 %v4240, 16
      %vm4246 = vc.u32 %v4238, %v4242
      %v4247 = vsel %vm4246, 1, 0
      %v4248 = vadd.s32 %v4238, %v4242
      %v4249 = vadd.s32 %v4241, %v4247
      %vm4250 = vc.u32 %v4248, %v4244
      %v4251 = vsel %vm4250, 1, 0
      %v4252 = vadd.s32 %v4248, %v4244
      %v4253 = vadd.s32 %v4249, %v4251
      %v4254 = vadd.s32 %v4253, %v4243
      %v4255 = vadd.s32 %v4254, %v4245
      %v4256 = vshrl.u32 %v4255, 4
      %v4257 = vmul.u32 %v4256, 24
      %v4258 = vsub.s32 %v4234, %v4257
      %v4259 = vsub.s32 0, %v4258
      %v4260 = vsel %vm4232, %v4259, %v4258
      %vm4261 = vcmp.lt.s32.totalorder %v3177, 0
      %v4262 = vsub.s32 0, %v3177
      %v4263 = vsel %vm4261, %v4262, %v3177
      %v4264 = vand.u32 %v4263, 65535
      %v4265 = vshrl.u32 %v4263, 16
      %v4267 = vmul.u32 %v4264, 43691
      %v4268 = vmul.u32 %v4264, 43690
      %v4269 = vmul.u32 %v4265, 43691
      %v4270 = vmul.u32 %v4265, 43690
      %v4271 = vshll.u32 %v4268, 16
      %v4272 = vshrl.u32 %v4268, 16
      %v4273 = vshll.u32 %v4269, 16
      %v4274 = vshrl.u32 %v4269, 16
      %vm4275 = vc.u32 %v4267, %v4271
      %v4276 = vsel %vm4275, 1, 0
      %v4277 = vadd.s32 %v4267, %v4271
      %v4278 = vadd.s32 %v4270, %v4276
      %vm4279 = vc.u32 %v4277, %v4273
      %v4280 = vsel %vm4279, 1, 0
      %v4281 = vadd.s32 %v4277, %v4273
      %v4282 = vadd.s32 %v4278, %v4280
      %v4283 = vadd.s32 %v4282, %v4272
      %v4284 = vadd.s32 %v4283, %v4274
      %v4285 = vshrl.u32 %v4284, 4
      %v4286 = vmul.u32 %v4285, 24
      %v4287 = vsub.s32 %v4263, %v4286
      %v4288 = vsub.s32 0, %v4287
      %v4289 = vsel %vm4261, %v4288, %v4287
      %vm4290 = vcmp.lt.s32.totalorder %v3178, 0
      %v4291 = vsub.s32 0, %v3178
      %v4292 = vsel %vm4290, %v4291, %v3178
      %v4293 = vand.u32 %v4292, 65535
      %v4294 = vshrl.u32 %v4292, 16
      %v4296 = vmul.u32 %v4293, 43691
      %v4297 = vmul.u32 %v4293, 43690
      %v4298 = vmul.u32 %v4294, 43691
      %v4299 = vmul.u32 %v4294, 43690
      %v4300 = vshll.u32 %v4297, 16
      %v4301 = vshrl.u32 %v4297, 16
      %v4302 = vshll.u32 %v4298, 16
      %v4303 = vshrl.u32 %v4298, 16
      %vm4304 = vc.u32 %v4296, %v4300
      %v4305 = vsel %vm4304, 1, 0
      %v4306 = vadd.s32 %v4296, %v4300
      %v4307 = vadd.s32 %v4299, %v4305
      %vm4308 = vc.u32 %v4306, %v4302
      %v4309 = vsel %vm4308, 1, 0
      %v4310 = vadd.s32 %v4306, %v4302
      %v4311 = vadd.s32 %v4307, %v4309
      %v4312 = vadd.s32 %v4311, %v4301
      %v4313 = vadd.s32 %v4312, %v4303
      %v4314 = vshrl.u32 %v4313, 4
      %v4315 = vmul.u32 %v4314, 24
      %v4316 = vsub.s32 %v4292, %v4315
      %v4317 = vsub.s32 0, %v4316
      %v4318 = vsel %vm4290, %v4317, %v4316
      %vm4319 = vcmp.lt.s32.totalorder %v3179, 0
      %v4320 = vsub.s32 0, %v3179
      %v4321 = vsel %vm4319, %v4320, %v3179
      %v4322 = vand.u32 %v4321, 65535
      %v4323 = vshrl.u32 %v4321, 16
      %v4325 = vmul.u32 %v4322, 43691
      %v4326 = vmul.u32 %v4322, 43690
      %v4327 = vmul.u32 %v4323, 43691
      %v4328 = vmul.u32 %v4323, 43690
      %v4329 = vshll.u32 %v4326, 16
      %v4330 = vshrl.u32 %v4326, 16
      %v4331 = vshll.u32 %v4327, 16
      %v4332 = vshrl.u32 %v4327, 16
      %vm4333 = vc.u32 %v4325, %v4329
      %v4334 = vsel %vm4333, 1, 0
      %v4335 = vadd.s32 %v4325, %v4329
      %v4336 = vadd.s32 %v4328, %v4334
      %vm4337 = vc.u32 %v4335, %v4331
      %v4338 = vsel %vm4337, 1, 0
      %v4339 = vadd.s32 %v4335, %v4331
      %v4340 = vadd.s32 %v4336, %v4338
      %v4341 = vadd.s32 %v4340, %v4330
      %v4342 = vadd.s32 %v4341, %v4332
      %v4343 = vshrl.u32 %v4342, 4
      %v4344 = vmul.u32 %v4343, 24
      %v4345 = vsub.s32 %v4321, %v4344
      %v4346 = vsub.s32 0, %v4345
      %v4347 = vsel %vm4319, %v4346, %v4345
      %vm4348 = vcmp.lt.s32.totalorder %v3180, 0
      %v4349 = vsub.s32 0, %v3180
      %v4350 = vsel %vm4348, %v4349, %v3180
      %v4351 = vand.u32 %v4350, 65535
      %v4352 = vshrl.u32 %v4350, 16
      %v4354 = vmul.u32 %v4351, 43691
      %v4355 = vmul.u32 %v4351, 43690
      %v4356 = vmul.u32 %v4352, 43691
      %v4357 = vmul.u32 %v4352, 43690
      %v4358 = vshll.u32 %v4355, 16
      %v4359 = vshrl.u32 %v4355, 16
      %v4360 = vshll.u32 %v4356, 16
      %v4361 = vshrl.u32 %v4356, 16
      %vm4362 = vc.u32 %v4354, %v4358
      %v4363 = vsel %vm4362, 1, 0
      %v4364 = vadd.s32 %v4354, %v4358
      %v4365 = vadd.s32 %v4357, %v4363
      %vm4366 = vc.u32 %v4364, %v4360
      %v4367 = vsel %vm4366, 1, 0
      %v4368 = vadd.s32 %v4364, %v4360
      %v4369 = vadd.s32 %v4365, %v4367
      %v4370 = vadd.s32 %v4369, %v4359
      %v4371 = vadd.s32 %v4370, %v4361
      %v4372 = vshrl.u32 %v4371, 4
      %v4373 = vmul.u32 %v4372, 24
      %v4374 = vsub.s32 %v4350, %v4373
      %v4375 = vsub.s32 0, %v4374
      %v4376 = vsel %vm4348, %v4375, %v4374
      %vm4377 = vcmp.lt.s32.totalorder %v3181, 0
      %v4378 = vsub.s32 0, %v3181
      %v4379 = vsel %vm4377, %v4378, %v3181
      %v4380 = vand.u32 %v4379, 65535
      %v4381 = vshrl.u32 %v4379, 16
      %v4383 = vmul.u32 %v4380, 43691
      %v4384 = vmul.u32 %v4380, 43690
      %v4385 = vmul.u32 %v4381, 43691
      %v4386 = vmul.u32 %v4381, 43690
      %v4387 = vshll.u32 %v4384, 16
      %v4388 = vshrl.u32 %v4384, 16
      %v4389 = vshll.u32 %v4385, 16
      %v4390 = vshrl.u32 %v4385, 16
      %vm4391 = vc.u32 %v4383, %v4387
      %v4392 = vsel %vm4391, 1, 0
      %v4393 = vadd.s32 %v4383, %v4387
      %v4394 = vadd.s32 %v4386, %v4392
      %vm4395 = vc.u32 %v4393, %v4389
      %v4396 = vsel %vm4395, 1, 0
      %v4397 = vadd.s32 %v4393, %v4389
      %v4398 = vadd.s32 %v4394, %v4396
      %v4399 = vadd.s32 %v4398, %v4388
      %v4400 = vadd.s32 %v4399, %v4390
      %v4401 = vshrl.u32 %v4400, 4
      %v4402 = vmul.u32 %v4401, 24
      %v4403 = vsub.s32 %v4379, %v4402
      %v4404 = vsub.s32 0, %v4403
      %v4405 = vsel %vm4377, %v4404, %v4403
      %vm4406 = vcmp.lt.s32.totalorder %v3182, 0
      %v4407 = vsub.s32 0, %v3182
      %v4408 = vsel %vm4406, %v4407, %v3182
      %v4409 = vand.u32 %v4408, 65535
      %v4410 = vshrl.u32 %v4408, 16
      %v4412 = vmul.u32 %v4409, 43691
      %v4413 = vmul.u32 %v4409, 43690
      %v4414 = vmul.u32 %v4410, 43691
      %v4415 = vmul.u32 %v4410, 43690
      %v4416 = vshll.u32 %v4413, 16
      %v4417 = vshrl.u32 %v4413, 16
      %v4418 = vshll.u32 %v4414, 16
      %v4419 = vshrl.u32 %v4414, 16
      %vm4420 = vc.u32 %v4412, %v4416
      %v4421 = vsel %vm4420, 1, 0
      %v4422 = vadd.s32 %v4412, %v4416
      %v4423 = vadd.s32 %v4415, %v4421
      %vm4424 = vc.u32 %v4422, %v4418
      %v4425 = vsel %vm4424, 1, 0
      %v4426 = vadd.s32 %v4422, %v4418
      %v4427 = vadd.s32 %v4423, %v4425
      %v4428 = vadd.s32 %v4427, %v4417
      %v4429 = vadd.s32 %v4428, %v4419
      %v4430 = vshrl.u32 %v4429, 4
      %v4431 = vmul.u32 %v4430, 24
      %v4432 = vsub.s32 %v4408, %v4431
      %v4433 = vsub.s32 0, %v4432
      %v4434 = vsel %vm4406, %v4433, %v4432
      %vm4435 = vcmp.lt.s32.totalorder %v3183, 0
      %v4436 = vsub.s32 0, %v3183
      %v4437 = vsel %vm4435, %v4436, %v3183
      %v4438 = vand.u32 %v4437, 65535
      %v4439 = vshrl.u32 %v4437, 16
      %v4441 = vmul.u32 %v4438, 43691
      %v4442 = vmul.u32 %v4438, 43690
      %v4443 = vmul.u32 %v4439, 43691
      %v4444 = vmul.u32 %v4439, 43690
      %v4445 = vshll.u32 %v4442, 16
      %v4446 = vshrl.u32 %v4442, 16
      %v4447 = vshll.u32 %v4443, 16
      %v4448 = vshrl.u32 %v4443, 16
      %vm4449 = vc.u32 %v4441, %v4445
      %v4450 = vsel %vm4449, 1, 0
      %v4451 = vadd.s32 %v4441, %v4445
      %v4452 = vadd.s32 %v4444, %v4450
      %vm4453 = vc.u32 %v4451, %v4447
      %v4454 = vsel %vm4453, 1, 0
      %v4455 = vadd.s32 %v4451, %v4447
      %v4456 = vadd.s32 %v4452, %v4454
      %v4457 = vadd.s32 %v4456, %v4446
      %v4458 = vadd.s32 %v4457, %v4448
      %v4459 = vshrl.u32 %v4458, 4
      %v4460 = vmul.u32 %v4459, 24
      %v4461 = vsub.s32 %v4437, %v4460
      %v4462 = vsub.s32 0, %v4461
      %v4463 = vsel %vm4435, %v4462, %v4461
      %vm4464 = vcmp.lt.s32.totalorder %v3184, 0
      %v4465 = vsub.s32 0, %v3184
      %v4466 = vsel %vm4464, %v4465, %v3184
      %v4467 = vand.u32 %v4466, 65535
      %v4468 = vshrl.u32 %v4466, 16
      %v4470 = vmul.u32 %v4467, 43691
      %v4471 = vmul.u32 %v4467, 43690
      %v4472 = vmul.u32 %v4468, 43691
      %v4473 = vmul.u32 %v4468, 43690
      %v4474 = vshll.u32 %v4471, 16
      %v4475 = vshrl.u32 %v4471, 16
      %v4476 = vshll.u32 %v4472, 16
      %v4477 = vshrl.u32 %v4472, 16
      %vm4478 = vc.u32 %v4470, %v4474
      %v4479 = vsel %vm4478, 1, 0
      %v4480 = vadd.s32 %v4470, %v4474
      %v4481 = vadd.s32 %v4473, %v4479
      %vm4482 = vc.u32 %v4480, %v4476
      %v4483 = vsel %vm4482, 1, 0
      %v4484 = vadd.s32 %v4480, %v4476
      %v4485 = vadd.s32 %v4481, %v4483
      %v4486 = vadd.s32 %v4485, %v4475
      %v4487 = vadd.s32 %v4486, %v4477
      %v4488 = vshrl.u32 %v4487, 4
      %v4489 = vmul.u32 %v4488, 24
      %v4490 = vsub.s32 %v4466, %v4489
      %v4491 = vsub.s32 0, %v4490
      %v4492 = vsel %vm4464, %v4491, %v4490
      %vm4493 = vcmp.lt.s32.totalorder %v3185, 0
      %v4494 = vsub.s32 0, %v3185
      %v4495 = vsel %vm4493, %v4494, %v3185
      %v4496 = vand.u32 %v4495, 65535
      %v4497 = vshrl.u32 %v4495, 16
      %v4499 = vmul.u32 %v4496, 43691
      %v4500 = vmul.u32 %v4496, 43690
      %v4501 = vmul.u32 %v4497, 43691
      %v4502 = vmul.u32 %v4497, 43690
      %v4503 = vshll.u32 %v4500, 16
      %v4504 = vshrl.u32 %v4500, 16
      %v4505 = vshll.u32 %v4501, 16
      %v4506 = vshrl.u32 %v4501, 16
      %vm4507 = vc.u32 %v4499, %v4503
      %v4508 = vsel %vm4507, 1, 0
      %v4509 = vadd.s32 %v4499, %v4503
      %v4510 = vadd.s32 %v4502, %v4508
      %vm4511 = vc.u32 %v4509, %v4505
      %v4512 = vsel %vm4511, 1, 0
      %v4513 = vadd.s32 %v4509, %v4505
      %v4514 = vadd.s32 %v4510, %v4512
      %v4515 = vadd.s32 %v4514, %v4504
      %v4516 = vadd.s32 %v4515, %v4506
      %v4517 = vshrl.u32 %v4516, 4
      %v4518 = vmul.u32 %v4517, 24
      %v4519 = vsub.s32 %v4495, %v4518
      %v4520 = vsub.s32 0, %v4519
      %v4521 = vsel %vm4493, %v4520, %v4519
      %vm4522 = vcmp.lt.s32.totalorder %v3186, 0
      %v4523 = vsub.s32 0, %v3186
      %v4524 = vsel %vm4522, %v4523, %v3186
      %v4525 = vand.u32 %v4524, 65535
      %v4526 = vshrl.u32 %v4524, 16
      %v4528 = vmul.u32 %v4525, 43691
      %v4529 = vmul.u32 %v4525, 43690
      %v4530 = vmul.u32 %v4526, 43691
      %v4531 = vmul.u32 %v4526, 43690
      %v4532 = vshll.u32 %v4529, 16
      %v4533 = vshrl.u32 %v4529, 16
      %v4534 = vshll.u32 %v4530, 16
      %v4535 = vshrl.u32 %v4530, 16
      %vm4536 = vc.u32 %v4528, %v4532
      %v4537 = vsel %vm4536, 1, 0
      %v4538 = vadd.s32 %v4528, %v4532
      %v4539 = vadd.s32 %v4531, %v4537
      %vm4540 = vc.u32 %v4538, %v4534
      %v4541 = vsel %vm4540, 1, 0
      %v4542 = vadd.s32 %v4538, %v4534
      %v4543 = vadd.s32 %v4539, %v4541
      %v4544 = vadd.s32 %v4543, %v4533
      %v4545 = vadd.s32 %v4544, %v4535
      %v4546 = vshrl.u32 %v4545, 4
      %v4547 = vmul.u32 %v4546, 24
      %v4548 = vsub.s32 %v4524, %v4547
      %v4549 = vsub.s32 0, %v4548
      %v4550 = vsel %vm4522, %v4549, %v4548
      %vm4551 = vcmp.lt.s32.totalorder %v3187, 0
      %v4552 = vsub.s32 0, %v3187
      %v4553 = vsel %vm4551, %v4552, %v3187
      %v4554 = vand.u32 %v4553, 65535
      %v4555 = vshrl.u32 %v4553, 16
      %v4557 = vmul.u32 %v4554, 43691
      %v4558 = vmul.u32 %v4554, 43690
      %v4559 = vmul.u32 %v4555, 43691
      %v4560 = vmul.u32 %v4555, 43690
      %v4561 = vshll.u32 %v4558, 16
      %v4562 = vshrl.u32 %v4558, 16
      %v4563 = vshll.u32 %v4559, 16
      %v4564 = vshrl.u32 %v4559, 16
      %vm4565 = vc.u32 %v4557, %v4561
      %v4566 = vsel %vm4565, 1, 0
      %v4567 = vadd.s32 %v4557, %v4561
      %v4568 = vadd.s32 %v4560, %v4566
      %vm4569 = vc.u32 %v4567, %v4563
      %v4570 = vsel %vm4569, 1, 0
      %v4571 = vadd.s32 %v4567, %v4563
      %v4572 = vadd.s32 %v4568, %v4570
      %v4573 = vadd.s32 %v4572, %v4562
      %v4574 = vadd.s32 %v4573, %v4564
      %v4575 = vshrl.u32 %v4574, 4
      %v4576 = vmul.u32 %v4575, 24
      %v4577 = vsub.s32 %v4553, %v4576
      %v4578 = vsub.s32 0, %v4577
      %v4579 = vsel %vm4551, %v4578, %v4577
      %vm4580 = vcmp.ne.s32.totalorder %v3216, 0
      %vm4581 = vcmp.ne.s32.totalorder %v3245, 0
      %vm4582 = vcmp.ne.s32.totalorder %v3274, 0
      %vm4583 = vcmp.ne.s32.totalorder %v3303, 0
      %vm4584 = vcmp.ne.s32.totalorder %v3332, 0
      %vm4585 = vcmp.ne.s32.totalorder %v3361, 0
      %vm4586 = vcmp.ne.s32.totalorder %v3390, 0
      %vm4587 = vcmp.ne.s32.totalorder %v3419, 0
      %vm4588 = vcmp.ne.s32.totalorder %v3448, 0
      %vm4589 = vcmp.ne.s32.totalorder %v3477, 0
      %vm4590 = vcmp.ne.s32.totalorder %v3506, 0
      %vm4591 = vcmp.ne.s32.totalorder %v3535, 0
      %vm4592 = vcmp.ne.s32.totalorder %v3564, 0
      %vm4593 = vcmp.ne.s32.totalorder %v3593, 0
      %vm4594 = vcmp.ne.s32.totalorder %v3622, 0
      %vm4595 = vcmp.ne.s32.totalorder %v3651, 0
      %vm4596 = vcmp.ne.s32.totalorder %v3680, 0
      %vm4597 = vcmp.ne.s32.totalorder %v3709, 0
      %vm4598 = vcmp.ne.s32.totalorder %v3738, 0
      %vm4599 = vcmp.ne.s32.totalorder %v3767, 0
      %vm4600 = vcmp.ne.s32.totalorder %v3796, 0
      %vm4601 = vcmp.ne.s32.totalorder %v3825, 0
      %vm4602 = vcmp.ne.s32.totalorder %v3854, 0
      %vm4603 = vcmp.ne.s32.totalorder %v3883, 0
      %vm4604 = vcmp.ne.s32.totalorder %v3912, 0
      %vm4605 = vcmp.ne.s32.totalorder %v3941, 0
      %vm4606 = vcmp.ne.s32.totalorder %v3970, 0
      %vm4607 = vcmp.ne.s32.totalorder %v3999, 0
      %vm4608 = vcmp.ne.s32.totalorder %v4028, 0
      %vm4609 = vcmp.ne.s32.totalorder %v4057, 0
      %vm4610 = vcmp.ne.s32.totalorder %v4086, 0
      %vm4611 = vcmp.ne.s32.totalorder %v4115, 0
      %vm4612 = vcmp.ne.s32.totalorder %v4144, 0
      %vm4613 = vcmp.ne.s32.totalorder %v4173, 0
      %vm4614 = vcmp.ne.s32.totalorder %v4202, 0
      %vm4615 = vcmp.ne.s32.totalorder %v4231, 0
      %vm4616 = vcmp.ne.s32.totalorder %v4260, 0
      %vm4617 = vcmp.ne.s32.totalorder %v4289, 0
      %vm4618 = vcmp.ne.s32.totalorder %v4318, 0
      %vm4619 = vcmp.ne.s32.totalorder %v4347, 0
      %vm4620 = vcmp.ne.s32.totalorder %v4376, 0
      %vm4621 = vcmp.ne.s32.totalorder %v4405, 0
      %vm4622 = vcmp.ne.s32.totalorder %v4434, 0
      %vm4623 = vcmp.ne.s32.totalorder %v4463, 0
      %vm4624 = vcmp.ne.s32.totalorder %v4492, 0
      %vm4625 = vcmp.ne.s32.totalorder %v4521, 0
      %vm4626 = vcmp.ne.s32.totalorder %v4550, 0
      %vm4627 = vcmp.ne.s32.totalorder %v4579, 0
      %vm4628 = vcmp.lt.s32.totalorder %v3216, 0
      %vm4629 = vcmp.lt.s32.totalorder %v3245, 0
      %vm4630 = vcmp.lt.s32.totalorder %v3274, 0
      %vm4631 = vcmp.lt.s32.totalorder %v3303, 0
      %vm4632 = vcmp.lt.s32.totalorder %v3332, 0
      %vm4633 = vcmp.lt.s32.totalorder %v3361, 0
      %vm4634 = vcmp.lt.s32.totalorder %v3390, 0
      %vm4635 = vcmp.lt.s32.totalorder %v3419, 0
      %vm4636 = vcmp.lt.s32.totalorder %v3448, 0
      %vm4637 = vcmp.lt.s32.totalorder %v3477, 0
      %vm4638 = vcmp.lt.s32.totalorder %v3506, 0
      %vm4639 = vcmp.lt.s32.totalorder %v3535, 0
      %vm4640 = vcmp.lt.s32.totalorder %v3564, 0
      %vm4641 = vcmp.lt.s32.totalorder %v3593, 0
      %vm4642 = vcmp.lt.s32.totalorder %v3622, 0
      %vm4643 = vcmp.lt.s32.totalorder %v3651, 0
      %vm4644 = vcmp.lt.s32.totalorder %v3680, 0
      %vm4645 = vcmp.lt.s32.totalorder %v3709, 0
      %vm4646 = vcmp.lt.s32.totalorder %v3738, 0
      %vm4647 = vcmp.lt.s32.totalorder %v3767, 0
      %vm4648 = vcmp.lt.s32.totalorder %v3796, 0
      %vm4649 = vcmp.lt.s32.totalorder %v3825, 0
      %vm4650 = vcmp.lt.s32.totalorder %v3854, 0
      %vm4651 = vcmp.lt.s32.totalorder %v3883, 0
      %vm4652 = vcmp.lt.s32.totalorder %v3912, 0
      %vm4653 = vcmp.lt.s32.totalorder %v3941, 0
      %vm4654 = vcmp.lt.s32.totalorder %v3970, 0
      %vm4655 = vcmp.lt.s32.totalorder %v3999, 0
      %vm4656 = vcmp.lt.s32.totalorder %v4028, 0
      %vm4657 = vcmp.lt.s32.totalorder %v4057, 0
      %vm4658 = vcmp.lt.s32.totalorder %v4086, 0
      %vm4659 = vcmp.lt.s32.totalorder %v4115, 0
      %vm4660 = vcmp.lt.s32.totalorder %v4144, 0
      %vm4661 = vcmp.lt.s32.totalorder %v4173, 0
      %vm4662 = vcmp.lt.s32.totalorder %v4202, 0
      %vm4663 = vcmp.lt.s32.totalorder %v4231, 0
      %vm4664 = vcmp.lt.s32.totalorder %v4260, 0
      %vm4665 = vcmp.lt.s32.totalorder %v4289, 0
      %vm4666 = vcmp.lt.s32.totalorder %v4318, 0
      %vm4667 = vcmp.lt.s32.totalorder %v4347, 0
      %vm4668 = vcmp.lt.s32.totalorder %v4376, 0
      %vm4669 = vcmp.lt.s32.totalorder %v4405, 0
      %vm4670 = vcmp.lt.s32.totalorder %v4434, 0
      %vm4671 = vcmp.lt.s32.totalorder %v4463, 0
      %vm4672 = vcmp.lt.s32.totalorder %v4492, 0
      %vm4673 = vcmp.lt.s32.totalorder %v4521, 0
      %vm4674 = vcmp.lt.s32.totalorder %v4550, 0
      %vm4675 = vcmp.lt.s32.totalorder %v4579, 0
      %vm4676 = vmand %vm4628, %vm4580
      %vm4677 = vmand %vm4629, %vm4581
      %vm4678 = vmand %vm4630, %vm4582
      %vm4679 = vmand %vm4631, %vm4583
      %vm4680 = vmand %vm4632, %vm4584
      %vm4681 = vmand %vm4633, %vm4585
      %vm4682 = vmand %vm4634, %vm4586
      %vm4683 = vmand %vm4635, %vm4587
      %vm4684 = vmand %vm4636, %vm4588
      %vm4685 = vmand %vm4637, %vm4589
      %vm4686 = vmand %vm4638, %vm4590
      %vm4687 = vmand %vm4639, %vm4591
      %vm4688 = vmand %vm4640, %vm4592
      %vm4689 = vmand %vm4641, %vm4593
      %vm4690 = vmand %vm4642, %vm4594
      %vm4691 = vmand %vm4643, %vm4595
      %vm4692 = vmand %vm4644, %vm4596
      %vm4693 = vmand %vm4645, %vm4597
      %vm4694 = vmand %vm4646, %vm4598
      %vm4695 = vmand %vm4647, %vm4599
      %vm4696 = vmand %vm4648, %vm4600
      %vm4697 = vmand %vm4649, %vm4601
      %vm4698 = vmand %vm4650, %vm4602
      %vm4699 = vmand %vm4651, %vm4603
      %vm4700 = vmand %vm4652, %vm4604
      %vm4701 = vmand %vm4653, %vm4605
      %vm4702 = vmand %vm4654, %vm4606
      %vm4703 = vmand %vm4655, %vm4607
      %vm4704 = vmand %vm4656, %vm4608
      %vm4705 = vmand %vm4657, %vm4609
      %vm4706 = vmand %vm4658, %vm4610
      %vm4707 = vmand %vm4659, %vm4611
      %vm4708 = vmand %vm4660, %vm4612
      %vm4709 = vmand %vm4661, %vm4613
      %vm4710 = vmand %vm4662, %vm4614
      %vm4711 = vmand %vm4663, %vm4615
      %vm4712 = vmand %vm4664, %vm4616
      %vm4713 = vmand %vm4665, %vm4617
      %vm4714 = vmand %vm4666, %vm4618
      %vm4715 = vmand %vm4667, %vm4619
      %vm4716 = vmand %vm4668, %vm4620
      %vm4717 = vmand %vm4669, %vm4621
      %vm4718 = vmand %vm4670, %vm4622
      %vm4719 = vmand %vm4671, %vm4623
      %vm4720 = vmand %vm4672, %vm4624
      %vm4721 = vmand %vm4673, %vm4625
      %vm4722 = vmand %vm4674, %vm4626
      %vm4723 = vmand %vm4675, %vm4627
      %v4724 = vadd.s32 %v3216, 24
      %v4725 = vadd.s32 %v3245, 24
      %v4726 = vadd.s32 %v3274, 24
      %v4727 = vadd.s32 %v3303, 24
      %v4728 = vadd.s32 %v3332, 24
      %v4729 = vadd.s32 %v3361, 24
      %v4730 = vadd.s32 %v3390, 24
      %v4731 = vadd.s32 %v3419, 24
      %v4732 = vadd.s32 %v3448, 24
      %v4733 = vadd.s32 %v3477, 24
      %v4734 = vadd.s32 %v3506, 24
      %v4735 = vadd.s32 %v3535, 24
      %v4736 = vadd.s32 %v3564, 24
      %v4737 = vadd.s32 %v3593, 24
      %v4738 = vadd.s32 %v3622, 24
      %v4739 = vadd.s32 %v3651, 24
      %v4740 = vadd.s32 %v3680, 24
      %v4741 = vadd.s32 %v3709, 24
      %v4742 = vadd.s32 %v3738, 24
      %v4743 = vadd.s32 %v3767, 24
      %v4744 = vadd.s32 %v3796, 24
      %v4745 = vadd.s32 %v3825, 24
      %v4746 = vadd.s32 %v3854, 24
      %v4747 = vadd.s32 %v3883, 24
      %v4748 = vadd.s32 %v3912, 24
      %v4749 = vadd.s32 %v3941, 24
      %v4750 = vadd.s32 %v3970, 24
      %v4751 = vadd.s32 %v3999, 24
      %v4752 = vadd.s32 %v4028, 24
      %v4753 = vadd.s32 %v4057, 24
      %v4754 = vadd.s32 %v4086, 24
      %v4755 = vadd.s32 %v4115, 24
      %v4756 = vadd.s32 %v4144, 24
      %v4757 = vadd.s32 %v4173, 24
      %v4758 = vadd.s32 %v4202, 24
      %v4759 = vadd.s32 %v4231, 24
      %v4760 = vadd.s32 %v4260, 24
      %v4761 = vadd.s32 %v4289, 24
      %v4762 = vadd.s32 %v4318, 24
      %v4763 = vadd.s32 %v4347, 24
      %v4764 = vadd.s32 %v4376, 24
      %v4765 = vadd.s32 %v4405, 24
      %v4766 = vadd.s32 %v4434, 24
      %v4767 = vadd.s32 %v4463, 24
      %v4768 = vadd.s32 %v4492, 24
      %v4769 = vadd.s32 %v4521, 24
      %v4770 = vadd.s32 %v4550, 24
      %v4771 = vadd.s32 %v4579, 24
      %v4772 = vsel %vm4676, %v4724, %v3216
      %v4773 = vsel %vm4677, %v4725, %v3245
      %v4774 = vsel %vm4678, %v4726, %v3274
      %v4775 = vsel %vm4679, %v4727, %v3303
      %v4776 = vsel %vm4680, %v4728, %v3332
      %v4777 = vsel %vm4681, %v4729, %v3361
      %v4778 = vsel %vm4682, %v4730, %v3390
      %v4779 = vsel %vm4683, %v4731, %v3419
      %v4780 = vsel %vm4684, %v4732, %v3448
      %v4781 = vsel %vm4685, %v4733, %v3477
      %v4782 = vsel %vm4686, %v4734, %v3506
      %v4783 = vsel %vm4687, %v4735, %v3535
      %v4784 = vsel %vm4688, %v4736, %v3564
      %v4785 = vsel %vm4689, %v4737, %v3593
      %v4786 = vsel %vm4690, %v4738, %v3622
      %v4787 = vsel %vm4691, %v4739, %v3651
      %v4788 = vsel %vm4692, %v4740, %v3680
      %v4789 = vsel %vm4693, %v4741, %v3709
      %v4790 = vsel %vm4694, %v4742, %v3738
      %v4791 = vsel %vm4695, %v4743, %v3767
      %v4792 = vsel %vm4696, %v4744, %v3796
      %v4793 = vsel %vm4697, %v4745, %v3825
      %v4794 = vsel %vm4698, %v4746, %v3854
      %v4795 = vsel %vm4699, %v4747, %v3883
      %v4796 = vsel %vm4700, %v4748, %v3912
      %v4797 = vsel %vm4701, %v4749, %v3941
      %v4798 = vsel %vm4702, %v4750, %v3970
      %v4799 = vsel %vm4703, %v4751, %v3999
      %v4800 = vsel %vm4704, %v4752, %v4028
      %v4801 = vsel %vm4705, %v4753, %v4057
      %v4802 = vsel %vm4706, %v4754, %v4086
      %v4803 = vsel %vm4707, %v4755, %v4115
      %v4804 = vsel %vm4708, %v4756, %v4144
      %v4805 = vsel %vm4709, %v4757, %v4173
      %v4806 = vsel %vm4710, %v4758, %v4202
      %v4807 = vsel %vm4711, %v4759, %v4231
      %v4808 = vsel %vm4712, %v4760, %v4260
      %v4809 = vsel %vm4713, %v4761, %v4289
      %v4810 = vsel %vm4714, %v4762, %v4318
      %v4811 = vsel %vm4715, %v4763, %v4347
      %v4812 = vsel %vm4716, %v4764, %v4376
      %v4813 = vsel %vm4717, %v4765, %v4405
      %v4814 = vsel %vm4718, %v4766, %v4434
      %v4815 = vsel %vm4719, %v4767, %v4463
      %v4816 = vsel %vm4720, %v4768, %v4492
      %v4817 = vsel %vm4721, %v4769, %v4521
      %v4818 = vsel %vm4722, %v4770, %v4550
      %v4819 = vsel %vm4723, %v4771, %v4579
      %vm4820 = vcmp.lt.s32.totalorder %v4772, 16
      %vm4821 = vcmp.lt.s32.totalorder %v4773, 16
      %vm4822 = vcmp.lt.s32.totalorder %v4774, 16
      %vm4823 = vcmp.lt.s32.totalorder %v4775, 16
      %vm4824 = vcmp.lt.s32.totalorder %v4776, 16
      %vm4825 = vcmp.lt.s32.totalorder %v4777, 16
      %vm4826 = vcmp.lt.s32.totalorder %v4778, 16
      %vm4827 = vcmp.lt.s32.totalorder %v4779, 16
      %vm4828 = vcmp.lt.s32.totalorder %v4780, 16
      %vm4829 = vcmp.lt.s32.totalorder %v4781, 16
      %vm4830 = vcmp.lt.s32.totalorder %v4782, 16
      %vm4831 = vcmp.lt.s32.totalorder %v4783, 16
      %vm4832 = vcmp.lt.s32.totalorder %v4784, 16
      %vm4833 = vcmp.lt.s32.totalorder %v4785, 16
      %vm4834 = vcmp.lt.s32.totalorder %v4786, 16
      %vm4835 = vcmp.lt.s32.totalorder %v4787, 16
      %vm4836 = vcmp.lt.s32.totalorder %v4788, 16
      %vm4837 = vcmp.lt.s32.totalorder %v4789, 16
      %vm4838 = vcmp.lt.s32.totalorder %v4790, 16
      %vm4839 = vcmp.lt.s32.totalorder %v4791, 16
      %vm4840 = vcmp.lt.s32.totalorder %v4792, 16
      %vm4841 = vcmp.lt.s32.totalorder %v4793, 16
      %vm4842 = vcmp.lt.s32.totalorder %v4794, 16
      %vm4843 = vcmp.lt.s32.totalorder %v4795, 16
      %vm4844 = vcmp.lt.s32.totalorder %v4796, 16
      %vm4845 = vcmp.lt.s32.totalorder %v4797, 16
      %vm4846 = vcmp.lt.s32.totalorder %v4798, 16
      %vm4847 = vcmp.lt.s32.totalorder %v4799, 16
      %vm4848 = vcmp.lt.s32.totalorder %v4800, 16
      %vm4849 = vcmp.lt.s32.totalorder %v4801, 16
      %vm4850 = vcmp.lt.s32.totalorder %v4802, 16
      %vm4851 = vcmp.lt.s32.totalorder %v4803, 16
      %vm4852 = vcmp.lt.s32.totalorder %v4804, 16
      %vm4853 = vcmp.lt.s32.totalorder %v4805, 16
      %vm4854 = vcmp.lt.s32.totalorder %v4806, 16
      %vm4855 = vcmp.lt.s32.totalorder %v4807, 16
      %vm4856 = vcmp.lt.s32.totalorder %v4808, 16
      %vm4857 = vcmp.lt.s32.totalorder %v4809, 16
      %vm4858 = vcmp.lt.s32.totalorder %v4810, 16
      %vm4859 = vcmp.lt.s32.totalorder %v4811, 16
      %vm4860 = vcmp.lt.s32.totalorder %v4812, 16
      %vm4861 = vcmp.lt.s32.totalorder %v4813, 16
      %vm4862 = vcmp.lt.s32.totalorder %v4814, 16
      %vm4863 = vcmp.lt.s32.totalorder %v4815, 16
      %vm4864 = vcmp.lt.s32.totalorder %v4816, 16
      %vm4865 = vcmp.lt.s32.totalorder %v4817, 16
      %vm4866 = vcmp.lt.s32.totalorder %v4818, 16
      %vm4867 = vcmp.lt.s32.totalorder %v4819, 16
      %v4868 = vsel %vm4820, 1, 0
      %v4869 = vsel %vm4821, 1, 0
      %v4870 = vsel %vm4822, 1, 0
      %v4871 = vsel %vm4823, 1, 0
      %v4872 = vsel %vm4824, 1, 0
      %v4873 = vsel %vm4825, 1, 0
      %v4874 = vsel %vm4826, 1, 0
      %v4875 = vsel %vm4827, 1, 0
      %v4876 = vsel %vm4828, 1, 0
      %v4877 = vsel %vm4829, 1, 0
      %v4878 = vsel %vm4830, 1, 0
      %v4879 = vsel %vm4831, 1, 0
      %v4880 = vsel %vm4832, 1, 0
      %v4881 = vsel %vm4833, 1, 0
      %v4882 = vsel %vm4834, 1, 0
      %v4883 = vsel %vm4835, 1, 0
      %v4884 = vsel %vm4836, 1, 0
      %v4885 = vsel %vm4837, 1, 0
      %v4886 = vsel %vm4838, 1, 0
      %v4887 = vsel %vm4839, 1, 0
      %v4888 = vsel %vm4840, 1, 0
      %v4889 = vsel %vm4841, 1, 0
      %v4890 = vsel %vm4842, 1, 0
      %v4891 = vsel %vm4843, 1, 0
      %v4892 = vsel %vm4844, 1, 0
      %v4893 = vsel %vm4845, 1, 0
      %v4894 = vsel %vm4846, 1, 0
      %v4895 = vsel %vm4847, 1, 0
      %v4896 = vsel %vm4848, 1, 0
      %v4897 = vsel %vm4849, 1, 0
      %v4898 = vsel %vm4850, 1, 0
      %v4899 = vsel %vm4851, 1, 0
      %v4900 = vsel %vm4852, 1, 0
      %v4901 = vsel %vm4853, 1, 0
      %v4902 = vsel %vm4854, 1, 0
      %v4903 = vsel %vm4855, 1, 0
      %v4904 = vsel %vm4856, 1, 0
      %v4905 = vsel %vm4857, 1, 0
      %v4906 = vsel %vm4858, 1, 0
      %v4907 = vsel %vm4859, 1, 0
      %v4908 = vsel %vm4860, 1, 0
      %v4909 = vsel %vm4861, 1, 0
      %v4910 = vsel %vm4862, 1, 0
      %v4911 = vsel %vm4863, 1, 0
      %v4912 = vsel %vm4864, 1, 0
      %v4913 = vsel %vm4865, 1, 0
      %v4914 = vsel %vm4866, 1, 0
      %v4915 = vsel %vm4867, 1, 0
      %vm4916 = vcmp.eq.s32.totalorder %v4868, 1
      %vm4917 = vcmp.eq.s32.totalorder %v4869, 1
      %vm4918 = vcmp.eq.s32.totalorder %v4870, 1
      %vm4919 = vcmp.eq.s32.totalorder %v4871, 1
      %vm4920 = vcmp.eq.s32.totalorder %v4872, 1
      %vm4921 = vcmp.eq.s32.totalorder %v4873, 1
      %vm4922 = vcmp.eq.s32.totalorder %v4874, 1
      %vm4923 = vcmp.eq.s32.totalorder %v4875, 1
      %vm4924 = vcmp.eq.s32.totalorder %v4876, 1
      %vm4925 = vcmp.eq.s32.totalorder %v4877, 1
      %vm4926 = vcmp.eq.s32.totalorder %v4878, 1
      %vm4927 = vcmp.eq.s32.totalorder %v4879, 1
      %vm4928 = vcmp.eq.s32.totalorder %v4880, 1
      %vm4929 = vcmp.eq.s32.totalorder %v4881, 1
      %vm4930 = vcmp.eq.s32.totalorder %v4882, 1
      %vm4931 = vcmp.eq.s32.totalorder %v4883, 1
      %vm4932 = vcmp.eq.s32.totalorder %v4884, 1
      %vm4933 = vcmp.eq.s32.totalorder %v4885, 1
      %vm4934 = vcmp.eq.s32.totalorder %v4886, 1
      %vm4935 = vcmp.eq.s32.totalorder %v4887, 1
      %vm4936 = vcmp.eq.s32.totalorder %v4888, 1
      %vm4937 = vcmp.eq.s32.totalorder %v4889, 1
      %vm4938 = vcmp.eq.s32.totalorder %v4890, 1
      %vm4939 = vcmp.eq.s32.totalorder %v4891, 1
      %vm4940 = vcmp.eq.s32.totalorder %v4892, 1
      %vm4941 = vcmp.eq.s32.totalorder %v4893, 1
      %vm4942 = vcmp.eq.s32.totalorder %v4894, 1
      %vm4943 = vcmp.eq.s32.totalorder %v4895, 1
      %vm4944 = vcmp.eq.s32.totalorder %v4896, 1
      %vm4945 = vcmp.eq.s32.totalorder %v4897, 1
      %vm4946 = vcmp.eq.s32.totalorder %v4898, 1
      %vm4947 = vcmp.eq.s32.totalorder %v4899, 1
      %vm4948 = vcmp.eq.s32.totalorder %v4900, 1
      %vm4949 = vcmp.eq.s32.totalorder %v4901, 1
      %vm4950 = vcmp.eq.s32.totalorder %v4902, 1
      %vm4951 = vcmp.eq.s32.totalorder %v4903, 1
      %vm4952 = vcmp.eq.s32.totalorder %v4904, 1
      %vm4953 = vcmp.eq.s32.totalorder %v4905, 1
      %vm4954 = vcmp.eq.s32.totalorder %v4906, 1
      %vm4955 = vcmp.eq.s32.totalorder %v4907, 1
      %vm4956 = vcmp.eq.s32.totalorder %v4908, 1
      %vm4957 = vcmp.eq.s32.totalorder %v4909, 1
      %vm4958 = vcmp.eq.s32.totalorder %v4910, 1
      %vm4959 = vcmp.eq.s32.totalorder %v4911, 1
      %vm4960 = vcmp.eq.s32.totalorder %v4912, 1
      %vm4961 = vcmp.eq.s32.totalorder %v4913, 1
      %vm4962 = vcmp.eq.s32.totalorder %v4914, 1
      %vm4963 = vcmp.eq.s32.totalorder %v4915, 1
      %v4964 = vsel %vm4916, %v2923, 0.0
      %v4965 = vsel %vm4917, %v2925, 0.0
      %v4966 = vsel %vm4918, %v2928, 0.0
      %v4967 = vsel %vm4919, %v2930, 0.0
      %v4968 = vsel %vm4920, %v2933, 0.0
      %v4969 = vsel %vm4921, %v2935, 0.0
      %v4970 = vsel %vm4922, %v2938, 0.0
      %v4971 = vsel %vm4923, %v2940, 0.0
      %v4972 = vsel %vm4924, %v2943, 0.0
      %v4973 = vsel %vm4925, %v2945, 0.0
      %v4974 = vsel %vm4926, %v2948, 0.0
      %v4975 = vsel %vm4927, %v2950, 0.0
      %v4976 = vsel %vm4928, %v2953, 0.0
      %v4977 = vsel %vm4929, %v2955, 0.0
      %v4978 = vsel %vm4930, %v2958, 0.0
      %v4979 = vsel %vm4931, %v2960, 0.0
      %v4980 = vsel %vm4932, %v2963, 0.0
      %v4981 = vsel %vm4933, %v2965, 0.0
      %v4982 = vsel %vm4934, %v2968, 0.0
      %v4983 = vsel %vm4935, %v2970, 0.0
      %v4984 = vsel %vm4936, %v2973, 0.0
      %v4985 = vsel %vm4937, %v2975, 0.0
      %v4986 = vsel %vm4938, %v2978, 0.0
      %v4987 = vsel %vm4939, %v2980, 0.0
      %v4988 = vsel %vm4940, %v2983, 0.0
      %v4989 = vsel %vm4941, %v2985, 0.0
      %v4990 = vsel %vm4942, %v2988, 0.0
      %v4991 = vsel %vm4943, %v2990, 0.0
      %v4992 = vsel %vm4944, %v2993, 0.0
      %v4993 = vsel %vm4945, %v2995, 0.0
      %v4994 = vsel %vm4946, %v2998, 0.0
      %v4995 = vsel %vm4947, %v3000, 0.0
      %v4996 = vsel %vm4948, %v3003, 0.0
      %v4997 = vsel %vm4949, %v3005, 0.0
      %v4998 = vsel %vm4950, %v3008, 0.0
      %v4999 = vsel %vm4951, %v3010, 0.0
      %v5000 = vsel %vm4952, %v3013, 0.0
      %v5001 = vsel %vm4953, %v3015, 0.0
      %v5002 = vsel %vm4954, %v3018, 0.0
      %v5003 = vsel %vm4955, %v3020, 0.0
      %v5004 = vsel %vm4956, %v3023, 0.0
      %v5005 = vsel %vm4957, %v3025, 0.0
      %v5006 = vsel %vm4958, %v3028, 0.0
      %v5007 = vsel %vm4959, %v3030, 0.0
      %v5008 = vsel %vm4960, %v3033, 0.0
      %v5009 = vsel %vm4961, %v3035, 0.0
      %v5010 = vsel %vm4962, %v3038, 0.0
      %v5011 = vsel %vm4963, %v3040, 0.0
      %vm5012 = vcmask 64512
      %v5013 = vsel %vm5012, %v4964, 0.0
      %v5014 = vsel %vm5012, %v4965, 0.0
      %v5015 = vadd.f32 %v5013, %v5014
      %v5016 = vsel %vm5012, %v4966, 0.0
      %v5017 = vadd.f32 %v5015, %v5016
      %v5018 = vsel %vm5012, %v4967, 0.0
      %v5019 = vadd.f32 %v5017, %v5018
      %v5020 = vsel %vm5012, %v4968, 0.0
      %v5021 = vadd.f32 %v5019, %v5020
      %v5022 = vsel %vm5012, %v4969, 0.0
      %v5023 = vadd.f32 %v5021, %v5022
      %v5024 = vsel %vm5012, %v4970, 0.0
      %v5025 = vadd.f32 %v5023, %v5024
      %v5026 = vsel %vm5012, %v4971, 0.0
      %v5027 = vadd.f32 %v5025, %v5026
      %v5028 = vsel %vm5012, %v4972, 0.0
      %v5029 = vadd.f32 %v5027, %v5028
      %v5030 = vsel %vm5012, %v4973, 0.0
      %v5031 = vadd.f32 %v5029, %v5030
      %v5032 = vsel %vm5012, %v4974, 0.0
      %v5033 = vadd.f32 %v5031, %v5032
      %v5034 = vsel %vm5012, %v4975, 0.0
      %v5035 = vadd.f32 %v5033, %v5034
      %v5036 = vsel %vm5012, %v4976, 0.0
      %v5037 = vadd.f32 %v5035, %v5036
      %v5038 = vsel %vm5012, %v4977, 0.0
      %v5039 = vadd.f32 %v5037, %v5038
      %v5040 = vsel %vm5012, %v4978, 0.0
      %v5041 = vadd.f32 %v5039, %v5040
      %v5042 = vsel %vm5012, %v4979, 0.0
      %v5043 = vadd.f32 %v5041, %v5042
      %v5044 = vsel %vm5012, %v4980, 0.0
      %v5045 = vadd.f32 %v5043, %v5044
      %v5046 = vsel %vm5012, %v4981, 0.0
      %v5047 = vadd.f32 %v5045, %v5046
      %v5048 = vsel %vm5012, %v4982, 0.0
      %v5049 = vadd.f32 %v5047, %v5048
      %v5050 = vsel %vm5012, %v4983, 0.0
      %v5051 = vadd.f32 %v5049, %v5050
      %v5052 = vsel %vm5012, %v4984, 0.0
      %v5053 = vadd.f32 %v5051, %v5052
      %v5054 = vsel %vm5012, %v4985, 0.0
      %v5055 = vadd.f32 %v5053, %v5054
      %v5056 = vsel %vm5012, %v4986, 0.0
      %v5057 = vadd.f32 %v5055, %v5056
      %v5058 = vsel %vm5012, %v4987, 0.0
      %v5059 = vadd.f32 %v5057, %v5058
      %v5060 = vsel %vm5012, %v4988, 0.0
      %v5061 = vadd.f32 %v5059, %v5060
      %v5062 = vsel %vm5012, %v4989, 0.0
      %v5063 = vadd.f32 %v5061, %v5062
      %v5064 = vsel %vm5012, %v4990, 0.0
      %v5065 = vadd.f32 %v5063, %v5064
      %v5066 = vsel %vm5012, %v4991, 0.0
      %v5067 = vadd.f32 %v5065, %v5066
      %v5068 = vsel %vm5012, %v4992, 0.0
      %v5069 = vadd.f32 %v5067, %v5068
      %v5070 = vsel %vm5012, %v4993, 0.0
      %v5071 = vadd.f32 %v5069, %v5070
      %v5072 = vsel %vm5012, %v4994, 0.0
      %v5073 = vadd.f32 %v5071, %v5072
      %v5074 = vsel %vm5012, %v4995, 0.0
      %v5075 = vadd.f32 %v5073, %v5074
      %v5076 = vsel %vm5012, %v4996, 0.0
      %v5077 = vadd.f32 %v5075, %v5076
      %v5078 = vsel %vm5012, %v4997, 0.0
      %v5079 = vadd.f32 %v5077, %v5078
      %v5080 = vsel %vm5012, %v4998, 0.0
      %v5081 = vadd.f32 %v5079, %v5080
      %v5082 = vsel %vm5012, %v4999, 0.0
      %v5083 = vadd.f32 %v5081, %v5082
      %v5084 = vsel %vm5012, %v5000, 0.0
      %v5085 = vadd.f32 %v5083, %v5084
      %v5086 = vsel %vm5012, %v5001, 0.0
      %v5087 = vadd.f32 %v5085, %v5086
      %v5088 = vsel %vm5012, %v5002, 0.0
      %v5089 = vadd.f32 %v5087, %v5088
      %v5090 = vsel %vm5012, %v5003, 0.0
      %v5091 = vadd.f32 %v5089, %v5090
      %v5092 = vsel %vm5012, %v5004, 0.0
      %v5093 = vadd.f32 %v5091, %v5092
      %v5094 = vsel %vm5012, %v5005, 0.0
      %v5095 = vadd.f32 %v5093, %v5094
      %v5096 = vsel %vm5012, %v5006, 0.0
      %v5097 = vadd.f32 %v5095, %v5096
      %v5098 = vsel %vm5012, %v5007, 0.0
      %v5099 = vadd.f32 %v5097, %v5098
      %v5100 = vsel %vm5012, %v5008, 0.0
      %v5101 = vadd.f32 %v5099, %v5100
      %v5102 = vsel %vm5012, %v5009, 0.0
      %v5103 = vadd.f32 %v5101, %v5102
      %v5104 = vsel %vm5012, %v5010, 0.0
      %v5105 = vadd.f32 %v5103, %v5104
      %v5106 = vsel %vm5012, %v5011, 0.0
      %v5107 = vadd.f32 %v5105, %v5106
      %v5108 = vrot.slane %v5107, 4
      %v5109 = vadd.f32 %v5107, %v5108
      %v5110 = vrot.slane %v5109, 2
      %v5111 = vadd.f32 %v5109, %v5110
      %v5112 = vrot.slane %v5111, 1
      %v5113 = vadd.f32 %v5111, %v5112
      %v5114 = vmul.f32 %v4964, %v4964
      %v5115 = vmul.f32 %v4965, %v4965
      %v5116 = vmul.f32 %v4966, %v4966
      %v5117 = vmul.f32 %v4967, %v4967
      %v5118 = vmul.f32 %v4968, %v4968
      %v5119 = vmul.f32 %v4969, %v4969
      %v5120 = vmul.f32 %v4970, %v4970
      %v5121 = vmul.f32 %v4971, %v4971
      %v5122 = vmul.f32 %v4972, %v4972
      %v5123 = vmul.f32 %v4973, %v4973
      %v5124 = vmul.f32 %v4974, %v4974
      %v5125 = vmul.f32 %v4975, %v4975
      %v5126 = vmul.f32 %v4976, %v4976
      %v5127 = vmul.f32 %v4977, %v4977
      %v5128 = vmul.f32 %v4978, %v4978
      %v5129 = vmul.f32 %v4979, %v4979
      %v5130 = vmul.f32 %v4980, %v4980
      %v5131 = vmul.f32 %v4981, %v4981
      %v5132 = vmul.f32 %v4982, %v4982
      %v5133 = vmul.f32 %v4983, %v4983
      %v5134 = vmul.f32 %v4984, %v4984
      %v5135 = vmul.f32 %v4985, %v4985
      %v5136 = vmul.f32 %v4986, %v4986
      %v5137 = vmul.f32 %v4987, %v4987
      %v5138 = vmul.f32 %v4988, %v4988
      %v5139 = vmul.f32 %v4989, %v4989
      %v5140 = vmul.f32 %v4990, %v4990
      %v5141 = vmul.f32 %v4991, %v4991
      %v5142 = vmul.f32 %v4992, %v4992
      %v5143 = vmul.f32 %v4993, %v4993
      %v5144 = vmul.f32 %v4994, %v4994
      %v5145 = vmul.f32 %v4995, %v4995
      %v5146 = vmul.f32 %v4996, %v4996
      %v5147 = vmul.f32 %v4997, %v4997
      %v5148 = vmul.f32 %v4998, %v4998
      %v5149 = vmul.f32 %v4999, %v4999
      %v5150 = vmul.f32 %v5000, %v5000
      %v5151 = vmul.f32 %v5001, %v5001
      %v5152 = vmul.f32 %v5002, %v5002
      %v5153 = vmul.f32 %v5003, %v5003
      %v5154 = vmul.f32 %v5004, %v5004
      %v5155 = vmul.f32 %v5005, %v5005
      %v5156 = vmul.f32 %v5006, %v5006
      %v5157 = vmul.f32 %v5007, %v5007
      %v5158 = vmul.f32 %v5008, %v5008
      %v5159 = vmul.f32 %v5009, %v5009
      %v5160 = vmul.f32 %v5010, %v5010
      %v5161 = vmul.f32 %v5011, %v5011
      %v5162 = vsel %vm5012, %v5114, 0.0
      %v5163 = vsel %vm5012, %v5115, 0.0
      %v5164 = vadd.f32 %v5162, %v5163
      %v5165 = vsel %vm5012, %v5116, 0.0
      %v5166 = vadd.f32 %v5164, %v5165
      %v5167 = vsel %vm5012, %v5117, 0.0
      %v5168 = vadd.f32 %v5166, %v5167
      %v5169 = vsel %vm5012, %v5118, 0.0
      %v5170 = vadd.f32 %v5168, %v5169
      %v5171 = vsel %vm5012, %v5119, 0.0
      %v5172 = vadd.f32 %v5170, %v5171
      %v5173 = vsel %vm5012, %v5120, 0.0
      %v5174 = vadd.f32 %v5172, %v5173
      %v5175 = vsel %vm5012, %v5121, 0.0
      %v5176 = vadd.f32 %v5174, %v5175
      %v5177 = vsel %vm5012, %v5122, 0.0
      %v5178 = vadd.f32 %v5176, %v5177
      %v5179 = vsel %vm5012, %v5123, 0.0
      %v5180 = vadd.f32 %v5178, %v5179
      %v5181 = vsel %vm5012, %v5124, 0.0
      %v5182 = vadd.f32 %v5180, %v5181
      %v5183 = vsel %vm5012, %v5125, 0.0
      %v5184 = vadd.f32 %v5182, %v5183
      %v5185 = vsel %vm5012, %v5126, 0.0
      %v5186 = vadd.f32 %v5184, %v5185
      %v5187 = vsel %vm5012, %v5127, 0.0
      %v5188 = vadd.f32 %v5186, %v5187
      %v5189 = vsel %vm5012, %v5128, 0.0
      %v5190 = vadd.f32 %v5188, %v5189
      %v5191 = vsel %vm5012, %v5129, 0.0
      %v5192 = vadd.f32 %v5190, %v5191
      %v5193 = vsel %vm5012, %v5130, 0.0
      %v5194 = vadd.f32 %v5192, %v5193
      %v5195 = vsel %vm5012, %v5131, 0.0
      %v5196 = vadd.f32 %v5194, %v5195
      %v5197 = vsel %vm5012, %v5132, 0.0
      %v5198 = vadd.f32 %v5196, %v5197
      %v5199 = vsel %vm5012, %v5133, 0.0
      %v5200 = vadd.f32 %v5198, %v5199
      %v5201 = vsel %vm5012, %v5134, 0.0
      %v5202 = vadd.f32 %v5200, %v5201
      %v5203 = vsel %vm5012, %v5135, 0.0
      %v5204 = vadd.f32 %v5202, %v5203
      %v5205 = vsel %vm5012, %v5136, 0.0
      %v5206 = vadd.f32 %v5204, %v5205
      %v5207 = vsel %vm5012, %v5137, 0.0
      %v5208 = vadd.f32 %v5206, %v5207
      %v5209 = vsel %vm5012, %v5138, 0.0
      %v5210 = vadd.f32 %v5208, %v5209
      %v5211 = vsel %vm5012, %v5139, 0.0
      %v5212 = vadd.f32 %v5210, %v5211
      %v5213 = vsel %vm5012, %v5140, 0.0
      %v5214 = vadd.f32 %v5212, %v5213
      %v5215 = vsel %vm5012, %v5141, 0.0
      %v5216 = vadd.f32 %v5214, %v5215
      %v5217 = vsel %vm5012, %v5142, 0.0
      %v5218 = vadd.f32 %v5216, %v5217
      %v5219 = vsel %vm5012, %v5143, 0.0
      %v5220 = vadd.f32 %v5218, %v5219
      %v5221 = vsel %vm5012, %v5144, 0.0
      %v5222 = vadd.f32 %v5220, %v5221
      %v5223 = vsel %vm5012, %v5145, 0.0
      %v5224 = vadd.f32 %v5222, %v5223
      %v5225 = vsel %vm5012, %v5146, 0.0
      %v5226 = vadd.f32 %v5224, %v5225
      %v5227 = vsel %vm5012, %v5147, 0.0
      %v5228 = vadd.f32 %v5226, %v5227
      %v5229 = vsel %vm5012, %v5148, 0.0
      %v5230 = vadd.f32 %v5228, %v5229
      %v5231 = vsel %vm5012, %v5149, 0.0
      %v5232 = vadd.f32 %v5230, %v5231
      %v5233 = vsel %vm5012, %v5150, 0.0
      %v5234 = vadd.f32 %v5232, %v5233
      %v5235 = vsel %vm5012, %v5151, 0.0
      %v5236 = vadd.f32 %v5234, %v5235
      %v5237 = vsel %vm5012, %v5152, 0.0
      %v5238 = vadd.f32 %v5236, %v5237
      %v5239 = vsel %vm5012, %v5153, 0.0
      %v5240 = vadd.f32 %v5238, %v5239
      %v5241 = vsel %vm5012, %v5154, 0.0
      %v5242 = vadd.f32 %v5240, %v5241
      %v5243 = vsel %vm5012, %v5155, 0.0
      %v5244 = vadd.f32 %v5242, %v5243
      %v5245 = vsel %vm5012, %v5156, 0.0
      %v5246 = vadd.f32 %v5244, %v5245
      %v5247 = vsel %vm5012, %v5157, 0.0
      %v5248 = vadd.f32 %v5246, %v5247
      %v5249 = vsel %vm5012, %v5158, 0.0
      %v5250 = vadd.f32 %v5248, %v5249
      %v5251 = vsel %vm5012, %v5159, 0.0
      %v5252 = vadd.f32 %v5250, %v5251
      %v5253 = vsel %vm5012, %v5160, 0.0
      %v5254 = vadd.f32 %v5252, %v5253
      %v5255 = vsel %vm5012, %v5161, 0.0
      %v5256 = vadd.f32 %v5254, %v5255
      %v5257 = vrot.slane %v5256, 4
      %v5258 = vadd.f32 %v5256, %v5257
      %v5259 = vrot.slane %v5258, 2
      %v5260 = vadd.f32 %v5258, %v5259
      %v5261 = vrot.slane %v5260, 1
      %v5262 = vadd.f32 %v5260, %v5261
      %vm5263 = vcmask 1040384
      %v5264 = vsel %vm5263, %v5113, %v5262
      %p5265 = scmp.eq.s32.totalorder %s22, 0
      // Predicated region
      $region29: #{_conv_relu_bn_impl.2} parent=27 // pred_check
        %p5266 = pneg %p5265
      $region30: #{_conv_relu_bn_impl.2} parent=27 // pred_check_branch
        %5268 = sbr.rel (%p5266) target = $region32
      $region31: #{_conv_relu_bn_impl.2} parent=27 // pred_region
        %vm5269 = vcmask 58368
        %5270 = vst.msk [vmem:[%s224] sm:$0x3] %vm5269, 0.0
      $region32: #{_conv_relu_bn_impl.2} parent=27 // pred_fallthru
        _
      %v5271 = vld [vmem:[%s224] sm:$0x3]
      %v5272 = vadd.f32 %v5271, %v5264
      %vm5273 = vcmask 58368
      %5274 = vst.msk [vmem:[%s224] sm:$0x3] %vm5273, %v5272
      %s5275 = sadd.s32 %s21, %s22
      %s5276 = smul.u32 48, %s5275
      %p5277 = scmp.lt.s32.totalorder %s20, 1
      %s5278 = scalar_select %p5277, %s20, 1
      %p5279 = scmp.lt.s32.totalorder %s5276, 47
      %s5280 = scalar_select %p5279, %s5276, 47
      %s5281 = smul.addr %s5278, 48
      %s5282 = sadd.s32 %s5280, %s5281
      %s5283 = smul.addr %s5282, 4
      %s5284 = scalar_lea.vmem %s2, %s5283
      %p5285 = scmp.lt.s32.totalorder %s20, 1
      %s5286 = scalar_select %p5285, %s20, 1
      %p5287 = scmp.lt.s32.totalorder %s21, 0
      %s5288 = scalar_select %p5287, %s21, 0
      %s5289 = sadd.s32 %s5288, %s5286
      %s5290 = smul.addr %s5289, 2
      %s5291 = scalar_lea.vmem %s3, %s5290
      // Predicated region
      $region33: #{_conv_relu_bn_impl.2} parent=27 // pred_check
        %p5292 = pneg %p103
      $region34: #{_conv_relu_bn_impl.2} parent=27 // pred_check_branch
        %5294 = sbr.rel (%p5292) target = $region36
      $region35: #{_conv_relu_bn_impl.2} parent=27 // pred_region
        %s5295 = sadd.s32 %s21, %s22
        %s5296 = smul.u32 48, %s5295
      $region36: #{_conv_relu_bn_impl.2} parent=27 // pred_fallthru
        _
      // Predicated region
      $region37: #{_conv_relu_bn_impl.2} parent=27 // pred_check
        %p5297 = pneg %p131
      $region38: #{_conv_relu_bn_impl.2} parent=27 // pred_check_branch
        %5299 = sbr.rel (%p5297) target = $region40
      $region39: #{_conv_relu_bn_impl.2} parent=27 // pred_region
        _
      $region40: #{_conv_relu_bn_impl.2} parent=27 // pred_fallthru
        _
    $region28: #{_conv_relu_bn_impl.2} parent=5 // pred_fallthru
      _
    %p5300 = scmp.le.s32.totalorder 2, %s10
    // Predicated region
    $region41: #{_conv_relu_bn_impl.2} parent=5 // pred_check
      %p5301 = pneg %p5300
    $region42: #{_conv_relu_bn_impl.2} parent=5 // pred_check_branch
      %5303 = sbr.rel (%p5301) target = $region44
    $region43: #{_conv_relu_bn_impl.2} parent=5 // pred_region
      %s5304 = ssub.s32 %s10, 2
      // Predicated region
      $region45: #{_conv_relu_bn_impl.2} parent=43 // pred_check
        %p5305 = pneg %p109
      $region46: #{_conv_relu_bn_impl.2} parent=43 // pred_check_branch
        %5307 = sbr.rel (%p5305) target = $region48
      $region47: #{_conv_relu_bn_impl.2} parent=43 // pred_region
        %s5308 = sadd.s32 %s24, %s25
        %s5309 = smul.u32 48, %s5308
        %p5310 = scmp.lt.s32.totalorder %s23, 1
        %s5311 = scalar_select %p5310, %s23, 1
        %p5312 = scmp.lt.s32.totalorder %s5309, 47
        %s5313 = scalar_select %p5312, %s5309, 47
        %s5314 = smul.addr %s5311, 48
        %s5315 = sadd.s32 %s5313, %s5314
        %s5316 = smul.addr %s5315, 4
        %s5317 = scalar_lea.vmem %s2, %s5316
      $region48: #{_conv_relu_bn_impl.2} parent=43 // pred_fallthru
        _
      // Predicated region
      $region49: #{_conv_relu_bn_impl.2} parent=43 // pred_check
        %p5318 = pneg %p137
      $region50: #{_conv_relu_bn_impl.2} parent=43 // pred_check_branch
        %5320 = sbr.rel (%p5318) target = $region52
      $region51: #{_conv_relu_bn_impl.2} parent=43 // pred_region
        %p5321 = scmp.lt.s32.totalorder %s23, 1
        %s5322 = scalar_select %p5321, %s23, 1
        %p5323 = scmp.lt.s32.totalorder %s24, 0
        %s5324 = scalar_select %p5323, %s24, 0
        %s5325 = sadd.s32 %s5324, %s5322
        %s5326 = smul.addr %s5325, 2
        %s5327 = scalar_lea.vmem %s3, %s5326
      $region52: #{_conv_relu_bn_impl.2} parent=43 // pred_fallthru
        _
    $region44: #{_conv_relu_bn_impl.2} parent=5 // pred_fallthru
      _
  $region6: #{_conv_relu_bn_impl.2} parent=0 // loop_footer
    %s14 = sadd.s32 1, %s10
  $region7: #{_conv_relu_bn_impl.2} parent=0 // loop_footer_branch
    %9 = sbr.rel target = $region3
  $region8: #{_conv_relu_bn_impl.2} parent=0 // loop_exit
    _

</llo_original>
